<compile_context>
chip_gen: v7x
topology: tpu7x:2x2x1
jax: 0.10.0
libtpu: 0.0.40
codegen_flags: <defaults>
</compile_context>

<pallas_src>
import jax
import jax.numpy as jnp
from jax import lax
from jax.experimental import pallas as pl
from jax.experimental.pallas import tpu as pltpu


def _lstm_recurrence_kernel(gx_ref, whh_ref, h_out_ref, h_sc, c_sc):
    """Runs the full LSTM recurrence for one sequence block.

    gx_ref    : (T, 4, B, H)  precomputed x_t @ W_ih^T + (b_ih + b_hh),
                              gate order [i, f, g, o] on axis 1.
    whh_ref   : (4, H, H)     recurrent weights, laid out so gate k is h @ whh[k].
    h_out_ref : (B, H)        final hidden state h_T (written once at the end).
    h_sc, c_sc: (B, H)        VMEM scratch for the carried hidden / cell state.
    """
    n_steps = gx_ref.shape[0]

    h_sc[...] = jnp.zeros_like(h_sc)
    c_sc[...] = jnp.zeros_like(c_sc)

    def step(t, carry):
        h = h_sc[...]
        c = c_sc[...]
        h_m = h.astype(whh_ref.dtype)  # MXU operand dtype (f32 or bf16)

        def gate(k):
            # Per-gate lane-dense tile: (B, H) + (B, H) @ (H, H)
            return gx_ref[t, k] + jnp.dot(
                h_m, whh_ref[k], preferred_element_type=jnp.float32)

        i_g = jax.nn.sigmoid(gate(0))
        f_g = jax.nn.sigmoid(gate(1))
        g_g = jnp.tanh(gate(2))
        o_g = jax.nn.sigmoid(gate(3))

        c_new = f_g * c + i_g * g_g
        h_new = o_g * jnp.tanh(c_new)

        c_sc[...] = c_new
        h_sc[...] = h_new
        return carry

    # Short sequences: fully unroll so the LLO scheduler can overlap steps.
    unroll = True if n_steps <= 32 else 8
    lax.fori_loop(0, n_steps, step, 0, unroll=unroll)

    h_out_ref[...] = h_sc[...]


def lstm_model_forward(x, params, *, mxu_dtype=jnp.float32):
    """Forward pass matching LSTM_Model: x (B, T, D) float32 -> logits (B, O)."""
    B, T, D = x.shape
    w_ih = params["w_ih"]        # (4H, D)  torch layout, gate order [i,f,g,o]
    w_hh = params["w_hh"]        # (4H, H)
    b_ih = params["b_ih"]        # (4H,)
    b_hh = params["b_hh"]        # (4H,)
    w_fc = params["w_fc"]        # (O, H)
    b_fc = params["b_fc"]        # (O,)
    H = w_hh.shape[1]

    # ---- Hoisted input projection (one big matmul, off the serial chain) ----
    w_ih_g = w_ih.reshape(4, H, D)                         # (4, H, D)
    bias = (b_ih + b_hh).reshape(1, 4, 1, H)               # fold both biases
    x_tm = jnp.transpose(x, (1, 0, 2))                     # (T, B, D)
    gates_x = jnp.einsum("tbd,ghd->tgbh", x_tm, w_ih_g) + bias  # (T, 4, B, H)

    # Recurrent weights, per-gate, transposed for h @ W: (4, H_in, H_out)
    w_hh_t = jnp.transpose(w_hh.reshape(4, H, H), (0, 2, 1)).astype(mxu_dtype)

    h_last = pl.pallas_call(
        _lstm_recurrence_kernel,
        out_shape=jax.ShapeDtypeStruct((B, H), jnp.float32),
        grid_spec=pltpu.PrefetchScalarGridSpec(
            num_scalar_prefetch=0,
            grid=(1,),  # whole recurrence in one grid step (in-kernel loop)
            in_specs=[
                pl.BlockSpec((T, 4, B, H), lambda i: (0, 0, 0, 0)),  # gates_x
                pl.BlockSpec((4, H, H), lambda i: (0, 0, 0)),        # W_hh^T
            ],
            out_specs=pl.BlockSpec((B, H), lambda i: (0, 0)),
            scratch_shapes=[
                pltpu.VMEM((B, H), jnp.float32),  # h_t
                pltpu.VMEM((B, H), jnp.float32),  # c_t
            ],
        ),
        compiler_params=pltpu.CompilerParams(
            dimension_semantics=("arbitrary",),   # sequential recurrence
            vmem_limit_bytes=32 * 1024 * 1024,    # safe on v7x's 64 MiB VMEM
        ),
    )(gates_x, w_hh_t)

    # Final Linear on the last timestep's hidden state (trivial; left to XLA).
    return h_last @ w_fc.T + b_fc


def _reference_forward(x, params):
    """Pure-JAX reference of the same LSTM + FC (torch weight layout)."""
    B, T, D = x.shape
    H = params["w_hh"].shape[1]
    h = jnp.zeros((B, H), jnp.float32)
    c = jnp.zeros((B, H), jnp.float32)
    for t in range(T):
        gates = (x[:, t, :] @ params["w_ih"].T + h @ params["w_hh"].T
                 + params["b_ih"] + params["b_hh"])
        i_g = jax.nn.sigmoid(gates[:, 0 * H:1 * H])
        f_g = jax.nn.sigmoid(gates[:, 1 * H:2 * H])
        g_g = jnp.tanh(gates[:, 2 * H:3 * H])
        o_g = jax.nn.sigmoid(gates[:, 3 * H:4 * H])
        c = f_g * c + i_g * g_g
        h = o_g * jnp.tanh(c)
    return h @ params["w_fc"].T + params["b_fc"]


def init_params(key, input_dim, hidden_dim, output_dim):
    """Deterministic synthetic init, stored in PyTorch nn.LSTM / nn.Linear layout."""
    k = jax.random.split(key, 6)
    scale = 1.0 / jnp.sqrt(hidden_dim)
    return {
        "w_ih": jax.random.uniform(k[0], (4 * hidden_dim, input_dim),
                                   jnp.float32, -scale, scale),
        "w_hh": jax.random.uniform(k[1], (4 * hidden_dim, hidden_dim),
                                   jnp.float32, -scale, scale),
        "b_ih": jax.random.uniform(k[2], (4 * hidden_dim,),
                                   jnp.float32, -scale, scale),
        "b_hh": jax.random.uniform(k[3], (4 * hidden_dim,),
                                   jnp.float32, -scale, scale),
        "w_fc": jax.random.uniform(k[4], (output_dim, hidden_dim),
                                   jnp.float32, -scale, scale),
        "b_fc": jax.random.uniform(k[5], (output_dim,),
                                   jnp.float32, -scale, scale),
    }


if __name__ == "__main__":
    # Small shapes consistent with the module: (batch, seq, input_dim),
    # hidden_dim=100, output_dim=10 as in the PyTorch spec.
    B, T, D = 2, 8, 28
    H, O = 100, 10

    key = jax.random.PRNGKey(0)
    k_x, k_p = jax.random.split(key)
    x = jax.random.normal(k_x, (B, T, D), jnp.float32)
    params = init_params(k_p, D, H, O)

    out = jax.block_until_ready(lstm_model_forward(x, params))
    ref = _reference_forward(x, params)

    assert out.shape == (B, O)
    assert jnp.allclose(out, ref, atol=1e-4, rtol=1e-4), "mismatch vs reference"
    print("KERNEL_OK")
</pallas_src>

<mosaic_0001>
module attributes {stable_mosaic.version = 11 : i64} {
  func.func @_lstm_recurrence_kernel(%arg0: i32, %arg1: memref<8x4x2x100xf32, #tpu.memory_space<vmem>>, %arg2: memref<4x100x100xf32, #tpu.memory_space<vmem>>, %arg3: memref<2x100xf32, #tpu.memory_space<vmem>>, %arg4: memref<2x100xf32, #tpu.memory_space<vmem>>, %arg5: memref<2x100xf32, #tpu.memory_space<vmem>>) attributes {dimension_semantics = [#tpu.dimension_semantics<arbitrary>], iteration_bounds = array<i64: 1>, scalar_prefetch = 0 : i64, scratch_operands = 2 : i64, tpu.core_type = #tpu.core_type<tc>, window_params = [{pipeline_mode = #tpu.pipeline_mode<synchronous>, transform_indices = @transform_0, window_bounds = array<i64: 8, 4, 2, 100>}, {pipeline_mode = #tpu.pipeline_mode<synchronous>, transform_indices = @transform_1, window_bounds = array<i64: 4, 100, 100>}, {pipeline_mode = #tpu.pipeline_mode<synchronous>, transform_indices = @transform_2, window_bounds = array<i64: 2, 100>}]} {
    %cst = arith.constant 0.000000e+00 : f32
    %0 = vector.broadcast %cst : f32 to vector<2x100xf32>
    %c0 = arith.constant 0 : index
    %c0_0 = arith.constant 0 : index
    %1 = vector.load %arg4[%c0, %c0_0] : memref<2x100xf32, #tpu.memory_space<vmem>>, vector<2x100xf32>
    tpu.vector_store %arg4[%c0, %c0_0], %0 {strides = array<i32>} : memref<2x100xf32, #tpu.memory_space<vmem>>, vector<2x100xf32>,
    %cst_1 = arith.constant 0.000000e+00 : f32
    %2 = vector.broadcast %cst_1 : f32 to vector<2x100xf32>
    %c0_2 = arith.constant 0 : index
    %c0_3 = arith.constant 0 : index
    %3 = vector.load %arg5[%c0_2, %c0_3] : memref<2x100xf32, #tpu.memory_space<vmem>>, vector<2x100xf32>
    tpu.vector_store %arg5[%c0_2, %c0_3], %2 {strides = array<i32>} : memref<2x100xf32, #tpu.memory_space<vmem>>, vector<2x100xf32>,
    %c0_i32 = arith.constant 0 : i32
    %c0_4 = arith.constant 0 : index
    %c0_5 = arith.constant 0 : index
    %4 = vector.load %arg4[%c0_4, %c0_5] : memref<2x100xf32, #tpu.memory_space<vmem>>, vector<2x100xf32>
    %c0_6 = arith.constant 0 : index
    %c0_7 = arith.constant 0 : index
    %5 = vector.load %arg5[%c0_6, %c0_7] : memref<2x100xf32, #tpu.memory_space<vmem>>, vector<2x100xf32>
    %6 = arith.index_cast %c0_i32 : i32 to index
    %c0_8 = arith.constant 0 : index
    %c0_9 = arith.constant 0 : index
    %c0_10 = arith.constant 0 : index
    %7 = vector.load %arg1[%6, %c0_8, %c0_9, %c0_10] : memref<8x4x2x100xf32, #tpu.memory_space<vmem>>, vector<1x1x2x100xf32>
    %8 = vector.shape_cast %7 : vector<1x1x2x100xf32> to vector<2x100xf32>
    %c0_11 = arith.constant 0 : index
    %c0_12 = arith.constant 0 : index
    %c0_13 = arith.constant 0 : index
    %9 = vector.load %arg2[%c0_11, %c0_12, %c0_13] : memref<4x100x100xf32, #tpu.memory_space<vmem>>, vector<1x100x100xf32>
    %10 = vector.shape_cast %9 : vector<1x100x100xf32> to vector<100x100xf32>
    %cst_14 = arith.constant dense<0.000000e+00> : vector<2x100xf32>
    %11 = tpu.matmul %4, %10, %cst_14 {dimension_numbers = #tpu.dot_dimension_numbers<[1], [0], [0], [1], [0, 0, 1, 1], [], []>} : vector<2x100xf32>, vector<100x100xf32>, vector<2x100xf32> -> vector<2x100xf32>
    %12 = arith.addf %8, %11 : vector<2x100xf32>
    %13 = arith.negf %12 : vector<2x100xf32>
    %14 = math.exp %13 : vector<2x100xf32>
    %cst_15 = arith.constant 1.000000e+00 : f32
    %15 = vector.broadcast %cst_15 : f32 to vector<2x100xf32>
    %16 = arith.addf %15, %14 : vector<2x100xf32>
    %17 = arith.divf %15, %16 : vector<2x100xf32>
    %18 = arith.index_cast %c0_i32 : i32 to index
    %c1 = arith.constant 1 : index
    %c0_16 = arith.constant 0 : index
    %c0_17 = arith.constant 0 : index
    %19 = vector.load %arg1[%18, %c1, %c0_16, %c0_17] : memref<8x4x2x100xf32, #tpu.memory_space<vmem>>, vector<1x1x2x100xf32>
    %20 = vector.shape_cast %19 : vector<1x1x2x100xf32> to vector<2x100xf32>
    %c1_18 = arith.constant 1 : index
    %c0_19 = arith.constant 0 : index
    %c0_20 = arith.constant 0 : index
    %21 = vector.load %arg2[%c1_18, %c0_19, %c0_20] : memref<4x100x100xf32, #tpu.memory_space<vmem>>, vector<1x100x100xf32>
    %22 = vector.shape_cast %21 : vector<1x100x100xf32> to vector<100x100xf32>
    %cst_21 = arith.constant dense<0.000000e+00> : vector<2x100xf32>
    %23 = tpu.matmul %4, %22, %cst_21 {dimension_numbers = #tpu.dot_dimension_numbers<[1], [0], [0], [1], [0, 0, 1, 1], [], []>} : vector<2x100xf32>, vector<100x100xf32>, vector<2x100xf32> -> vector<2x100xf32>
    %24 = arith.addf %20, %23 : vector<2x100xf32>
    %25 = arith.negf %24 : vector<2x100xf32>
    %26 = math.exp %25 : vector<2x100xf32>
    %cst_22 = arith.constant 1.000000e+00 : f32
    %27 = vector.broadcast %cst_22 : f32 to vector<2x100xf32>
    %28 = arith.addf %27, %26 : vector<2x100xf32>
    %29 = arith.divf %27, %28 : vector<2x100xf32>
    %30 = arith.index_cast %c0_i32 : i32 to index
    %c2 = arith.constant 2 : index
    %c0_23 = arith.constant 0 : index
    %c0_24 = arith.constant 0 : index
    %31 = vector.load %arg1[%30, %c2, %c0_23, %c0_24] : memref<8x4x2x100xf32, #tpu.memory_space<vmem>>, vector<1x1x2x100xf32>
    %32 = vector.shape_cast %31 : vector<1x1x2x100xf32> to vector<2x100xf32>
    %c2_25 = arith.constant 2 : index
    %c0_26 = arith.constant 0 : index
    %c0_27 = arith.constant 0 : index
    %33 = vector.load %arg2[%c2_25, %c0_26, %c0_27] : memref<4x100x100xf32, #tpu.memory_space<vmem>>, vector<1x100x100xf32>
    %34 = vector.shape_cast %33 : vector<1x100x100xf32> to vector<100x100xf32>
    %cst_28 = arith.constant dense<0.000000e+00> : vector<2x100xf32>
    %35 = tpu.matmul %4, %34, %cst_28 {dimension_numbers = #tpu.dot_dimension_numbers<[1], [0], [0], [1], [0, 0, 1, 1], [], []>} : vector<2x100xf32>, vector<100x100xf32>, vector<2x100xf32> -> vector<2x100xf32>
    %36 = arith.addf %32, %35 : vector<2x100xf32>
    %37 = math.tanh %36 : vector<2x100xf32>
    %38 = arith.index_cast %c0_i32 : i32 to index
    %c3 = arith.constant 3 : index
    %c0_29 = arith.constant 0 : index
    %c0_30 = arith.constant 0 : index
    %39 = vector.load %arg1[%38, %c3, %c0_29, %c0_30] : memref<8x4x2x100xf32, #tpu.memory_space<vmem>>, vector<1x1x2x100xf32>
    %40 = vector.shape_cast %39 : vector<1x1x2x100xf32> to vector<2x100xf32>
    %c3_31 = arith.constant 3 : index
    %c0_32 = arith.constant 0 : index
    %c0_33 = arith.constant 0 : index
    %41 = vector.load %arg2[%c3_31, %c0_32, %c0_33] : memref<4x100x100xf32, #tpu.memory_space<vmem>>, vector<1x100x100xf32>
    %42 = vector.shape_cast %41 : vector<1x100x100xf32> to vector<100x100xf32>
    %cst_34 = arith.constant dense<0.000000e+00> : vector<2x100xf32>
    %43 = tpu.matmul %4, %42, %cst_34 {dimension_numbers = #tpu.dot_dimension_numbers<[1], [0], [0], [1], [0, 0, 1, 1], [], []>} : vector<2x100xf32>, vector<100x100xf32>, vector<2x100xf32> -> vector<2x100xf32>
    %44 = arith.addf %40, %43 : vector<2x100xf32>
    %45 = arith.negf %44 : vector<2x100xf32>
    %46 = math.exp %45 : vector<2x100xf32>
    %cst_35 = arith.constant 1.000000e+00 : f32
    %47 = vector.broadcast %cst_35 : f32 to vector<2x100xf32>
    %48 = arith.addf %47, %46 : vector<2x100xf32>
    %49 = arith.divf %47, %48 : vector<2x100xf32>
    %50 = arith.mulf %29, %5 : vector<2x100xf32>
    %51 = arith.mulf %17, %37 : vector<2x100xf32>
    %52 = arith.addf %50, %51 : vector<2x100xf32>
    %53 = math.tanh %52 : vector<2x100xf32>
    %54 = arith.mulf %49, %53 : vector<2x100xf32>
    %c0_36 = arith.constant 0 : index
    %c0_37 = arith.constant 0 : index
    %55 = vector.load %arg5[%c0_36, %c0_37] : memref<2x100xf32, #tpu.memory_space<vmem>>, vector<2x100xf32>
    tpu.vector_store %arg5[%c0_36, %c0_37], %52 {strides = array<i32>} : memref<2x100xf32, #tpu.memory_space<vmem>>, vector<2x100xf32>,
    %c0_38 = arith.constant 0 : index
    %c0_39 = arith.constant 0 : index
    %56 = vector.load %arg4[%c0_38, %c0_39] : memref<2x100xf32, #tpu.memory_space<vmem>>, vector<2x100xf32>
    tpu.vector_store %arg4[%c0_38, %c0_39], %54 {strides = array<i32>} : memref<2x100xf32, #tpu.memory_space<vmem>>, vector<2x100xf32>,
    %c1_i32 = arith.constant 1 : i32
    %c0_40 = arith.constant 0 : index
    %c0_41 = arith.constant 0 : index
    %57 = vector.load %arg4[%c0_40, %c0_41] : memref<2x100xf32, #tpu.memory_space<vmem>>, vector<2x100xf32>
    %c0_42 = arith.constant 0 : index
    %c0_43 = arith.constant 0 : index
    %58 = vector.load %arg5[%c0_42, %c0_43] : memref<2x100xf32, #tpu.memory_space<vmem>>, vector<2x100xf32>
    %59 = arith.index_cast %c1_i32 : i32 to index
    %c0_44 = arith.constant 0 : index
    %c0_45 = arith.constant 0 : index
    %c0_46 = arith.constant 0 : index
    %60 = vector.load %arg1[%59, %c0_44, %c0_45, %c0_46] : memref<8x4x2x100xf32, #tpu.memory_space<vmem>>, vector<1x1x2x100xf32>
    %61 = vector.shape_cast %60 : vector<1x1x2x100xf32> to vector<2x100xf32>
    %c0_47 = arith.constant 0 : index
    %c0_48 = arith.constant 0 : index
    %c0_49 = arith.constant 0 : index
    %62 = vector.load %arg2[%c0_47, %c0_48, %c0_49] : memref<4x100x100xf32, #tpu.memory_space<vmem>>, vector<1x100x100xf32>
    %63 = vector.shape_cast %62 : vector<1x100x100xf32> to vector<100x100xf32>
    %cst_50 = arith.constant dense<0.000000e+00> : vector<2x100xf32>
    %64 = tpu.matmul %57, %63, %cst_50 {dimension_numbers = #tpu.dot_dimension_numbers<[1], [0], [0], [1], [0, 0, 1, 1], [], []>} : vector<2x100xf32>, vector<100x100xf32>, vector<2x100xf32> -> vector<2x100xf32>
    %65 = arith.addf %61, %64 : vector<2x100xf32>
    %66 = arith.negf %65 : vector<2x100xf32>
    %67 = math.exp %66 : vector<2x100xf32>
    %cst_51 = arith.constant 1.000000e+00 : f32
    %68 = vector.broadcast %cst_51 : f32 to vector<2x100xf32>
    %69 = arith.addf %68, %67 : vector<2x100xf32>
    %70 = arith.divf %68, %69 : vector<2x100xf32>
    %71 = arith.index_cast %c1_i32 : i32 to index
    %c1_52 = arith.constant 1 : index
    %c0_53 = arith.constant 0 : index
    %c0_54 = arith.constant 0 : index
    %72 = vector.load %arg1[%71, %c1_52, %c0_53, %c0_54] : memref<8x4x2x100xf32, #tpu.memory_space<vmem>>, vector<1x1x2x100xf32>
    %73 = vector.shape_cast %72 : vector<1x1x2x100xf32> to vector<2x100xf32>
    %c1_55 = arith.constant 1 : index
    %c0_56 = arith.constant 0 : index
    %c0_57 = arith.constant 0 : index
    %74 = vector.load %arg2[%c1_55, %c0_56, %c0_57] : memref<4x100x100xf32, #tpu.memory_space<vmem>>, vector<1x100x100xf32>
    %75 = vector.shape_cast %74 : vector<1x100x100xf32> to vector<100x100xf32>
    %cst_58 = arith.constant dense<0.000000e+00> : vector<2x100xf32>
    %76 = tpu.matmul %57, %75, %cst_58 {dimension_numbers = #tpu.dot_dimension_numbers<[1], [0], [0], [1], [0, 0, 1, 1], [], []>} : vector<2x100xf32>, vector<100x100xf32>, vector<2x100xf32> -> vector<2x100xf32>
    %77 = arith.addf %73, %76 : vector<2x100xf32>
    %78 = arith.negf %77 : vector<2x100xf32>
    %79 = math.exp %78 : vector<2x100xf32>
    %cst_59 = arith.constant 1.000000e+00 : f32
    %80 = vector.broadcast %cst_59 : f32 to vector<2x100xf32>
    %81 = arith.addf %80, %79 : vector<2x100xf32>
    %82 = arith.divf %80, %81 : vector<2x100xf32>
    %83 = arith.index_cast %c1_i32 : i32 to index
    %c2_60 = arith.constant 2 : index
    %c0_61 = arith.constant 0 : index
    %c0_62 = arith.constant 0 : index
    %84 = vector.load %arg1[%83, %c2_60, %c0_61, %c0_62] : memref<8x4x2x100xf32, #tpu.memory_space<vmem>>, vector<1x1x2x100xf32>
    %85 = vector.shape_cast %84 : vector<1x1x2x100xf32> to vector<2x100xf32>
    %c2_63 = arith.constant 2 : index
    %c0_64 = arith.constant 0 : index
    %c0_65 = arith.constant 0 : index
    %86 = vector.load %arg2[%c2_63, %c0_64, %c0_65] : memref<4x100x100xf32, #tpu.memory_space<vmem>>, vector<1x100x100xf32>
    %87 = vector.shape_cast %86 : vector<1x100x100xf32> to vector<100x100xf32>
    %cst_66 = arith.constant dense<0.000000e+00> : vector<2x100xf32>
    %88 = tpu.matmul %57, %87, %cst_66 {dimension_numbers = #tpu.dot_dimension_numbers<[1], [0], [0], [1], [0, 0, 1, 1], [], []>} : vector<2x100xf32>, vector<100x100xf32>, vector<2x100xf32> -> vector<2x100xf32>
    %89 = arith.addf %85, %88 : vector<2x100xf32>
    %90 = math.tanh %89 : vector<2x100xf32>
    %91 = arith.index_cast %c1_i32 : i32 to index
    %c3_67 = arith.constant 3 : index
    %c0_68 = arith.constant 0 : index
    %c0_69 = arith.constant 0 : index
    %92 = vector.load %arg1[%91, %c3_67, %c0_68, %c0_69] : memref<8x4x2x100xf32, #tpu.memory_space<vmem>>, vector<1x1x2x100xf32>
    %93 = vector.shape_cast %92 : vector<1x1x2x100xf32> to vector<2x100xf32>
    %c3_70 = arith.constant 3 : index
    %c0_71 = arith.constant 0 : index
    %c0_72 = arith.constant 0 : index
    %94 = vector.load %arg2[%c3_70, %c0_71, %c0_72] : memref<4x100x100xf32, #tpu.memory_space<vmem>>, vector<1x100x100xf32>
    %95 = vector.shape_cast %94 : vector<1x100x100xf32> to vector<100x100xf32>
    %cst_73 = arith.constant dense<0.000000e+00> : vector<2x100xf32>
    %96 = tpu.matmul %57, %95, %cst_73 {dimension_numbers = #tpu.dot_dimension_numbers<[1], [0], [0], [1], [0, 0, 1, 1], [], []>} : vector<2x100xf32>, vector<100x100xf32>, vector<2x100xf32> -> vector<2x100xf32>
    %97 = arith.addf %93, %96 : vector<2x100xf32>
    %98 = arith.negf %97 : vector<2x100xf32>
    %99 = math.exp %98 : vector<2x100xf32>
    %cst_74 = arith.constant 1.000000e+00 : f32
    %100 = vector.broadcast %cst_74 : f32 to vector<2x100xf32>
    %101 = arith.addf %100, %99 : vector<2x100xf32>
    %102 = arith.divf %100, %101 : vector<2x100xf32>
    %103 = arith.mulf %82, %58 : vector<2x100xf32>
    %104 = arith.mulf %70, %90 : vector<2x100xf32>
    %105 = arith.addf %103, %104 : vector<2x100xf32>
    %106 = math.tanh %105 : vector<2x100xf32>
    %107 = arith.mulf %102, %106 : vector<2x100xf32>
    %c0_75 = arith.constant 0 : index
    %c0_76 = arith.constant 0 : index
    %108 = vector.load %arg5[%c0_75, %c0_76] : memref<2x100xf32, #tpu.memory_space<vmem>>, vector<2x100xf32>
    tpu.vector_store %arg5[%c0_75, %c0_76], %105 {strides = array<i32>} : memref<2x100xf32, #tpu.memory_space<vmem>>, vector<2x100xf32>,
    %c0_77 = arith.constant 0 : index
    %c0_78 = arith.constant 0 : index
    %109 = vector.load %arg4[%c0_77, %c0_78] : memref<2x100xf32, #tpu.memory_space<vmem>>, vector<2x100xf32>
    tpu.vector_store %arg4[%c0_77, %c0_78], %107 {strides = array<i32>} : memref<2x100xf32, #tpu.memory_space<vmem>>, vector<2x100xf32>,
    %c2_i32 = arith.constant 2 : i32
    %c0_79 = arith.constant 0 : index
    %c0_80 = arith.constant 0 : index
    %110 = vector.load %arg4[%c0_79, %c0_80] : memref<2x100xf32, #tpu.memory_space<vmem>>, vector<2x100xf32>
    %c0_81 = arith.constant 0 : index
    %c0_82 = arith.constant 0 : index
    %111 = vector.load %arg5[%c0_81, %c0_82] : memref<2x100xf32, #tpu.memory_space<vmem>>, vector<2x100xf32>
    %112 = arith.index_cast %c2_i32 : i32 to index
    %c0_83 = arith.constant 0 : index
    %c0_84 = arith.constant 0 : index
    %c0_85 = arith.constant 0 : index
    %113 = vector.load %arg1[%112, %c0_83, %c0_84, %c0_85] : memref<8x4x2x100xf32, #tpu.memory_space<vmem>>, vector<1x1x2x100xf32>
    %114 = vector.shape_cast %113 : vector<1x1x2x100xf32> to vector<2x100xf32>
    %c0_86 = arith.constant 0 : index
    %c0_87 = arith.constant 0 : index
    %c0_88 = arith.constant 0 : index
    %115 = vector.load %arg2[%c0_86, %c0_87, %c0_88] : memref<4x100x100xf32, #tpu.memory_space<vmem>>, vector<1x100x100xf32>
    %116 = vector.shape_cast %115 : vector<1x100x100xf32> to vector<100x100xf32>
    %cst_89 = arith.constant dense<0.000000e+00> : vector<2x100xf32>
    %117 = tpu.matmul %110, %116, %cst_89 {dimension_numbers = #tpu.dot_dimension_numbers<[1], [0], [0], [1], [0, 0, 1, 1], [], []>} : vector<2x100xf32>, vector<100x100xf32>, vector<2x100xf32> -> vector<2x100xf32>
    %118 = arith.addf %114, %117 : vector<2x100xf32>
    %119 = arith.negf %118 : vector<2x100xf32>
    %120 = math.exp %119 : vector<2x100xf32>
    %cst_90 = arith.constant 1.000000e+00 : f32
    %121 = vector.broadcast %cst_90 : f32 to vector<2x100xf32>
    %122 = arith.addf %121, %120 : vector<2x100xf32>
    %123 = arith.divf %121, %122 : vector<2x100xf32>
    %124 = arith.index_cast %c2_i32 : i32 to index
    %c1_91 = arith.constant 1 : index
    %c0_92 = arith.constant 0 : index
    %c0_93 = arith.constant 0 : index
    %125 = vector.load %arg1[%124, %c1_91, %c0_92, %c0_93] : memref<8x4x2x100xf32, #tpu.memory_space<vmem>>, vector<1x1x2x100xf32>
    %126 = vector.shape_cast %125 : vector<1x1x2x100xf32> to vector<2x100xf32>
    %c1_94 = arith.constant 1 : index
    %c0_95 = arith.constant 0 : index
    %c0_96 = arith.constant 0 : index
    %127 = vector.load %arg2[%c1_94, %c0_95, %c0_96] : memref<4x100x100xf32, #tpu.memory_space<vmem>>, vector<1x100x100xf32>
    %128 = vector.shape_cast %127 : vector<1x100x100xf32> to vector<100x100xf32>
    %cst_97 = arith.constant dense<0.000000e+00> : vector<2x100xf32>
    %129 = tpu.matmul %110, %128, %cst_97 {dimension_numbers = #tpu.dot_dimension_numbers<[1], [0], [0], [1], [0, 0, 1, 1], [], []>} : vector<2x100xf32>, vector<100x100xf32>, vector<2x100xf32> -> vector<2x100xf32>
    %130 = arith.addf %126, %129 : vector<2x100xf32>
    %131 = arith.negf %130 : vector<2x100xf32>
    %132 = math.exp %131 : vector<2x100xf32>
    %cst_98 = arith.constant 1.000000e+00 : f32
    %133 = vector.broadcast %cst_98 : f32 to vector<2x100xf32>
    %134 = arith.addf %133, %132 : vector<2x100xf32>
    %135 = arith.divf %133, %134 : vector<2x100xf32>
    %136 = arith.index_cast %c2_i32 : i32 to index
    %c2_99 = arith.constant 2 : index
    %c0_100 = arith.constant 0 : index
    %c0_101 = arith.constant 0 : index
    %137 = vector.load %arg1[%136, %c2_99, %c0_100, %c0_101] : memref<8x4x2x100xf32, #tpu.memory_space<vmem>>, vector<1x1x2x100xf32>
    %138 = vector.shape_cast %137 : vector<1x1x2x100xf32> to vector<2x100xf32>
    %c2_102 = arith.constant 2 : index
    %c0_103 = arith.constant 0 : index
    %c0_104 = arith.constant 0 : index
    %139 = vector.load %arg2[%c2_102, %c0_103, %c0_104] : memref<4x100x100xf32, #tpu.memory_space<vmem>>, vector<1x100x100xf32>
    %140 = vector.shape_cast %139 : vector<1x100x100xf32> to vector<100x100xf32>
    %cst_105 = arith.constant dense<0.000000e+00> : vector<2x100xf32>
    %141 = tpu.matmul %110, %140, %cst_105 {dimension_numbers = #tpu.dot_dimension_numbers<[1], [0], [0], [1], [0, 0, 1, 1], [], []>} : vector<2x100xf32>, vector<100x100xf32>, vector<2x100xf32> -> vector<2x100xf32>
    %142 = arith.addf %138, %141 : vector<2x100xf32>
    %143 = math.tanh %142 : vector<2x100xf32>
    %144 = arith.index_cast %c2_i32 : i32 to index
    %c3_106 = arith.constant 3 : index
    %c0_107 = arith.constant 0 : index
    %c0_108 = arith.constant 0 : index
    %145 = vector.load %arg1[%144, %c3_106, %c0_107, %c0_108] : memref<8x4x2x100xf32, #tpu.memory_space<vmem>>, vector<1x1x2x100xf32>
    %146 = vector.shape_cast %145 : vector<1x1x2x100xf32> to vector<2x100xf32>
    %c3_109 = arith.constant 3 : index
    %c0_110 = arith.constant 0 : index
    %c0_111 = arith.constant 0 : index
    %147 = vector.load %arg2[%c3_109, %c0_110, %c0_111] : memref<4x100x100xf32, #tpu.memory_space<vmem>>, vector<1x100x100xf32>
    %148 = vector.shape_cast %147 : vector<1x100x100xf32> to vector<100x100xf32>
    %cst_112 = arith.constant dense<0.000000e+00> : vector<2x100xf32>
    %149 = tpu.matmul %110, %148, %cst_112 {dimension_numbers = #tpu.dot_dimension_numbers<[1], [0], [0], [1], [0, 0, 1, 1], [], []>} : vector<2x100xf32>, vector<100x100xf32>, vector<2x100xf32> -> vector<2x100xf32>
    %150 = arith.addf %146, %149 : vector<2x100xf32>
    %151 = arith.negf %150 : vector<2x100xf32>
    %152 = math.exp %151 : vector<2x100xf32>
    %cst_113 = arith.constant 1.000000e+00 : f32
    %153 = vector.broadcast %cst_113 : f32 to vector<2x100xf32>
    %154 = arith.addf %153, %152 : vector<2x100xf32>
    %155 = arith.divf %153, %154 : vector<2x100xf32>
    %156 = arith.mulf %135, %111 : vector<2x100xf32>
    %157 = arith.mulf %123, %143 : vector<2x100xf32>
    %158 = arith.addf %156, %157 : vector<2x100xf32>
    %159 = math.tanh %158 : vector<2x100xf32>
    %160 = arith.mulf %155, %159 : vector<2x100xf32>
    %c0_114 = arith.constant 0 : index
    %c0_115 = arith.constant 0 : index
    %161 = vector.load %arg5[%c0_114, %c0_115] : memref<2x100xf32, #tpu.memory_space<vmem>>, vector<2x100xf32>
    tpu.vector_store %arg5[%c0_114, %c0_115], %158 {strides = array<i32>} : memref<2x100xf32, #tpu.memory_space<vmem>>, vector<2x100xf32>,
    %c0_116 = arith.constant 0 : index
    %c0_117 = arith.constant 0 : index
    %162 = vector.load %arg4[%c0_116, %c0_117] : memref<2x100xf32, #tpu.memory_space<vmem>>, vector<2x100xf32>
    tpu.vector_store %arg4[%c0_116, %c0_117], %160 {strides = array<i32>} : memref<2x100xf32, #tpu.memory_space<vmem>>, vector<2x100xf32>,
    %c3_i32 = arith.constant 3 : i32
    %c0_118 = arith.constant 0 : index
    %c0_119 = arith.constant 0 : index
    %163 = vector.load %arg4[%c0_118, %c0_119] : memref<2x100xf32, #tpu.memory_space<vmem>>, vector<2x100xf32>
    %c0_120 = arith.constant 0 : index
    %c0_121 = arith.constant 0 : index
    %164 = vector.load %arg5[%c0_120, %c0_121] : memref<2x100xf32, #tpu.memory_space<vmem>>, vector<2x100xf32>
    %165 = arith.index_cast %c3_i32 : i32 to index
    %c0_122 = arith.constant 0 : index
    %c0_123 = arith.constant 0 : index
    %c0_124 = arith.constant 0 : index
    %166 = vector.load %arg1[%165, %c0_122, %c0_123, %c0_124] : memref<8x4x2x100xf32, #tpu.memory_space<vmem>>, vector<1x1x2x100xf32>
    %167 = vector.shape_cast %166 : vector<1x1x2x100xf32> to vector<2x100xf32>
    %c0_125 = arith.constant 0 : index
    %c0_126 = arith.constant 0 : index
    %c0_127 = arith.constant 0 : index
    %168 = vector.load %arg2[%c0_125, %c0_126, %c0_127] : memref<4x100x100xf32, #tpu.memory_space<vmem>>, vector<1x100x100xf32>
    %169 = vector.shape_cast %168 : vector<1x100x100xf32> to vector<100x100xf32>
    %cst_128 = arith.constant dense<0.000000e+00> : vector<2x100xf32>
    %170 = tpu.matmul %163, %169, %cst_128 {dimension_numbers = #tpu.dot_dimension_numbers<[1], [0], [0], [1], [0, 0, 1, 1], [], []>} : vector<2x100xf32>, vector<100x100xf32>, vector<2x100xf32> -> vector<2x100xf32>
    %171 = arith.addf %167, %170 : vector<2x100xf32>
    %172 = arith.negf %171 : vector<2x100xf32>
    %173 = math.exp %172 : vector<2x100xf32>
    %cst_129 = arith.constant 1.000000e+00 : f32
    %174 = vector.broadcast %cst_129 : f32 to vector<2x100xf32>
    %175 = arith.addf %174, %173 : vector<2x100xf32>
    %176 = arith.divf %174, %175 : vector<2x100xf32>
    %177 = arith.index_cast %c3_i32 : i32 to index
    %c1_130 = arith.constant 1 : index
    %c0_131 = arith.constant 0 : index
    %c0_132 = arith.constant 0 : index
    %178 = vector.load %arg1[%177, %c1_130, %c0_131, %c0_132] : memref<8x4x2x100xf32, #tpu.memory_space<vmem>>, vector<1x1x2x100xf32>
    %179 = vector.shape_cast %178 : vector<1x1x2x100xf32> to vector<2x100xf32>
    %c1_133 = arith.constant 1 : index
    %c0_134 = arith.constant 0 : index
    %c0_135 = arith.constant 0 : index
    %180 = vector.load %arg2[%c1_133, %c0_134, %c0_135] : memref<4x100x100xf32, #tpu.memory_space<vmem>>, vector<1x100x100xf32>
    %181 = vector.shape_cast %180 : vector<1x100x100xf32> to vector<100x100xf32>
    %cst_136 = arith.constant dense<0.000000e+00> : vector<2x100xf32>
    %182 = tpu.matmul %163, %181, %cst_136 {dimension_numbers = #tpu.dot_dimension_numbers<[1], [0], [0], [1], [0, 0, 1, 1], [], []>} : vector<2x100xf32>, vector<100x100xf32>, vector<2x100xf32> -> vector<2x100xf32>
    %183 = arith.addf %179, %182 : vector<2x100xf32>
    %184 = arith.negf %183 : vector<2x100xf32>
    %185 = math.exp %184 : vector<2x100xf32>
    %cst_137 = arith.constant 1.000000e+00 : f32
    %186 = vector.broadcast %cst_137 : f32 to vector<2x100xf32>
    %187 = arith.addf %186, %185 : vector<2x100xf32>
    %188 = arith.divf %186, %187 : vector<2x100xf32>
    %189 = arith.index_cast %c3_i32 : i32 to index
    %c2_138 = arith.constant 2 : index
    %c0_139 = arith.constant 0 : index
    %c0_140 = arith.constant 0 : index
    %190 = vector.load %arg1[%189, %c2_138, %c0_139, %c0_140] : memref<8x4x2x100xf32, #tpu.memory_space<vmem>>, vector<1x1x2x100xf32>
    %191 = vector.shape_cast %190 : vector<1x1x2x100xf32> to vector<2x100xf32>
    %c2_141 = arith.constant 2 : index
    %c0_142 = arith.constant 0 : index
    %c0_143 = arith.constant 0 : index
    %192 = vector.load %arg2[%c2_141, %c0_142, %c0_143] : memref<4x100x100xf32, #tpu.memory_space<vmem>>, vector<1x100x100xf32>
    %193 = vector.shape_cast %192 : vector<1x100x100xf32> to vector<100x100xf32>
    %cst_144 = arith.constant dense<0.000000e+00> : vector<2x100xf32>
    %194 = tpu.matmul %163, %193, %cst_144 {dimension_numbers = #tpu.dot_dimension_numbers<[1], [0], [0], [1], [0, 0, 1, 1], [], []>} : vector<2x100xf32>, vector<100x100xf32>, vector<2x100xf32> -> vector<2x100xf32>
    %195 = arith.addf %191, %194 : vector<2x100xf32>
    %196 = math.tanh %195 : vector<2x100xf32>
    %197 = arith.index_cast %c3_i32 : i32 to index
    %c3_145 = arith.constant 3 : index
    %c0_146 = arith.constant 0 : index
    %c0_147 = arith.constant 0 : index
    %198 = vector.load %arg1[%197, %c3_145, %c0_146, %c0_147] : memref<8x4x2x100xf32, #tpu.memory_space<vmem>>, vector<1x1x2x100xf32>
    %199 = vector.shape_cast %198 : vector<1x1x2x100xf32> to vector<2x100xf32>
    %c3_148 = arith.constant 3 : index
    %c0_149 = arith.constant 0 : index
    %c0_150 = arith.constant 0 : index
    %200 = vector.load %arg2[%c3_148, %c0_149, %c0_150] : memref<4x100x100xf32, #tpu.memory_space<vmem>>, vector<1x100x100xf32>
    %201 = vector.shape_cast %200 : vector<1x100x100xf32> to vector<100x100xf32>
    %cst_151 = arith.constant dense<0.000000e+00> : vector<2x100xf32>
    %202 = tpu.matmul %163, %201, %cst_151 {dimension_numbers = #tpu.dot_dimension_numbers<[1], [0], [0], [1], [0, 0, 1, 1], [], []>} : vector<2x100xf32>, vector<100x100xf32>, vector<2x100xf32> -> vector<2x100xf32>
    %203 = arith.addf %199, %202 : vector<2x100xf32>
    %204 = arith.negf %203 : vector<2x100xf32>
    %205 = math.exp %204 : vector<2x100xf32>
    %cst_152 = arith.constant 1.000000e+00 : f32
    %206 = vector.broadcast %cst_152 : f32 to vector<2x100xf32>
    %207 = arith.addf %206, %205 : vector<2x100xf32>
    %208 = arith.divf %206, %207 : vector<2x100xf32>
    %209 = arith.mulf %188, %164 : vector<2x100xf32>
    %210 = arith.mulf %176, %196 : vector<2x100xf32>
    %211 = arith.addf %209, %210 : vector<2x100xf32>
    %212 = math.tanh %211 : vector<2x100xf32>
    %213 = arith.mulf %208, %212 : vector<2x100xf32>
    %c0_153 = arith.constant 0 : index
    %c0_154 = arith.constant 0 : index
    %214 = vector.load %arg5[%c0_153, %c0_154] : memref<2x100xf32, #tpu.memory_space<vmem>>, vector<2x100xf32>
    tpu.vector_store %arg5[%c0_153, %c0_154], %211 {strides = array<i32>} : memref<2x100xf32, #tpu.memory_space<vmem>>, vector<2x100xf32>,
    %c0_155 = arith.constant 0 : index
    %c0_156 = arith.constant 0 : index
    %215 = vector.load %arg4[%c0_155, %c0_156] : memref<2x100xf32, #tpu.memory_space<vmem>>, vector<2x100xf32>
    tpu.vector_store %arg4[%c0_155, %c0_156], %213 {strides = array<i32>} : memref<2x100xf32, #tpu.memory_space<vmem>>, vector<2x100xf32>,
    %c4_i32 = arith.constant 4 : i32
    %c0_157 = arith.constant 0 : index
    %c0_158 = arith.constant 0 : index
    %216 = vector.load %arg4[%c0_157, %c0_158] : memref<2x100xf32, #tpu.memory_space<vmem>>, vector<2x100xf32>
    %c0_159 = arith.constant 0 : index
    %c0_160 = arith.constant 0 : index
    %217 = vector.load %arg5[%c0_159, %c0_160] : memref<2x100xf32, #tpu.memory_space<vmem>>, vector<2x100xf32>
    %218 = arith.index_cast %c4_i32 : i32 to index
    %c0_161 = arith.constant 0 : index
    %c0_162 = arith.constant 0 : index
    %c0_163 = arith.constant 0 : index
    %219 = vector.load %arg1[%218, %c0_161, %c0_162, %c0_163] : memref<8x4x2x100xf32, #tpu.memory_space<vmem>>, vector<1x1x2x100xf32>
    %220 = vector.shape_cast %219 : vector<1x1x2x100xf32> to vector<2x100xf32>
    %c0_164 = arith.constant 0 : index
    %c0_165 = arith.constant 0 : index
    %c0_166 = arith.constant 0 : index
    %221 = vector.load %arg2[%c0_164, %c0_165, %c0_166] : memref<4x100x100xf32, #tpu.memory_space<vmem>>, vector<1x100x100xf32>
    %222 = vector.shape_cast %221 : vector<1x100x100xf32> to vector<100x100xf32>
    %cst_167 = arith.constant dense<0.000000e+00> : vector<2x100xf32>
    %223 = tpu.matmul %216, %222, %cst_167 {dimension_numbers = #tpu.dot_dimension_numbers<[1], [0], [0], [1], [0, 0, 1, 1], [], []>} : vector<2x100xf32>, vector<100x100xf32>, vector<2x100xf32> -> vector<2x100xf32>
    %224 = arith.addf %220, %223 : vector<2x100xf32>
    %225 = arith.negf %224 : vector<2x100xf32>
    %226 = math.exp %225 : vector<2x100xf32>
    %cst_168 = arith.constant 1.000000e+00 : f32
    %227 = vector.broadcast %cst_168 : f32 to vector<2x100xf32>
    %228 = arith.addf %227, %226 : vector<2x100xf32>
    %229 = arith.divf %227, %228 : vector<2x100xf32>
    %230 = arith.index_cast %c4_i32 : i32 to index
    %c1_169 = arith.constant 1 : index
    %c0_170 = arith.constant 0 : index
    %c0_171 = arith.constant 0 : index
    %231 = vector.load %arg1[%230, %c1_169, %c0_170, %c0_171] : memref<8x4x2x100xf32, #tpu.memory_space<vmem>>, vector<1x1x2x100xf32>
    %232 = vector.shape_cast %231 : vector<1x1x2x100xf32> to vector<2x100xf32>
    %c1_172 = arith.constant 1 : index
    %c0_173 = arith.constant 0 : index
    %c0_174 = arith.constant 0 : index
    %233 = vector.load %arg2[%c1_172, %c0_173, %c0_174] : memref<4x100x100xf32, #tpu.memory_space<vmem>>, vector<1x100x100xf32>
    %234 = vector.shape_cast %233 : vector<1x100x100xf32> to vector<100x100xf32>
    %cst_175 = arith.constant dense<0.000000e+00> : vector<2x100xf32>
    %235 = tpu.matmul %216, %234, %cst_175 {dimension_numbers = #tpu.dot_dimension_numbers<[1], [0], [0], [1], [0, 0, 1, 1], [], []>} : vector<2x100xf32>, vector<100x100xf32>, vector<2x100xf32> -> vector<2x100xf32>
    %236 = arith.addf %232, %235 : vector<2x100xf32>
    %237 = arith.negf %236 : vector<2x100xf32>
    %238 = math.exp %237 : vector<2x100xf32>
    %cst_176 = arith.constant 1.000000e+00 : f32
    %239 = vector.broadcast %cst_176 : f32 to vector<2x100xf32>
    %240 = arith.addf %239, %238 : vector<2x100xf32>
    %241 = arith.divf %239, %240 : vector<2x100xf32>
    %242 = arith.index_cast %c4_i32 : i32 to index
    %c2_177 = arith.constant 2 : index
    %c0_178 = arith.constant 0 : index
    %c0_179 = arith.constant 0 : index
    %243 = vector.load %arg1[%242, %c2_177, %c0_178, %c0_179] : memref<8x4x2x100xf32, #tpu.memory_space<vmem>>, vector<1x1x2x100xf32>
    %244 = vector.shape_cast %243 : vector<1x1x2x100xf32> to vector<2x100xf32>
    %c2_180 = arith.constant 2 : index
    %c0_181 = arith.constant 0 : index
    %c0_182 = arith.constant 0 : index
    %245 = vector.load %arg2[%c2_180, %c0_181, %c0_182] : memref<4x100x100xf32, #tpu.memory_space<vmem>>, vector<1x100x100xf32>
    %246 = vector.shape_cast %245 : vector<1x100x100xf32> to vector<100x100xf32>
    %cst_183 = arith.constant dense<0.000000e+00> : vector<2x100xf32>
    %247 = tpu.matmul %216, %246, %cst_183 {dimension_numbers = #tpu.dot_dimension_numbers<[1], [0], [0], [1], [0, 0, 1, 1], [], []>} : vector<2x100xf32>, vector<100x100xf32>, vector<2x100xf32> -> vector<2x100xf32>
    %248 = arith.addf %244, %247 : vector<2x100xf32>
    %249 = math.tanh %248 : vector<2x100xf32>
    %250 = arith.index_cast %c4_i32 : i32 to index
    %c3_184 = arith.constant 3 : index
    %c0_185 = arith.constant 0 : index
    %c0_186 = arith.constant 0 : index
    %251 = vector.load %arg1[%250, %c3_184, %c0_185, %c0_186] : memref<8x4x2x100xf32, #tpu.memory_space<vmem>>, vector<1x1x2x100xf32>
    %252 = vector.shape_cast %251 : vector<1x1x2x100xf32> to vector<2x100xf32>
    %c3_187 = arith.constant 3 : index
    %c0_188 = arith.constant 0 : index
    %c0_189 = arith.constant 0 : index
    %253 = vector.load %arg2[%c3_187, %c0_188, %c0_189] : memref<4x100x100xf32, #tpu.memory_space<vmem>>, vector<1x100x100xf32>
    %254 = vector.shape_cast %253 : vector<1x100x100xf32> to vector<100x100xf32>
    %cst_190 = arith.constant dense<0.000000e+00> : vector<2x100xf32>
    %255 = tpu.matmul %216, %254, %cst_190 {dimension_numbers = #tpu.dot_dimension_numbers<[1], [0], [0], [1], [0, 0, 1, 1], [], []>} : vector<2x100xf32>, vector<100x100xf32>, vector<2x100xf32> -> vector<2x100xf32>
    %256 = arith.addf %252, %255 : vector<2x100xf32>
    %257 = arith.negf %256 : vector<2x100xf32>
    %258 = math.exp %257 : vector<2x100xf32>
    %cst_191 = arith.constant 1.000000e+00 : f32
    %259 = vector.broadcast %cst_191 : f32 to vector<2x100xf32>
    %260 = arith.addf %259, %258 : vector<2x100xf32>
    %261 = arith.divf %259, %260 : vector<2x100xf32>
    %262 = arith.mulf %241, %217 : vector<2x100xf32>
    %263 = arith.mulf %229, %249 : vector<2x100xf32>
    %264 = arith.addf %262, %263 : vector<2x100xf32>
    %265 = math.tanh %264 : vector<2x100xf32>
    %266 = arith.mulf %261, %265 : vector<2x100xf32>
    %c0_192 = arith.constant 0 : index
    %c0_193 = arith.constant 0 : index
    %267 = vector.load %arg5[%c0_192, %c0_193] : memref<2x100xf32, #tpu.memory_space<vmem>>, vector<2x100xf32>
    tpu.vector_store %arg5[%c0_192, %c0_193], %264 {strides = array<i32>} : memref<2x100xf32, #tpu.memory_space<vmem>>, vector<2x100xf32>,
    %c0_194 = arith.constant 0 : index
    %c0_195 = arith.constant 0 : index
    %268 = vector.load %arg4[%c0_194, %c0_195] : memref<2x100xf32, #tpu.memory_space<vmem>>, vector<2x100xf32>
    tpu.vector_store %arg4[%c0_194, %c0_195], %266 {strides = array<i32>} : memref<2x100xf32, #tpu.memory_space<vmem>>, vector<2x100xf32>,
    %c5_i32 = arith.constant 5 : i32
    %c0_196 = arith.constant 0 : index
    %c0_197 = arith.constant 0 : index
    %269 = vector.load %arg4[%c0_196, %c0_197] : memref<2x100xf32, #tpu.memory_space<vmem>>, vector<2x100xf32>
    %c0_198 = arith.constant 0 : index
    %c0_199 = arith.constant 0 : index
    %270 = vector.load %arg5[%c0_198, %c0_199] : memref<2x100xf32, #tpu.memory_space<vmem>>, vector<2x100xf32>
    %271 = arith.index_cast %c5_i32 : i32 to index
    %c0_200 = arith.constant 0 : index
    %c0_201 = arith.constant 0 : index
    %c0_202 = arith.constant 0 : index
    %272 = vector.load %arg1[%271, %c0_200, %c0_201, %c0_202] : memref<8x4x2x100xf32, #tpu.memory_space<vmem>>, vector<1x1x2x100xf32>
    %273 = vector.shape_cast %272 : vector<1x1x2x100xf32> to vector<2x100xf32>
    %c0_203 = arith.constant 0 : index
    %c0_204 = arith.constant 0 : index
    %c0_205 = arith.constant 0 : index
    %274 = vector.load %arg2[%c0_203, %c0_204, %c0_205] : memref<4x100x100xf32, #tpu.memory_space<vmem>>, vector<1x100x100xf32>
    %275 = vector.shape_cast %274 : vector<1x100x100xf32> to vector<100x100xf32>
    %cst_206 = arith.constant dense<0.000000e+00> : vector<2x100xf32>
    %276 = tpu.matmul %269, %275, %cst_206 {dimension_numbers = #tpu.dot_dimension_numbers<[1], [0], [0], [1], [0, 0, 1, 1], [], []>} : vector<2x100xf32>, vector<100x100xf32>, vector<2x100xf32> -> vector<2x100xf32>
    %277 = arith.addf %273, %276 : vector<2x100xf32>
    %278 = arith.negf %277 : vector<2x100xf32>
    %279 = math.exp %278 : vector<2x100xf32>
    %cst_207 = arith.constant 1.000000e+00 : f32
    %280 = vector.broadcast %cst_207 : f32 to vector<2x100xf32>
    %281 = arith.addf %280, %279 : vector<2x100xf32>
    %282 = arith.divf %280, %281 : vector<2x100xf32>
    %283 = arith.index_cast %c5_i32 : i32 to index
    %c1_208 = arith.constant 1 : index
    %c0_209 = arith.constant 0 : index
    %c0_210 = arith.constant 0 : index
    %284 = vector.load %arg1[%283, %c1_208, %c0_209, %c0_210] : memref<8x4x2x100xf32, #tpu.memory_space<vmem>>, vector<1x1x2x100xf32>
    %285 = vector.shape_cast %284 : vector<1x1x2x100xf32> to vector<2x100xf32>
    %c1_211 = arith.constant 1 : index
    %c0_212 = arith.constant 0 : index
    %c0_213 = arith.constant 0 : index
    %286 = vector.load %arg2[%c1_211, %c0_212, %c0_213] : memref<4x100x100xf32, #tpu.memory_space<vmem>>, vector<1x100x100xf32>
    %287 = vector.shape_cast %286 : vector<1x100x100xf32> to vector<100x100xf32>
    %cst_214 = arith.constant dense<0.000000e+00> : vector<2x100xf32>
    %288 = tpu.matmul %269, %287, %cst_214 {dimension_numbers = #tpu.dot_dimension_numbers<[1], [0], [0], [1], [0, 0, 1, 1], [], []>} : vector<2x100xf32>, vector<100x100xf32>, vector<2x100xf32> -> vector<2x100xf32>
    %289 = arith.addf %285, %288 : vector<2x100xf32>
    %290 = arith.negf %289 : vector<2x100xf32>
    %291 = math.exp %290 : vector<2x100xf32>
    %cst_215 = arith.constant 1.000000e+00 : f32
    %292 = vector.broadcast %cst_215 : f32 to vector<2x100xf32>
    %293 = arith.addf %292, %291 : vector<2x100xf32>
    %294 = arith.divf %292, %293 : vector<2x100xf32>
    %295 = arith.index_cast %c5_i32 : i32 to index
    %c2_216 = arith.constant 2 : index
    %c0_217 = arith.constant 0 : index
    %c0_218 = arith.constant 0 : index
    %296 = vector.load %arg1[%295, %c2_216, %c0_217, %c0_218] : memref<8x4x2x100xf32, #tpu.memory_space<vmem>>, vector<1x1x2x100xf32>
    %297 = vector.shape_cast %296 : vector<1x1x2x100xf32> to vector<2x100xf32>
    %c2_219 = arith.constant 2 : index
    %c0_220 = arith.constant 0 : index
    %c0_221 = arith.constant 0 : index
    %298 = vector.load %arg2[%c2_219, %c0_220, %c0_221] : memref<4x100x100xf32, #tpu.memory_space<vmem>>, vector<1x100x100xf32>
    %299 = vector.shape_cast %298 : vector<1x100x100xf32> to vector<100x100xf32>
    %cst_222 = arith.constant dense<0.000000e+00> : vector<2x100xf32>
    %300 = tpu.matmul %269, %299, %cst_222 {dimension_numbers = #tpu.dot_dimension_numbers<[1], [0], [0], [1], [0, 0, 1, 1], [], []>} : vector<2x100xf32>, vector<100x100xf32>, vector<2x100xf32> -> vector<2x100xf32>
    %301 = arith.addf %297, %300 : vector<2x100xf32>
    %302 = math.tanh %301 : vector<2x100xf32>
    %303 = arith.index_cast %c5_i32 : i32 to index
    %c3_223 = arith.constant 3 : index
    %c0_224 = arith.constant 0 : index
    %c0_225 = arith.constant 0 : index
    %304 = vector.load %arg1[%303, %c3_223, %c0_224, %c0_225] : memref<8x4x2x100xf32, #tpu.memory_space<vmem>>, vector<1x1x2x100xf32>
    %305 = vector.shape_cast %304 : vector<1x1x2x100xf32> to vector<2x100xf32>
    %c3_226 = arith.constant 3 : index
    %c0_227 = arith.constant 0 : index
    %c0_228 = arith.constant 0 : index
    %306 = vector.load %arg2[%c3_226, %c0_227, %c0_228] : memref<4x100x100xf32, #tpu.memory_space<vmem>>, vector<1x100x100xf32>
    %307 = vector.shape_cast %306 : vector<1x100x100xf32> to vector<100x100xf32>
    %cst_229 = arith.constant dense<0.000000e+00> : vector<2x100xf32>
    %308 = tpu.matmul %269, %307, %cst_229 {dimension_numbers = #tpu.dot_dimension_numbers<[1], [0], [0], [1], [0, 0, 1, 1], [], []>} : vector<2x100xf32>, vector<100x100xf32>, vector<2x100xf32> -> vector<2x100xf32>
    %309 = arith.addf %305, %308 : vector<2x100xf32>
    %310 = arith.negf %309 : vector<2x100xf32>
    %311 = math.exp %310 : vector<2x100xf32>
    %cst_230 = arith.constant 1.000000e+00 : f32
    %312 = vector.broadcast %cst_230 : f32 to vector<2x100xf32>
    %313 = arith.addf %312, %311 : vector<2x100xf32>
    %314 = arith.divf %312, %313 : vector<2x100xf32>
    %315 = arith.mulf %294, %270 : vector<2x100xf32>
    %316 = arith.mulf %282, %302 : vector<2x100xf32>
    %317 = arith.addf %315, %316 : vector<2x100xf32>
    %318 = math.tanh %317 : vector<2x100xf32>
    %319 = arith.mulf %314, %318 : vector<2x100xf32>
    %c0_231 = arith.constant 0 : index
    %c0_232 = arith.constant 0 : index
    %320 = vector.load %arg5[%c0_231, %c0_232] : memref<2x100xf32, #tpu.memory_space<vmem>>, vector<2x100xf32>
    tpu.vector_store %arg5[%c0_231, %c0_232], %317 {strides = array<i32>} : memref<2x100xf32, #tpu.memory_space<vmem>>, vector<2x100xf32>,
    %c0_233 = arith.constant 0 : index
    %c0_234 = arith.constant 0 : index
    %321 = vector.load %arg4[%c0_233, %c0_234] : memref<2x100xf32, #tpu.memory_space<vmem>>, vector<2x100xf32>
    tpu.vector_store %arg4[%c0_233, %c0_234], %319 {strides = array<i32>} : memref<2x100xf32, #tpu.memory_space<vmem>>, vector<2x100xf32>,
    %c6_i32 = arith.constant 6 : i32
    %c0_235 = arith.constant 0 : index
    %c0_236 = arith.constant 0 : index
    %322 = vector.load %arg4[%c0_235, %c0_236] : memref<2x100xf32, #tpu.memory_space<vmem>>, vector<2x100xf32>
    %c0_237 = arith.constant 0 : index
    %c0_238 = arith.constant 0 : index
    %323 = vector.load %arg5[%c0_237, %c0_238] : memref<2x100xf32, #tpu.memory_space<vmem>>, vector<2x100xf32>
    %324 = arith.index_cast %c6_i32 : i32 to index
    %c0_239 = arith.constant 0 : index
    %c0_240 = arith.constant 0 : index
    %c0_241 = arith.constant 0 : index
    %325 = vector.load %arg1[%324, %c0_239, %c0_240, %c0_241] : memref<8x4x2x100xf32, #tpu.memory_space<vmem>>, vector<1x1x2x100xf32>
    %326 = vector.shape_cast %325 : vector<1x1x2x100xf32> to vector<2x100xf32>
    %c0_242 = arith.constant 0 : index
    %c0_243 = arith.constant 0 : index
    %c0_244 = arith.constant 0 : index
    %327 = vector.load %arg2[%c0_242, %c0_243, %c0_244] : memref<4x100x100xf32, #tpu.memory_space<vmem>>, vector<1x100x100xf32>
    %328 = vector.shape_cast %327 : vector<1x100x100xf32> to vector<100x100xf32>
    %cst_245 = arith.constant dense<0.000000e+00> : vector<2x100xf32>
    %329 = tpu.matmul %322, %328, %cst_245 {dimension_numbers = #tpu.dot_dimension_numbers<[1], [0], [0], [1], [0, 0, 1, 1], [], []>} : vector<2x100xf32>, vector<100x100xf32>, vector<2x100xf32> -> vector<2x100xf32>
    %330 = arith.addf %326, %329 : vector<2x100xf32>
    %331 = arith.negf %330 : vector<2x100xf32>
    %332 = math.exp %331 : vector<2x100xf32>
    %cst_246 = arith.constant 1.000000e+00 : f32
    %333 = vector.broadcast %cst_246 : f32 to vector<2x100xf32>
    %334 = arith.addf %333, %332 : vector<2x100xf32>
    %335 = arith.divf %333, %334 : vector<2x100xf32>
    %336 = arith.index_cast %c6_i32 : i32 to index
    %c1_247 = arith.constant 1 : index
    %c0_248 = arith.constant 0 : index
    %c0_249 = arith.constant 0 : index
    %337 = vector.load %arg1[%336, %c1_247, %c0_248, %c0_249] : memref<8x4x2x100xf32, #tpu.memory_space<vmem>>, vector<1x1x2x100xf32>
    %338 = vector.shape_cast %337 : vector<1x1x2x100xf32> to vector<2x100xf32>
    %c1_250 = arith.constant 1 : index
    %c0_251 = arith.constant 0 : index
    %c0_252 = arith.constant 0 : index
    %339 = vector.load %arg2[%c1_250, %c0_251, %c0_252] : memref<4x100x100xf32, #tpu.memory_space<vmem>>, vector<1x100x100xf32>
    %340 = vector.shape_cast %339 : vector<1x100x100xf32> to vector<100x100xf32>
    %cst_253 = arith.constant dense<0.000000e+00> : vector<2x100xf32>
    %341 = tpu.matmul %322, %340, %cst_253 {dimension_numbers = #tpu.dot_dimension_numbers<[1], [0], [0], [1], [0, 0, 1, 1], [], []>} : vector<2x100xf32>, vector<100x100xf32>, vector<2x100xf32> -> vector<2x100xf32>
    %342 = arith.addf %338, %341 : vector<2x100xf32>
    %343 = arith.negf %342 : vector<2x100xf32>
    %344 = math.exp %343 : vector<2x100xf32>
    %cst_254 = arith.constant 1.000000e+00 : f32
    %345 = vector.broadcast %cst_254 : f32 to vector<2x100xf32>
    %346 = arith.addf %345, %344 : vector<2x100xf32>
    %347 = arith.divf %345, %346 : vector<2x100xf32>
    %348 = arith.index_cast %c6_i32 : i32 to index
    %c2_255 = arith.constant 2 : index
    %c0_256 = arith.constant 0 : index
    %c0_257 = arith.constant 0 : index
    %349 = vector.load %arg1[%348, %c2_255, %c0_256, %c0_257] : memref<8x4x2x100xf32, #tpu.memory_space<vmem>>, vector<1x1x2x100xf32>
    %350 = vector.shape_cast %349 : vector<1x1x2x100xf32> to vector<2x100xf32>
    %c2_258 = arith.constant 2 : index
    %c0_259 = arith.constant 0 : index
    %c0_260 = arith.constant 0 : index
    %351 = vector.load %arg2[%c2_258, %c0_259, %c0_260] : memref<4x100x100xf32, #tpu.memory_space<vmem>>, vector<1x100x100xf32>
    %352 = vector.shape_cast %351 : vector<1x100x100xf32> to vector<100x100xf32>
    %cst_261 = arith.constant dense<0.000000e+00> : vector<2x100xf32>
    %353 = tpu.matmul %322, %352, %cst_261 {dimension_numbers = #tpu.dot_dimension_numbers<[1], [0], [0], [1], [0, 0, 1, 1], [], []>} : vector<2x100xf32>, vector<100x100xf32>, vector<2x100xf32> -> vector<2x100xf32>
    %354 = arith.addf %350, %353 : vector<2x100xf32>
    %355 = math.tanh %354 : vector<2x100xf32>
    %356 = arith.index_cast %c6_i32 : i32 to index
    %c3_262 = arith.constant 3 : index
    %c0_263 = arith.constant 0 : index
    %c0_264 = arith.constant 0 : index
    %357 = vector.load %arg1[%356, %c3_262, %c0_263, %c0_264] : memref<8x4x2x100xf32, #tpu.memory_space<vmem>>, vector<1x1x2x100xf32>
    %358 = vector.shape_cast %357 : vector<1x1x2x100xf32> to vector<2x100xf32>
    %c3_265 = arith.constant 3 : index
    %c0_266 = arith.constant 0 : index
    %c0_267 = arith.constant 0 : index
    %359 = vector.load %arg2[%c3_265, %c0_266, %c0_267] : memref<4x100x100xf32, #tpu.memory_space<vmem>>, vector<1x100x100xf32>
    %360 = vector.shape_cast %359 : vector<1x100x100xf32> to vector<100x100xf32>
    %cst_268 = arith.constant dense<0.000000e+00> : vector<2x100xf32>
    %361 = tpu.matmul %322, %360, %cst_268 {dimension_numbers = #tpu.dot_dimension_numbers<[1], [0], [0], [1], [0, 0, 1, 1], [], []>} : vector<2x100xf32>, vector<100x100xf32>, vector<2x100xf32> -> vector<2x100xf32>
    %362 = arith.addf %358, %361 : vector<2x100xf32>
    %363 = arith.negf %362 : vector<2x100xf32>
    %364 = math.exp %363 : vector<2x100xf32>
    %cst_269 = arith.constant 1.000000e+00 : f32
    %365 = vector.broadcast %cst_269 : f32 to vector<2x100xf32>
    %366 = arith.addf %365, %364 : vector<2x100xf32>
    %367 = arith.divf %365, %366 : vector<2x100xf32>
    %368 = arith.mulf %347, %323 : vector<2x100xf32>
    %369 = arith.mulf %335, %355 : vector<2x100xf32>
    %370 = arith.addf %368, %369 : vector<2x100xf32>
    %371 = math.tanh %370 : vector<2x100xf32>
    %372 = arith.mulf %367, %371 : vector<2x100xf32>
    %c0_270 = arith.constant 0 : index
    %c0_271 = arith.constant 0 : index
    %373 = vector.load %arg5[%c0_270, %c0_271] : memref<2x100xf32, #tpu.memory_space<vmem>>, vector<2x100xf32>
    tpu.vector_store %arg5[%c0_270, %c0_271], %370 {strides = array<i32>} : memref<2x100xf32, #tpu.memory_space<vmem>>, vector<2x100xf32>,
    %c0_272 = arith.constant 0 : index
    %c0_273 = arith.constant 0 : index
    %374 = vector.load %arg4[%c0_272, %c0_273] : memref<2x100xf32, #tpu.memory_space<vmem>>, vector<2x100xf32>
    tpu.vector_store %arg4[%c0_272, %c0_273], %372 {strides = array<i32>} : memref<2x100xf32, #tpu.memory_space<vmem>>, vector<2x100xf32>,
    %c7_i32 = arith.constant 7 : i32
    %c0_274 = arith.constant 0 : index
    %c0_275 = arith.constant 0 : index
    %375 = vector.load %arg4[%c0_274, %c0_275] : memref<2x100xf32, #tpu.memory_space<vmem>>, vector<2x100xf32>
    %c0_276 = arith.constant 0 : index
    %c0_277 = arith.constant 0 : index
    %376 = vector.load %arg5[%c0_276, %c0_277] : memref<2x100xf32, #tpu.memory_space<vmem>>, vector<2x100xf32>
    %377 = arith.index_cast %c7_i32 : i32 to index
    %c0_278 = arith.constant 0 : index
    %c0_279 = arith.constant 0 : index
    %c0_280 = arith.constant 0 : index
    %378 = vector.load %arg1[%377, %c0_278, %c0_279, %c0_280] : memref<8x4x2x100xf32, #tpu.memory_space<vmem>>, vector<1x1x2x100xf32>
    %379 = vector.shape_cast %378 : vector<1x1x2x100xf32> to vector<2x100xf32>
    %c0_281 = arith.constant 0 : index
    %c0_282 = arith.constant 0 : index
    %c0_283 = arith.constant 0 : index
    %380 = vector.load %arg2[%c0_281, %c0_282, %c0_283] : memref<4x100x100xf32, #tpu.memory_space<vmem>>, vector<1x100x100xf32>
    %381 = vector.shape_cast %380 : vector<1x100x100xf32> to vector<100x100xf32>
    %cst_284 = arith.constant dense<0.000000e+00> : vector<2x100xf32>
    %382 = tpu.matmul %375, %381, %cst_284 {dimension_numbers = #tpu.dot_dimension_numbers<[1], [0], [0], [1], [0, 0, 1, 1], [], []>} : vector<2x100xf32>, vector<100x100xf32>, vector<2x100xf32> -> vector<2x100xf32>
    %383 = arith.addf %379, %382 : vector<2x100xf32>
    %384 = arith.negf %383 : vector<2x100xf32>
    %385 = math.exp %384 : vector<2x100xf32>
    %cst_285 = arith.constant 1.000000e+00 : f32
    %386 = vector.broadcast %cst_285 : f32 to vector<2x100xf32>
    %387 = arith.addf %386, %385 : vector<2x100xf32>
    %388 = arith.divf %386, %387 : vector<2x100xf32>
    %389 = arith.index_cast %c7_i32 : i32 to index
    %c1_286 = arith.constant 1 : index
    %c0_287 = arith.constant 0 : index
    %c0_288 = arith.constant 0 : index
    %390 = vector.load %arg1[%389, %c1_286, %c0_287, %c0_288] : memref<8x4x2x100xf32, #tpu.memory_space<vmem>>, vector<1x1x2x100xf32>
    %391 = vector.shape_cast %390 : vector<1x1x2x100xf32> to vector<2x100xf32>
    %c1_289 = arith.constant 1 : index
    %c0_290 = arith.constant 0 : index
    %c0_291 = arith.constant 0 : index
    %392 = vector.load %arg2[%c1_289, %c0_290, %c0_291] : memref<4x100x100xf32, #tpu.memory_space<vmem>>, vector<1x100x100xf32>
    %393 = vector.shape_cast %392 : vector<1x100x100xf32> to vector<100x100xf32>
    %cst_292 = arith.constant dense<0.000000e+00> : vector<2x100xf32>
    %394 = tpu.matmul %375, %393, %cst_292 {dimension_numbers = #tpu.dot_dimension_numbers<[1], [0], [0], [1], [0, 0, 1, 1], [], []>} : vector<2x100xf32>, vector<100x100xf32>, vector<2x100xf32> -> vector<2x100xf32>
    %395 = arith.addf %391, %394 : vector<2x100xf32>
    %396 = arith.negf %395 : vector<2x100xf32>
    %397 = math.exp %396 : vector<2x100xf32>
    %cst_293 = arith.constant 1.000000e+00 : f32
    %398 = vector.broadcast %cst_293 : f32 to vector<2x100xf32>
    %399 = arith.addf %398, %397 : vector<2x100xf32>
    %400 = arith.divf %398, %399 : vector<2x100xf32>
    %401 = arith.index_cast %c7_i32 : i32 to index
    %c2_294 = arith.constant 2 : index
    %c0_295 = arith.constant 0 : index
    %c0_296 = arith.constant 0 : index
    %402 = vector.load %arg1[%401, %c2_294, %c0_295, %c0_296] : memref<8x4x2x100xf32, #tpu.memory_space<vmem>>, vector<1x1x2x100xf32>
    %403 = vector.shape_cast %402 : vector<1x1x2x100xf32> to vector<2x100xf32>
    %c2_297 = arith.constant 2 : index
    %c0_298 = arith.constant 0 : index
    %c0_299 = arith.constant 0 : index
    %404 = vector.load %arg2[%c2_297, %c0_298, %c0_299] : memref<4x100x100xf32, #tpu.memory_space<vmem>>, vector<1x100x100xf32>
    %405 = vector.shape_cast %404 : vector<1x100x100xf32> to vector<100x100xf32>
    %cst_300 = arith.constant dense<0.000000e+00> : vector<2x100xf32>
    %406 = tpu.matmul %375, %405, %cst_300 {dimension_numbers = #tpu.dot_dimension_numbers<[1], [0], [0], [1], [0, 0, 1, 1], [], []>} : vector<2x100xf32>, vector<100x100xf32>, vector<2x100xf32> -> vector<2x100xf32>
    %407 = arith.addf %403, %406 : vector<2x100xf32>
    %408 = math.tanh %407 : vector<2x100xf32>
    %409 = arith.index_cast %c7_i32 : i32 to index
    %c3_301 = arith.constant 3 : index
    %c0_302 = arith.constant 0 : index
    %c0_303 = arith.constant 0 : index
    %410 = vector.load %arg1[%409, %c3_301, %c0_302, %c0_303] : memref<8x4x2x100xf32, #tpu.memory_space<vmem>>, vector<1x1x2x100xf32>
    %411 = vector.shape_cast %410 : vector<1x1x2x100xf32> to vector<2x100xf32>
    %c3_304 = arith.constant 3 : index
    %c0_305 = arith.constant 0 : index
    %c0_306 = arith.constant 0 : index
    %412 = vector.load %arg2[%c3_304, %c0_305, %c0_306] : memref<4x100x100xf32, #tpu.memory_space<vmem>>, vector<1x100x100xf32>
    %413 = vector.shape_cast %412 : vector<1x100x100xf32> to vector<100x100xf32>
    %cst_307 = arith.constant dense<0.000000e+00> : vector<2x100xf32>
    %414 = tpu.matmul %375, %413, %cst_307 {dimension_numbers = #tpu.dot_dimension_numbers<[1], [0], [0], [1], [0, 0, 1, 1], [], []>} : vector<2x100xf32>, vector<100x100xf32>, vector<2x100xf32> -> vector<2x100xf32>
    %415 = arith.addf %411, %414 : vector<2x100xf32>
    %416 = arith.negf %415 : vector<2x100xf32>
    %417 = math.exp %416 : vector<2x100xf32>
    %cst_308 = arith.constant 1.000000e+00 : f32
    %418 = vector.broadcast %cst_308 : f32 to vector<2x100xf32>
    %419 = arith.addf %418, %417 : vector<2x100xf32>
    %420 = arith.divf %418, %419 : vector<2x100xf32>
    %421 = arith.mulf %400, %376 : vector<2x100xf32>
    %422 = arith.mulf %388, %408 : vector<2x100xf32>
    %423 = arith.addf %421, %422 : vector<2x100xf32>
    %424 = math.tanh %423 : vector<2x100xf32>
    %425 = arith.mulf %420, %424 : vector<2x100xf32>
    %c0_309 = arith.constant 0 : index
    %c0_310 = arith.constant 0 : index
    %426 = vector.load %arg5[%c0_309, %c0_310] : memref<2x100xf32, #tpu.memory_space<vmem>>, vector<2x100xf32>
    tpu.vector_store %arg5[%c0_309, %c0_310], %423 {strides = array<i32>} : memref<2x100xf32, #tpu.memory_space<vmem>>, vector<2x100xf32>,
    %c0_311 = arith.constant 0 : index
    %c0_312 = arith.constant 0 : index
    %427 = vector.load %arg4[%c0_311, %c0_312] : memref<2x100xf32, #tpu.memory_space<vmem>>, vector<2x100xf32>
    tpu.vector_store %arg4[%c0_311, %c0_312], %425 {strides = array<i32>} : memref<2x100xf32, #tpu.memory_space<vmem>>, vector<2x100xf32>,
    %c8_i32 = arith.constant 8 : i32
    %c0_313 = arith.constant 0 : index
    %c0_314 = arith.constant 0 : index
    %428 = vector.load %arg4[%c0_313, %c0_314] : memref<2x100xf32, #tpu.memory_space<vmem>>, vector<2x100xf32>
    %c0_315 = arith.constant 0 : index
    %c0_316 = arith.constant 0 : index
    %429 = vector.load %arg3[%c0_315, %c0_316] : memref<2x100xf32, #tpu.memory_space<vmem>>, vector<2x100xf32>
    tpu.vector_store %arg3[%c0_315, %c0_316], %428 {strides = array<i32>} : memref<2x100xf32, #tpu.memory_space<vmem>>, vector<2x100xf32>,
    return
  }
  func.func @transform_0(%arg0: i32) -> (i32, i32, i32, i32) {
    %c0_i32 = arith.constant 0 : i32
    %c0_i32_0 = arith.constant 0 : i32
    %c0_i32_1 = arith.constant 0 : i32
    %c0_i32_2 = arith.constant 0 : i32
    %c0_i32_3 = arith.constant 0 : i32
    return %c0_i32, %c0_i32_0, %c0_i32_1, %c0_i32_2 : i32, i32, i32, i32
  }
  func.func @transform_1(%arg0: i32) -> (i32, i32, i32) {
    %c0_i32 = arith.constant 0 : i32
    %c0_i32_0 = arith.constant 0 : i32
    %c0_i32_1 = arith.constant 0 : i32
    %c0_i32_2 = arith.constant 0 : i32
    return %c0_i32, %c0_i32_0, %c0_i32_1 : i32, i32, i32
  }
  func.func @transform_2(%arg0: i32) -> (i32, i32) {
    %c0_i32 = arith.constant 0 : i32
    %c0_i32_0 = arith.constant 0 : i32
    %c0_i32_1 = arith.constant 0 : i32
    return %c0_i32, %c0_i32_0 : i32, i32
  }
}

</mosaic_0001>

<llo_original>
// kernel: tpu_custom_call.1
$region0: #{tpu_custom_call.1}
  #allocation0 [shape = 'u32[]', space=smem, size = 0x4, offset = 0x4, fixed_abs, tag = 'smem constant byte address 0x4 - core index']
  #allocation1 [shape = 'u32[144,128]{1,0:T(1,128)}', space=vmem, size = 0x12000, scoped, tag = 'internal scratch']
  #allocation2 [shape = 'f32[2,100]{1,0:T(2,128)}', space=vmem, size = 0x400, scoped, tag = 'scratch operand']
  #allocation3 [shape = 'f32[2,100]{1,0:T(2,128)}', space=vmem, size = 0x400, scoped, tag = 'scratch operand']
  %s0 = inlined_call_operand.vmem [shape: f32[8,4,2,100], index: 0, kind: input, shape index: {}]
  %s1 = inlined_call_operand.vmem [shape: f32[4,100,100], index: 1, kind: input, shape index: {}]
  %s2 = inlined_call_operand.hbm [shape: f32[2,100], index: 2, kind: output, shape index: {}]
  %s3 = sld [smem:[#allocation0]]
  $region18: #{tpu_custom_call.1} parent=0
    _
  %s5 = ssub.s32 1, %s3
  %s6 = scalar_select 0, %s5, %s3
  $region1: #{tpu_custom_call.1} parent=0
    #allocation4 [shape = 'u8[1024]{0}', space=vmem, size = 0x400, scoped, tag = 'output window, operand 0, single buffered']
    #allocation5 [shape = 's32[1]{0}', space=sflag, size = 0x4, scoped, tag = 'scoped memory for tpu_custom_call.1']
    %7 = vsyncpa [#allocation5], 0
    // Predicated region
    $region2: #{tpu_custom_call.1} parent=1 // pred_check
      _
    $region3: #{tpu_custom_call.1} parent=1 // pred_check_branch
      %9 = sbr.rel (0) target = $region5
    $region4: #{tpu_custom_call.1} parent=1 // pred_region
      _
    $region5: #{tpu_custom_call.1} parent=1 // pred_fallthru
      _
    // Predicated region
    $region6: #{tpu_custom_call.1} parent=1 // pred_check
      _
    $region7: #{tpu_custom_call.1} parent=1 // pred_check_branch
      %11 = sbr.rel (0) target = $region9
    $region8: #{tpu_custom_call.1} parent=1 // pred_region
      _
    $region9: #{tpu_custom_call.1} parent=1 // pred_fallthru
      _
    %vm12 = vcmask 812032
    %13 = vst.msk [vmem:[#allocation2] sm:$0x3] %vm12, 0.0
    %14 = vst.msk [vmem:[#allocation3] sm:$0x3] %vm12, 0.0
    %v15 = vld [vmem:[#allocation2] sm:$0x3]
    %v16 = vld [vmem:[#allocation3] sm:$0x3]
    %v17 = vld [vmem:[%s0] sm:$0x3]
    %v18 = vld [vmem:[%s1] sm:$0xff]
    %v19 = vld [vmem:[%s1 + $0x8] sm:$0xff]
    %v20 = vld [vmem:[%s1 + $0x10] sm:$0xff]
    %v21 = vld [vmem:[%s1 + $0x18] sm:$0xff]
    %v22 = vld [vmem:[%s1 + $0x20] sm:$0xff]
    %v23 = vld [vmem:[%s1 + $0x28] sm:$0xff]
    %v24 = vld [vmem:[%s1 + $0x30] sm:$0xff]
    %v25 = vld [vmem:[%s1 + $0x38] sm:$0xff]
    %v26 = vld [vmem:[%s1 + $0x40] sm:$0xff]
    %v27 = vld [vmem:[%s1 + $0x48] sm:$0xff]
    %v28 = vld [vmem:[%s1 + $0x50] sm:$0xff]
    %v29 = vld [vmem:[%s1 + $0x58] sm:$0xff]
    %v30 = vld [vmem:[%s1 + $0x60] sm:$0xf]
    %vm31 = vcmask 818176
    %v33 = vsel %vm31, %v15, 0
    %vm35 = vcmask 1043456
    %v37 = vsel %vm35, %v30, 0
    %39 = vmatprep.subr.mxu0 0.0
    %40 = vmatpush1.msra.mxu0 %v18
    %41 = vmatprep.subr.mxu0 0.0
    %42 = vmatpush1.msra.mxu0 %v19
    %43 = vmatprep.subr.mxu0 0.0
    %44 = vmatpush1.msra.mxu0 %v20
    %45 = vmatprep.subr.mxu0 0.0
    %46 = vmatpush1.msra.mxu0 %v21
    %47 = vmatprep.subr.mxu0 0.0
    %48 = vmatpush1.msra.mxu0 %v22
    %49 = vmatprep.subr.mxu0 0.0
    %50 = vmatpush1.msra.mxu0 %v23
    %51 = vmatprep.subr.mxu0 0.0
    %52 = vmatpush1.msra.mxu0 %v24
    %53 = vmatprep.subr.mxu0 0.0
    %54 = vmatpush1.msra.mxu0 %v25
    %55 = vmatprep.subr.mxu0 0.0
    %56 = vmatpush1.msra.mxu0 %v26
    %57 = vmatprep.subr.mxu0 0.0
    %58 = vmatpush1.msra.mxu0 %v27
    %59 = vmatprep.subr.mxu0 0.0
    %60 = vmatpush1.msra.mxu0 %v28
    %61 = vmatprep.subr.mxu0 0.0
    %62 = vmatpush1.msra.mxu0 %v29
    %63 = vmatprep.subr.mxu0 0.0
    %64 = vmatpush1.msra.mxu0 %v37
    %65 = vmatprep.subr.mxu0 0.0
    %66 = vmatpush1.msra.mxu0 0.0
    %67 = vmatprep.subr.mxu0 0.0
    %68 = vmatpush1.msra.mxu0 0.0
    %69 = vmatprep.subr.mxu0 0.0
    %70 = vmatpush1.msra.mxu0 0.0
    %71 = vmatprep.subr.mxu0 0.0
    %72 = vmatpush1.msra.mxu0 0.0
    %73 = vmatprep.subr.mxu0 0.0
    %74 = vmatpush1.msra.mxu0 0.0
    %75 = vmatprep.subr.mxu0 0.0
    %76 = vmatpush1.msra.mxu0 0.0
    %77 = vmatprep.subr.mxu0 0.0
    %78 = vmatpush1.msra.mxu0 0.0
    %79 = vmatprep.subr.mxu0 0.0
    %80 = vmatpush1.msra.mxu0 0.0
    %81 = vmatprep.subr.mxu0 0.0
    %82 = vmatpush1.msra.mxu0 0.0
    %83 = vmatprep.subr.mxu0 0.0
    %84 = vmatpush1.msra.mxu0 0.0
    %85 = vmatprep.subr.mxu0 0.0
    %86 = vmatpush1.msra.mxu0 0.0
    %87 = vmatprep.subr.mxu0 0.0
    %88 = vmatpush1.msra.mxu0 0.0
    %89 = vmatprep.subr.mxu0 0.0
    %90 = vmatpush1.msra.mxu0 0.0
    %91 = vmatprep.subr.mxu0 0.0
    %92 = vmatpush1.msra.mxu0 0.0
    %93 = vmatprep.subr.mxu0 0.0
    %94 = vmatpush1.msra.mxu0 0.0
    %95 = vmatprep.subr.mxu0 0.0
    %96 = vmatpush1.msra.mxu0 0.0
    %97 = vmatprep.subr.mxu0 0.0
    %98 = vmatpush1.msra.mxu0 0.0
    %99 = vmatprep.subr.mxu0 0.0
    %100 = vmatpush1.msra.mxu0 0.0
    %101 = vmatprep.subr.mxu0 0.0
    %102 = vmatpush1.msra.mxu0 0.0
    %103 = vmatprep.mubr.f32.mxu0 0.0
    %104 = vmatmul.mubr.f32.gmra.mrb[0].mxu0 %v33
    %v105 = vpop.f32.mrb[0].mxu0
    %v106 = vadd.f32 0.0, %v105
    %v107 = vpop.f32.mrb[0].mxu0
    %108 = vdwg.mxu0
    %v109 = vadd.f32 %v17, %v106
    %v110 = vxor.u32 %v109, 2147483648
    %v111 = vmul.f32 %v110, 1.442695
    %v112 = vpow.pop %v111
    %v113 = vadd.f32 %v112, 1.0
    %v114 = vrcp.pop %v113
    %v115 = vmul.f32 1.0, %v114
    %s116 = scalar_lea.vmem %s0, 2
    %v117 = vld [vmem:[%s116] sm:$0x3]
    %s118 = scalar_lea.vmem %s1, 104
    %v119 = vld [vmem:[%s118] sm:$0xff]
    %v120 = vld [vmem:[%s118 + $0x8] sm:$0xff]
    %v121 = vld [vmem:[%s118 + $0x10] sm:$0xff]
    %v122 = vld [vmem:[%s118 + $0x18] sm:$0xff]
    %v123 = vld [vmem:[%s118 + $0x20] sm:$0xff]
    %v124 = vld [vmem:[%s118 + $0x28] sm:$0xff]
    %v125 = vld [vmem:[%s118 + $0x30] sm:$0xff]
    %v126 = vld [vmem:[%s118 + $0x38] sm:$0xff]
    %v127 = vld [vmem:[%s118 + $0x40] sm:$0xff]
    %v128 = vld [vmem:[%s118 + $0x48] sm:$0xff]
    %v129 = vld [vmem:[%s118 + $0x50] sm:$0xff]
    %v130 = vld [vmem:[%s118 + $0x58] sm:$0xff]
    %v131 = vld [vmem:[%s118 + $0x60] sm:$0xf]
    %v133 = vsel %vm35, %v131, 0
    %135 = vmatprep.subr.mxu0 0.0
    %136 = vmatpush1.msra.mxu0 %v119
    %137 = vmatprep.subr.mxu0 0.0
    %138 = vmatpush1.msra.mxu0 %v120
    %139 = vmatprep.subr.mxu0 0.0
    %140 = vmatpush1.msra.mxu0 %v121
    %141 = vmatprep.subr.mxu0 0.0
    %142 = vmatpush1.msra.mxu0 %v122
    %143 = vmatprep.subr.mxu0 0.0
    %144 = vmatpush1.msra.mxu0 %v123
    %145 = vmatprep.subr.mxu0 0.0
    %146 = vmatpush1.msra.mxu0 %v124
    %147 = vmatprep.subr.mxu0 0.0
    %148 = vmatpush1.msra.mxu0 %v125
    %149 = vmatprep.subr.mxu0 0.0
    %150 = vmatpush1.msra.mxu0 %v126
    %151 = vmatprep.subr.mxu0 0.0
    %152 = vmatpush1.msra.mxu0 %v127
    %153 = vmatprep.subr.mxu0 0.0
    %154 = vmatpush1.msra.mxu0 %v128
    %155 = vmatprep.subr.mxu0 0.0
    %156 = vmatpush1.msra.mxu0 %v129
    %157 = vmatprep.subr.mxu0 0.0
    %158 = vmatpush1.msra.mxu0 %v130
    %159 = vmatprep.subr.mxu0 0.0
    %160 = vmatpush1.msra.mxu0 %v133
    %161 = vmatprep.subr.mxu0 0.0
    %162 = vmatpush1.msra.mxu0 0.0
    %163 = vmatprep.subr.mxu0 0.0
    %164 = vmatpush1.msra.mxu0 0.0
    %165 = vmatprep.subr.mxu0 0.0
    %166 = vmatpush1.msra.mxu0 0.0
    %167 = vmatprep.subr.mxu0 0.0
    %168 = vmatpush1.msra.mxu0 0.0
    %169 = vmatprep.subr.mxu0 0.0
    %170 = vmatpush1.msra.mxu0 0.0
    %171 = vmatprep.subr.mxu0 0.0
    %172 = vmatpush1.msra.mxu0 0.0
    %173 = vmatprep.subr.mxu0 0.0
    %174 = vmatpush1.msra.mxu0 0.0
    %175 = vmatprep.subr.mxu0 0.0
    %176 = vmatpush1.msra.mxu0 0.0
    %177 = vmatprep.subr.mxu0 0.0
    %178 = vmatpush1.msra.mxu0 0.0
    %179 = vmatprep.subr.mxu0 0.0
    %180 = vmatpush1.msra.mxu0 0.0
    %181 = vmatprep.subr.mxu0 0.0
    %182 = vmatpush1.msra.mxu0 0.0
    %183 = vmatprep.subr.mxu0 0.0
    %184 = vmatpush1.msra.mxu0 0.0
    %185 = vmatprep.subr.mxu0 0.0
    %186 = vmatpush1.msra.mxu0 0.0
    %187 = vmatprep.subr.mxu0 0.0
    %188 = vmatpush1.msra.mxu0 0.0
    %189 = vmatprep.subr.mxu0 0.0
    %190 = vmatpush1.msra.mxu0 0.0
    %191 = vmatprep.subr.mxu0 0.0
    %192 = vmatpush1.msra.mxu0 0.0
    %193 = vmatprep.subr.mxu0 0.0
    %194 = vmatpush1.msra.mxu0 0.0
    %195 = vmatprep.subr.mxu0 0.0
    %196 = vmatpush1.msra.mxu0 0.0
    %197 = vmatprep.subr.mxu0 0.0
    %198 = vmatpush1.msra.mxu0 0.0
    %199 = vmatprep.mubr.f32.mxu0 0.0
    %200 = vmatmul.mubr.f32.gmra.mrb[0].mxu0 %v33
    %v201 = vpop.f32.mrb[0].mxu0
    %v202 = vadd.f32 0.0, %v201
    %v203 = vpop.f32.mrb[0].mxu0
    %204 = vdwg.mxu0
    %v205 = vadd.f32 %v117, %v202
    %v206 = vxor.u32 %v205, 2147483648
    %v207 = vmul.f32 %v206, 1.442695
    %v208 = vpow.pop %v207
    %v209 = vadd.f32 %v208, 1.0
    %v210 = vrcp.pop %v209
    %v211 = vmul.f32 1.0, %v210
    %s212 = scalar_lea.vmem %s0, 4
    %v213 = vld [vmem:[%s212] sm:$0x3]
    %s214 = scalar_lea.vmem %s1, 208
    %v215 = vld [vmem:[%s214] sm:$0xff]
    %v216 = vld [vmem:[%s214 + $0x8] sm:$0xff]
    %v217 = vld [vmem:[%s214 + $0x10] sm:$0xff]
    %v218 = vld [vmem:[%s214 + $0x18] sm:$0xff]
    %v219 = vld [vmem:[%s214 + $0x20] sm:$0xff]
    %v220 = vld [vmem:[%s214 + $0x28] sm:$0xff]
    %v221 = vld [vmem:[%s214 + $0x30] sm:$0xff]
    %v222 = vld [vmem:[%s214 + $0x38] sm:$0xff]
    %v223 = vld [vmem:[%s214 + $0x40] sm:$0xff]
    %v224 = vld [vmem:[%s214 + $0x48] sm:$0xff]
    %v225 = vld [vmem:[%s214 + $0x50] sm:$0xff]
    %v226 = vld [vmem:[%s214 + $0x58] sm:$0xff]
    %v227 = vld [vmem:[%s214 + $0x60] sm:$0xf]
    %v229 = vsel %vm35, %v227, 0
    %231 = vmatprep.subr.mxu0 0.0
    %232 = vmatpush1.msra.mxu0 %v215
    %233 = vmatprep.subr.mxu0 0.0
    %234 = vmatpush1.msra.mxu0 %v216
    %235 = vmatprep.subr.mxu0 0.0
    %236 = vmatpush1.msra.mxu0 %v217
    %237 = vmatprep.subr.mxu0 0.0
    %238 = vmatpush1.msra.mxu0 %v218
    %239 = vmatprep.subr.mxu0 0.0
    %240 = vmatpush1.msra.mxu0 %v219
    %241 = vmatprep.subr.mxu0 0.0
    %242 = vmatpush1.msra.mxu0 %v220
    %243 = vmatprep.subr.mxu0 0.0
    %244 = vmatpush1.msra.mxu0 %v221
    %245 = vmatprep.subr.mxu0 0.0
    %246 = vmatpush1.msra.mxu0 %v222
    %247 = vmatprep.subr.mxu0 0.0
    %248 = vmatpush1.msra.mxu0 %v223
    %249 = vmatprep.subr.mxu0 0.0
    %250 = vmatpush1.msra.mxu0 %v224
    %251 = vmatprep.subr.mxu0 0.0
    %252 = vmatpush1.msra.mxu0 %v225
    %253 = vmatprep.subr.mxu0 0.0
    %254 = vmatpush1.msra.mxu0 %v226
    %255 = vmatprep.subr.mxu0 0.0
    %256 = vmatpush1.msra.mxu0 %v229
    %257 = vmatprep.subr.mxu0 0.0
    %258 = vmatpush1.msra.mxu0 0.0
    %259 = vmatprep.subr.mxu0 0.0
    %260 = vmatpush1.msra.mxu0 0.0
    %261 = vmatprep.subr.mxu0 0.0
    %262 = vmatpush1.msra.mxu0 0.0
    %263 = vmatprep.subr.mxu0 0.0
    %264 = vmatpush1.msra.mxu0 0.0
    %265 = vmatprep.subr.mxu0 0.0
    %266 = vmatpush1.msra.mxu0 0.0
    %267 = vmatprep.subr.mxu0 0.0
    %268 = vmatpush1.msra.mxu0 0.0
    %269 = vmatprep.subr.mxu0 0.0
    %270 = vmatpush1.msra.mxu0 0.0
    %271 = vmatprep.subr.mxu0 0.0
    %272 = vmatpush1.msra.mxu0 0.0
    %273 = vmatprep.subr.mxu0 0.0
    %274 = vmatpush1.msra.mxu0 0.0
    %275 = vmatprep.subr.mxu0 0.0
    %276 = vmatpush1.msra.mxu0 0.0
    %277 = vmatprep.subr.mxu0 0.0
    %278 = vmatpush1.msra.mxu0 0.0
    %279 = vmatprep.subr.mxu0 0.0
    %280 = vmatpush1.msra.mxu0 0.0
    %281 = vmatprep.subr.mxu0 0.0
    %282 = vmatpush1.msra.mxu0 0.0
    %283 = vmatprep.subr.mxu0 0.0
    %284 = vmatpush1.msra.mxu0 0.0
    %285 = vmatprep.subr.mxu0 0.0
    %286 = vmatpush1.msra.mxu0 0.0
    %287 = vmatprep.subr.mxu0 0.0
    %288 = vmatpush1.msra.mxu0 0.0
    %289 = vmatprep.subr.mxu0 0.0
    %290 = vmatpush1.msra.mxu0 0.0
    %291 = vmatprep.subr.mxu0 0.0
    %292 = vmatpush1.msra.mxu0 0.0
    %293 = vmatprep.subr.mxu0 0.0
    %294 = vmatpush1.msra.mxu0 0.0
    %295 = vmatprep.mubr.f32.mxu0 0.0
    %296 = vmatmul.mubr.f32.gmra.mrb[0].mxu0 %v33
    %v297 = vpop.f32.mrb[0].mxu0
    %v298 = vadd.f32 0.0, %v297
    %v299 = vpop.f32.mrb[0].mxu0
    %300 = vdwg.mxu0
    %v301 = vadd.f32 %v213, %v298
    %v302 = vtanh.pop %v301
    %s303 = scalar_lea.vmem %s0, 6
    %v304 = vld [vmem:[%s303] sm:$0x3]
    %s305 = scalar_lea.vmem %s1, 312
    %v306 = vld [vmem:[%s305] sm:$0xff]
    %v307 = vld [vmem:[%s305 + $0x8] sm:$0xff]
    %v308 = vld [vmem:[%s305 + $0x10] sm:$0xff]
    %v309 = vld [vmem:[%s305 + $0x18] sm:$0xff]
    %v310 = vld [vmem:[%s305 + $0x20] sm:$0xff]
    %v311 = vld [vmem:[%s305 + $0x28] sm:$0xff]
    %v312 = vld [vmem:[%s305 + $0x30] sm:$0xff]
    %v313 = vld [vmem:[%s305 + $0x38] sm:$0xff]
    %v314 = vld [vmem:[%s305 + $0x40] sm:$0xff]
    %v315 = vld [vmem:[%s305 + $0x48] sm:$0xff]
    %v316 = vld [vmem:[%s305 + $0x50] sm:$0xff]
    %v317 = vld [vmem:[%s305 + $0x58] sm:$0xff]
    %v318 = vld [vmem:[%s305 + $0x60] sm:$0xf]
    %v320 = vsel %vm35, %v318, 0
    %322 = vmatprep.subr.mxu0 0.0
    %323 = vmatpush1.msra.mxu0 %v306
    %324 = vmatprep.subr.mxu0 0.0
    %325 = vmatpush1.msra.mxu0 %v307
    %326 = vmatprep.subr.mxu0 0.0
    %327 = vmatpush1.msra.mxu0 %v308
    %328 = vmatprep.subr.mxu0 0.0
    %329 = vmatpush1.msra.mxu0 %v309
    %330 = vmatprep.subr.mxu0 0.0
    %331 = vmatpush1.msra.mxu0 %v310
    %332 = vmatprep.subr.mxu0 0.0
    %333 = vmatpush1.msra.mxu0 %v311
    %334 = vmatprep.subr.mxu0 0.0
    %335 = vmatpush1.msra.mxu0 %v312
    %336 = vmatprep.subr.mxu0 0.0
    %337 = vmatpush1.msra.mxu0 %v313
    %338 = vmatprep.subr.mxu0 0.0
    %339 = vmatpush1.msra.mxu0 %v314
    %340 = vmatprep.subr.mxu0 0.0
    %341 = vmatpush1.msra.mxu0 %v315
    %342 = vmatprep.subr.mxu0 0.0
    %343 = vmatpush1.msra.mxu0 %v316
    %344 = vmatprep.subr.mxu0 0.0
    %345 = vmatpush1.msra.mxu0 %v317
    %346 = vmatprep.subr.mxu0 0.0
    %347 = vmatpush1.msra.mxu0 %v320
    %348 = vmatprep.subr.mxu0 0.0
    %349 = vmatpush1.msra.mxu0 0.0
    %350 = vmatprep.subr.mxu0 0.0
    %351 = vmatpush1.msra.mxu0 0.0
    %352 = vmatprep.subr.mxu0 0.0
    %353 = vmatpush1.msra.mxu0 0.0
    %354 = vmatprep.subr.mxu0 0.0
    %355 = vmatpush1.msra.mxu0 0.0
    %356 = vmatprep.subr.mxu0 0.0
    %357 = vmatpush1.msra.mxu0 0.0
    %358 = vmatprep.subr.mxu0 0.0
    %359 = vmatpush1.msra.mxu0 0.0
    %360 = vmatprep.subr.mxu0 0.0
    %361 = vmatpush1.msra.mxu0 0.0
    %362 = vmatprep.subr.mxu0 0.0
    %363 = vmatpush1.msra.mxu0 0.0
    %364 = vmatprep.subr.mxu0 0.0
    %365 = vmatpush1.msra.mxu0 0.0
    %366 = vmatprep.subr.mxu0 0.0
    %367 = vmatpush1.msra.mxu0 0.0
    %368 = vmatprep.subr.mxu0 0.0
    %369 = vmatpush1.msra.mxu0 0.0
    %370 = vmatprep.subr.mxu0 0.0
    %371 = vmatpush1.msra.mxu0 0.0
    %372 = vmatprep.subr.mxu0 0.0
    %373 = vmatpush1.msra.mxu0 0.0
    %374 = vmatprep.subr.mxu0 0.0
    %375 = vmatpush1.msra.mxu0 0.0
    %376 = vmatprep.subr.mxu0 0.0
    %377 = vmatpush1.msra.mxu0 0.0
    %378 = vmatprep.subr.mxu0 0.0
    %379 = vmatpush1.msra.mxu0 0.0
    %380 = vmatprep.subr.mxu0 0.0
    %381 = vmatpush1.msra.mxu0 0.0
    %382 = vmatprep.subr.mxu0 0.0
    %383 = vmatpush1.msra.mxu0 0.0
    %384 = vmatprep.subr.mxu0 0.0
    %385 = vmatpush1.msra.mxu0 0.0
    %386 = vmatprep.mubr.f32.mxu0 0.0
    %387 = vmatmul.mubr.f32.gmra.mrb[0].mxu0 %v33
    %v388 = vpop.f32.mrb[0].mxu0
    %v389 = vadd.f32 0.0, %v388
    %v390 = vpop.f32.mrb[0].mxu0
    %391 = vdwg.mxu0
    %v392 = vadd.f32 %v304, %v389
    %v393 = vxor.u32 %v392, 2147483648
    %v394 = vmul.f32 %v393, 1.442695
    %v395 = vpow.pop %v394
    %v396 = vadd.f32 %v395, 1.0
    %v397 = vrcp.pop %v396
    %v398 = vmul.f32 1.0, %v397
    %v399 = vmul.f32 %v211, %v16
    %v400 = vmul.f32 %v115, %v302
    %v401 = vadd.f32 %v399, %v400
    %v402 = vtanh.pop %v401
    %v403 = vmul.f32 %v398, %v402
    %404 = vst.msk [vmem:[#allocation3] sm:$0x3] %vm12, %v401
    %405 = vst.msk [vmem:[#allocation2] sm:$0x3] %vm12, %v403
    %v406 = vld [vmem:[#allocation2] sm:$0x3]
    %v407 = vld [vmem:[#allocation3] sm:$0x3]
    %s408 = scalar_lea.vmem %s0, 8
    %v409 = vld [vmem:[%s408] sm:$0x3]
    %v410 = vld [vmem:[%s1] sm:$0xff]
    %v411 = vld [vmem:[%s1 + $0x8] sm:$0xff]
    %v412 = vld [vmem:[%s1 + $0x10] sm:$0xff]
    %v413 = vld [vmem:[%s1 + $0x18] sm:$0xff]
    %v414 = vld [vmem:[%s1 + $0x20] sm:$0xff]
    %v415 = vld [vmem:[%s1 + $0x28] sm:$0xff]
    %v416 = vld [vmem:[%s1 + $0x30] sm:$0xff]
    %v417 = vld [vmem:[%s1 + $0x38] sm:$0xff]
    %v418 = vld [vmem:[%s1 + $0x40] sm:$0xff]
    %v419 = vld [vmem:[%s1 + $0x48] sm:$0xff]
    %v420 = vld [vmem:[%s1 + $0x50] sm:$0xff]
    %v421 = vld [vmem:[%s1 + $0x58] sm:$0xff]
    %v422 = vld [vmem:[%s1 + $0x60] sm:$0xf]
    %v424 = vsel %vm31, %v406, 0
    %v427 = vsel %vm35, %v422, 0
    %429 = vmatprep.subr.mxu0 0.0
    %430 = vmatpush1.msra.mxu0 %v410
    %431 = vmatprep.subr.mxu0 0.0
    %432 = vmatpush1.msra.mxu0 %v411
    %433 = vmatprep.subr.mxu0 0.0
    %434 = vmatpush1.msra.mxu0 %v412
    %435 = vmatprep.subr.mxu0 0.0
    %436 = vmatpush1.msra.mxu0 %v413
    %437 = vmatprep.subr.mxu0 0.0
    %438 = vmatpush1.msra.mxu0 %v414
    %439 = vmatprep.subr.mxu0 0.0
    %440 = vmatpush1.msra.mxu0 %v415
    %441 = vmatprep.subr.mxu0 0.0
    %442 = vmatpush1.msra.mxu0 %v416
    %443 = vmatprep.subr.mxu0 0.0
    %444 = vmatpush1.msra.mxu0 %v417
    %445 = vmatprep.subr.mxu0 0.0
    %446 = vmatpush1.msra.mxu0 %v418
    %447 = vmatprep.subr.mxu0 0.0
    %448 = vmatpush1.msra.mxu0 %v419
    %449 = vmatprep.subr.mxu0 0.0
    %450 = vmatpush1.msra.mxu0 %v420
    %451 = vmatprep.subr.mxu0 0.0
    %452 = vmatpush1.msra.mxu0 %v421
    %453 = vmatprep.subr.mxu0 0.0
    %454 = vmatpush1.msra.mxu0 %v427
    %455 = vmatprep.subr.mxu0 0.0
    %456 = vmatpush1.msra.mxu0 0.0
    %457 = vmatprep.subr.mxu0 0.0
    %458 = vmatpush1.msra.mxu0 0.0
    %459 = vmatprep.subr.mxu0 0.0
    %460 = vmatpush1.msra.mxu0 0.0
    %461 = vmatprep.subr.mxu0 0.0
    %462 = vmatpush1.msra.mxu0 0.0
    %463 = vmatprep.subr.mxu0 0.0
    %464 = vmatpush1.msra.mxu0 0.0
    %465 = vmatprep.subr.mxu0 0.0
    %466 = vmatpush1.msra.mxu0 0.0
    %467 = vmatprep.subr.mxu0 0.0
    %468 = vmatpush1.msra.mxu0 0.0
    %469 = vmatprep.subr.mxu0 0.0
    %470 = vmatpush1.msra.mxu0 0.0
    %471 = vmatprep.subr.mxu0 0.0
    %472 = vmatpush1.msra.mxu0 0.0
    %473 = vmatprep.subr.mxu0 0.0
    %474 = vmatpush1.msra.mxu0 0.0
    %475 = vmatprep.subr.mxu0 0.0
    %476 = vmatpush1.msra.mxu0 0.0
    %477 = vmatprep.subr.mxu0 0.0
    %478 = vmatpush1.msra.mxu0 0.0
    %479 = vmatprep.subr.mxu0 0.0
    %480 = vmatpush1.msra.mxu0 0.0
    %481 = vmatprep.subr.mxu0 0.0
    %482 = vmatpush1.msra.mxu0 0.0
    %483 = vmatprep.subr.mxu0 0.0
    %484 = vmatpush1.msra.mxu0 0.0
    %485 = vmatprep.subr.mxu0 0.0
    %486 = vmatpush1.msra.mxu0 0.0
    %487 = vmatprep.subr.mxu0 0.0
    %488 = vmatpush1.msra.mxu0 0.0
    %489 = vmatprep.subr.mxu0 0.0
    %490 = vmatpush1.msra.mxu0 0.0
    %491 = vmatprep.subr.mxu0 0.0
    %492 = vmatpush1.msra.mxu0 0.0
    %493 = vmatprep.mubr.f32.mxu0 0.0
    %494 = vmatmul.mubr.f32.gmra.mrb[0].mxu0 %v424
    %v495 = vpop.f32.mrb[0].mxu0
    %v496 = vadd.f32 0.0, %v495
    %v497 = vpop.f32.mrb[0].mxu0
    %498 = vdwg.mxu0
    %v499 = vadd.f32 %v409, %v496
    %v500 = vxor.u32 %v499, 2147483648
    %v501 = vmul.f32 %v500, 1.442695
    %v502 = vpow.pop %v501
    %v503 = vadd.f32 %v502, 1.0
    %v504 = vrcp.pop %v503
    %v505 = vmul.f32 1.0, %v504
    %s506 = scalar_lea.vmem %s0, 10
    %v507 = vld [vmem:[%s506] sm:$0x3]
    %v508 = vld [vmem:[%s118] sm:$0xff]
    %v509 = vld [vmem:[%s118 + $0x8] sm:$0xff]
    %v510 = vld [vmem:[%s118 + $0x10] sm:$0xff]
    %v511 = vld [vmem:[%s118 + $0x18] sm:$0xff]
    %v512 = vld [vmem:[%s118 + $0x20] sm:$0xff]
    %v513 = vld [vmem:[%s118 + $0x28] sm:$0xff]
    %v514 = vld [vmem:[%s118 + $0x30] sm:$0xff]
    %v515 = vld [vmem:[%s118 + $0x38] sm:$0xff]
    %v516 = vld [vmem:[%s118 + $0x40] sm:$0xff]
    %v517 = vld [vmem:[%s118 + $0x48] sm:$0xff]
    %v518 = vld [vmem:[%s118 + $0x50] sm:$0xff]
    %v519 = vld [vmem:[%s118 + $0x58] sm:$0xff]
    %v520 = vld [vmem:[%s118 + $0x60] sm:$0xf]
    %v522 = vsel %vm35, %v520, 0
    %524 = vmatprep.subr.mxu0 0.0
    %525 = vmatpush1.msra.mxu0 %v508
    %526 = vmatprep.subr.mxu0 0.0
    %527 = vmatpush1.msra.mxu0 %v509
    %528 = vmatprep.subr.mxu0 0.0
    %529 = vmatpush1.msra.mxu0 %v510
    %530 = vmatprep.subr.mxu0 0.0
    %531 = vmatpush1.msra.mxu0 %v511
    %532 = vmatprep.subr.mxu0 0.0
    %533 = vmatpush1.msra.mxu0 %v512
    %534 = vmatprep.subr.mxu0 0.0
    %535 = vmatpush1.msra.mxu0 %v513
    %536 = vmatprep.subr.mxu0 0.0
    %537 = vmatpush1.msra.mxu0 %v514
    %538 = vmatprep.subr.mxu0 0.0
    %539 = vmatpush1.msra.mxu0 %v515
    %540 = vmatprep.subr.mxu0 0.0
    %541 = vmatpush1.msra.mxu0 %v516
    %542 = vmatprep.subr.mxu0 0.0
    %543 = vmatpush1.msra.mxu0 %v517
    %544 = vmatprep.subr.mxu0 0.0
    %545 = vmatpush1.msra.mxu0 %v518
    %546 = vmatprep.subr.mxu0 0.0
    %547 = vmatpush1.msra.mxu0 %v519
    %548 = vmatprep.subr.mxu0 0.0
    %549 = vmatpush1.msra.mxu0 %v522
    %550 = vmatprep.subr.mxu0 0.0
    %551 = vmatpush1.msra.mxu0 0.0
    %552 = vmatprep.subr.mxu0 0.0
    %553 = vmatpush1.msra.mxu0 0.0
    %554 = vmatprep.subr.mxu0 0.0
    %555 = vmatpush1.msra.mxu0 0.0
    %556 = vmatprep.subr.mxu0 0.0
    %557 = vmatpush1.msra.mxu0 0.0
    %558 = vmatprep.subr.mxu0 0.0
    %559 = vmatpush1.msra.mxu0 0.0
    %560 = vmatprep.subr.mxu0 0.0
    %561 = vmatpush1.msra.mxu0 0.0
    %562 = vmatprep.subr.mxu0 0.0
    %563 = vmatpush1.msra.mxu0 0.0
    %564 = vmatprep.subr.mxu0 0.0
    %565 = vmatpush1.msra.mxu0 0.0
    %566 = vmatprep.subr.mxu0 0.0
    %567 = vmatpush1.msra.mxu0 0.0
    %568 = vmatprep.subr.mxu0 0.0
    %569 = vmatpush1.msra.mxu0 0.0
    %570 = vmatprep.subr.mxu0 0.0
    %571 = vmatpush1.msra.mxu0 0.0
    %572 = vmatprep.subr.mxu0 0.0
    %573 = vmatpush1.msra.mxu0 0.0
    %574 = vmatprep.subr.mxu0 0.0
    %575 = vmatpush1.msra.mxu0 0.0
    %576 = vmatprep.subr.mxu0 0.0
    %577 = vmatpush1.msra.mxu0 0.0
    %578 = vmatprep.subr.mxu0 0.0
    %579 = vmatpush1.msra.mxu0 0.0
    %580 = vmatprep.subr.mxu0 0.0
    %581 = vmatpush1.msra.mxu0 0.0
    %582 = vmatprep.subr.mxu0 0.0
    %583 = vmatpush1.msra.mxu0 0.0
    %584 = vmatprep.subr.mxu0 0.0
    %585 = vmatpush1.msra.mxu0 0.0
    %586 = vmatprep.subr.mxu0 0.0
    %587 = vmatpush1.msra.mxu0 0.0
    %588 = vmatprep.mubr.f32.mxu0 0.0
    %589 = vmatmul.mubr.f32.gmra.mrb[0].mxu0 %v424
    %v590 = vpop.f32.mrb[0].mxu0
    %v591 = vadd.f32 0.0, %v590
    %v592 = vpop.f32.mrb[0].mxu0
    %593 = vdwg.mxu0
    %v594 = vadd.f32 %v507, %v591
    %v595 = vxor.u32 %v594, 2147483648
    %v596 = vmul.f32 %v595, 1.442695
    %v597 = vpow.pop %v596
    %v598 = vadd.f32 %v597, 1.0
    %v599 = vrcp.pop %v598
    %v600 = vmul.f32 1.0, %v599
    %s601 = scalar_lea.vmem %s0, 12
    %v602 = vld [vmem:[%s601] sm:$0x3]
    %v603 = vld [vmem:[%s214] sm:$0xff]
    %v604 = vld [vmem:[%s214 + $0x8] sm:$0xff]
    %v605 = vld [vmem:[%s214 + $0x10] sm:$0xff]
    %v606 = vld [vmem:[%s214 + $0x18] sm:$0xff]
    %v607 = vld [vmem:[%s214 + $0x20] sm:$0xff]
    %v608 = vld [vmem:[%s214 + $0x28] sm:$0xff]
    %v609 = vld [vmem:[%s214 + $0x30] sm:$0xff]
    %v610 = vld [vmem:[%s214 + $0x38] sm:$0xff]
    %v611 = vld [vmem:[%s214 + $0x40] sm:$0xff]
    %v612 = vld [vmem:[%s214 + $0x48] sm:$0xff]
    %v613 = vld [vmem:[%s214 + $0x50] sm:$0xff]
    %v614 = vld [vmem:[%s214 + $0x58] sm:$0xff]
    %v615 = vld [vmem:[%s214 + $0x60] sm:$0xf]
    %v617 = vsel %vm35, %v615, 0
    %619 = vmatprep.subr.mxu0 0.0
    %620 = vmatpush1.msra.mxu0 %v603
    %621 = vmatprep.subr.mxu0 0.0
    %622 = vmatpush1.msra.mxu0 %v604
    %623 = vmatprep.subr.mxu0 0.0
    %624 = vmatpush1.msra.mxu0 %v605
    %625 = vmatprep.subr.mxu0 0.0
    %626 = vmatpush1.msra.mxu0 %v606
    %627 = vmatprep.subr.mxu0 0.0
    %628 = vmatpush1.msra.mxu0 %v607
    %629 = vmatprep.subr.mxu0 0.0
    %630 = vmatpush1.msra.mxu0 %v608
    %631 = vmatprep.subr.mxu0 0.0
    %632 = vmatpush1.msra.mxu0 %v609
    %633 = vmatprep.subr.mxu0 0.0
    %634 = vmatpush1.msra.mxu0 %v610
    %635 = vmatprep.subr.mxu0 0.0
    %636 = vmatpush1.msra.mxu0 %v611
    %637 = vmatprep.subr.mxu0 0.0
    %638 = vmatpush1.msra.mxu0 %v612
    %639 = vmatprep.subr.mxu0 0.0
    %640 = vmatpush1.msra.mxu0 %v613
    %641 = vmatprep.subr.mxu0 0.0
    %642 = vmatpush1.msra.mxu0 %v614
    %643 = vmatprep.subr.mxu0 0.0
    %644 = vmatpush1.msra.mxu0 %v617
    %645 = vmatprep.subr.mxu0 0.0
    %646 = vmatpush1.msra.mxu0 0.0
    %647 = vmatprep.subr.mxu0 0.0
    %648 = vmatpush1.msra.mxu0 0.0
    %649 = vmatprep.subr.mxu0 0.0
    %650 = vmatpush1.msra.mxu0 0.0
    %651 = vmatprep.subr.mxu0 0.0
    %652 = vmatpush1.msra.mxu0 0.0
    %653 = vmatprep.subr.mxu0 0.0
    %654 = vmatpush1.msra.mxu0 0.0
    %655 = vmatprep.subr.mxu0 0.0
    %656 = vmatpush1.msra.mxu0 0.0
    %657 = vmatprep.subr.mxu0 0.0
    %658 = vmatpush1.msra.mxu0 0.0
    %659 = vmatprep.subr.mxu0 0.0
    %660 = vmatpush1.msra.mxu0 0.0
    %661 = vmatprep.subr.mxu0 0.0
    %662 = vmatpush1.msra.mxu0 0.0
    %663 = vmatprep.subr.mxu0 0.0
    %664 = vmatpush1.msra.mxu0 0.0
    %665 = vmatprep.subr.mxu0 0.0
    %666 = vmatpush1.msra.mxu0 0.0
    %667 = vmatprep.subr.mxu0 0.0
    %668 = vmatpush1.msra.mxu0 0.0
    %669 = vmatprep.subr.mxu0 0.0
    %670 = vmatpush1.msra.mxu0 0.0
    %671 = vmatprep.subr.mxu0 0.0
    %672 = vmatpush1.msra.mxu0 0.0
    %673 = vmatprep.subr.mxu0 0.0
    %674 = vmatpush1.msra.mxu0 0.0
    %675 = vmatprep.subr.mxu0 0.0
    %676 = vmatpush1.msra.mxu0 0.0
    %677 = vmatprep.subr.mxu0 0.0
    %678 = vmatpush1.msra.mxu0 0.0
    %679 = vmatprep.subr.mxu0 0.0
    %680 = vmatpush1.msra.mxu0 0.0
    %681 = vmatprep.subr.mxu0 0.0
    %682 = vmatpush1.msra.mxu0 0.0
    %683 = vmatprep.mubr.f32.mxu0 0.0
    %684 = vmatmul.mubr.f32.gmra.mrb[0].mxu0 %v424
    %v685 = vpop.f32.mrb[0].mxu0
    %v686 = vadd.f32 0.0, %v685
    %v687 = vpop.f32.mrb[0].mxu0
    %688 = vdwg.mxu0
    %v689 = vadd.f32 %v602, %v686
    %v690 = vtanh.pop %v689
    %s691 = scalar_lea.vmem %s0, 14
    %v692 = vld [vmem:[%s691] sm:$0x3]
    %v693 = vld [vmem:[%s305] sm:$0xff]
    %v694 = vld [vmem:[%s305 + $0x8] sm:$0xff]
    %v695 = vld [vmem:[%s305 + $0x10] sm:$0xff]
    %v696 = vld [vmem:[%s305 + $0x18] sm:$0xff]
    %v697 = vld [vmem:[%s305 + $0x20] sm:$0xff]
    %v698 = vld [vmem:[%s305 + $0x28] sm:$0xff]
    %v699 = vld [vmem:[%s305 + $0x30] sm:$0xff]
    %v700 = vld [vmem:[%s305 + $0x38] sm:$0xff]
    %v701 = vld [vmem:[%s305 + $0x40] sm:$0xff]
    %v702 = vld [vmem:[%s305 + $0x48] sm:$0xff]
    %v703 = vld [vmem:[%s305 + $0x50] sm:$0xff]
    %v704 = vld [vmem:[%s305 + $0x58] sm:$0xff]
    %v705 = vld [vmem:[%s305 + $0x60] sm:$0xf]
    %v707 = vsel %vm35, %v705, 0
    %709 = vmatprep.subr.mxu0 0.0
    %710 = vmatpush1.msra.mxu0 %v693
    %711 = vmatprep.subr.mxu0 0.0
    %712 = vmatpush1.msra.mxu0 %v694
    %713 = vmatprep.subr.mxu0 0.0
    %714 = vmatpush1.msra.mxu0 %v695
    %715 = vmatprep.subr.mxu0 0.0
    %716 = vmatpush1.msra.mxu0 %v696
    %717 = vmatprep.subr.mxu0 0.0
    %718 = vmatpush1.msra.mxu0 %v697
    %719 = vmatprep.subr.mxu0 0.0
    %720 = vmatpush1.msra.mxu0 %v698
    %721 = vmatprep.subr.mxu0 0.0
    %722 = vmatpush1.msra.mxu0 %v699
    %723 = vmatprep.subr.mxu0 0.0
    %724 = vmatpush1.msra.mxu0 %v700
    %725 = vmatprep.subr.mxu0 0.0
    %726 = vmatpush1.msra.mxu0 %v701
    %727 = vmatprep.subr.mxu0 0.0
    %728 = vmatpush1.msra.mxu0 %v702
    %729 = vmatprep.subr.mxu0 0.0
    %730 = vmatpush1.msra.mxu0 %v703
    %731 = vmatprep.subr.mxu0 0.0
    %732 = vmatpush1.msra.mxu0 %v704
    %733 = vmatprep.subr.mxu0 0.0
    %734 = vmatpush1.msra.mxu0 %v707
    %735 = vmatprep.subr.mxu0 0.0
    %736 = vmatpush1.msra.mxu0 0.0
    %737 = vmatprep.subr.mxu0 0.0
    %738 = vmatpush1.msra.mxu0 0.0
    %739 = vmatprep.subr.mxu0 0.0
    %740 = vmatpush1.msra.mxu0 0.0
    %741 = vmatprep.subr.mxu0 0.0
    %742 = vmatpush1.msra.mxu0 0.0
    %743 = vmatprep.subr.mxu0 0.0
    %744 = vmatpush1.msra.mxu0 0.0
    %745 = vmatprep.subr.mxu0 0.0
    %746 = vmatpush1.msra.mxu0 0.0
    %747 = vmatprep.subr.mxu0 0.0
    %748 = vmatpush1.msra.mxu0 0.0
    %749 = vmatprep.subr.mxu0 0.0
    %750 = vmatpush1.msra.mxu0 0.0
    %751 = vmatprep.subr.mxu0 0.0
    %752 = vmatpush1.msra.mxu0 0.0
    %753 = vmatprep.subr.mxu0 0.0
    %754 = vmatpush1.msra.mxu0 0.0
    %755 = vmatprep.subr.mxu0 0.0
    %756 = vmatpush1.msra.mxu0 0.0
    %757 = vmatprep.subr.mxu0 0.0
    %758 = vmatpush1.msra.mxu0 0.0
    %759 = vmatprep.subr.mxu0 0.0
    %760 = vmatpush1.msra.mxu0 0.0
    %761 = vmatprep.subr.mxu0 0.0
    %762 = vmatpush1.msra.mxu0 0.0
    %763 = vmatprep.subr.mxu0 0.0
    %764 = vmatpush1.msra.mxu0 0.0
    %765 = vmatprep.subr.mxu0 0.0
    %766 = vmatpush1.msra.mxu0 0.0
    %767 = vmatprep.subr.mxu0 0.0
    %768 = vmatpush1.msra.mxu0 0.0
    %769 = vmatprep.subr.mxu0 0.0
    %770 = vmatpush1.msra.mxu0 0.0
    %771 = vmatprep.subr.mxu0 0.0
    %772 = vmatpush1.msra.mxu0 0.0
    %773 = vmatprep.mubr.f32.mxu0 0.0
    %774 = vmatmul.mubr.f32.gmra.mrb[0].mxu0 %v424
    %v775 = vpop.f32.mrb[0].mxu0
    %v776 = vadd.f32 0.0, %v775
    %v777 = vpop.f32.mrb[0].mxu0
    %778 = vdwg.mxu0
    %v779 = vadd.f32 %v692, %v776
    %v780 = vxor.u32 %v779, 2147483648
    %v781 = vmul.f32 %v780, 1.442695
    %v782 = vpow.pop %v781
    %v783 = vadd.f32 %v782, 1.0
    %v784 = vrcp.pop %v783
    %v785 = vmul.f32 1.0, %v784
    %v786 = vmul.f32 %v600, %v407
    %v787 = vmul.f32 %v505, %v690
    %v788 = vadd.f32 %v786, %v787
    %v789 = vtanh.pop %v788
    %v790 = vmul.f32 %v785, %v789
    %791 = vst.msk [vmem:[#allocation3] sm:$0x3] %vm12, %v788
    %792 = vst.msk [vmem:[#allocation2] sm:$0x3] %vm12, %v790
    %v793 = vld [vmem:[#allocation2] sm:$0x3]
    %v794 = vld [vmem:[#allocation3] sm:$0x3]
    %s795 = scalar_lea.vmem %s0, 16
    %v796 = vld [vmem:[%s795] sm:$0x3]
    %v797 = vld [vmem:[%s1] sm:$0xff]
    %v798 = vld [vmem:[%s1 + $0x8] sm:$0xff]
    %v799 = vld [vmem:[%s1 + $0x10] sm:$0xff]
    %v800 = vld [vmem:[%s1 + $0x18] sm:$0xff]
    %v801 = vld [vmem:[%s1 + $0x20] sm:$0xff]
    %v802 = vld [vmem:[%s1 + $0x28] sm:$0xff]
    %v803 = vld [vmem:[%s1 + $0x30] sm:$0xff]
    %v804 = vld [vmem:[%s1 + $0x38] sm:$0xff]
    %v805 = vld [vmem:[%s1 + $0x40] sm:$0xff]
    %v806 = vld [vmem:[%s1 + $0x48] sm:$0xff]
    %v807 = vld [vmem:[%s1 + $0x50] sm:$0xff]
    %v808 = vld [vmem:[%s1 + $0x58] sm:$0xff]
    %v809 = vld [vmem:[%s1 + $0x60] sm:$0xf]
    %v811 = vsel %vm31, %v793, 0
    %v814 = vsel %vm35, %v809, 0
    %816 = vmatprep.subr.mxu0 0.0
    %817 = vmatpush1.msra.mxu0 %v797
    %818 = vmatprep.subr.mxu0 0.0
    %819 = vmatpush1.msra.mxu0 %v798
    %820 = vmatprep.subr.mxu0 0.0
    %821 = vmatpush1.msra.mxu0 %v799
    %822 = vmatprep.subr.mxu0 0.0
    %823 = vmatpush1.msra.mxu0 %v800
    %824 = vmatprep.subr.mxu0 0.0
    %825 = vmatpush1.msra.mxu0 %v801
    %826 = vmatprep.subr.mxu0 0.0
    %827 = vmatpush1.msra.mxu0 %v802
    %828 = vmatprep.subr.mxu0 0.0
    %829 = vmatpush1.msra.mxu0 %v803
    %830 = vmatprep.subr.mxu0 0.0
    %831 = vmatpush1.msra.mxu0 %v804
    %832 = vmatprep.subr.mxu0 0.0
    %833 = vmatpush1.msra.mxu0 %v805
    %834 = vmatprep.subr.mxu0 0.0
    %835 = vmatpush1.msra.mxu0 %v806
    %836 = vmatprep.subr.mxu0 0.0
    %837 = vmatpush1.msra.mxu0 %v807
    %838 = vmatprep.subr.mxu0 0.0
    %839 = vmatpush1.msra.mxu0 %v808
    %840 = vmatprep.subr.mxu0 0.0
    %841 = vmatpush1.msra.mxu0 %v814
    %842 = vmatprep.subr.mxu0 0.0
    %843 = vmatpush1.msra.mxu0 0.0
    %844 = vmatprep.subr.mxu0 0.0
    %845 = vmatpush1.msra.mxu0 0.0
    %846 = vmatprep.subr.mxu0 0.0
    %847 = vmatpush1.msra.mxu0 0.0
    %848 = vmatprep.subr.mxu0 0.0
    %849 = vmatpush1.msra.mxu0 0.0
    %850 = vmatprep.subr.mxu0 0.0
    %851 = vmatpush1.msra.mxu0 0.0
    %852 = vmatprep.subr.mxu0 0.0
    %853 = vmatpush1.msra.mxu0 0.0
    %854 = vmatprep.subr.mxu0 0.0
    %855 = vmatpush1.msra.mxu0 0.0
    %856 = vmatprep.subr.mxu0 0.0
    %857 = vmatpush1.msra.mxu0 0.0
    %858 = vmatprep.subr.mxu0 0.0
    %859 = vmatpush1.msra.mxu0 0.0
    %860 = vmatprep.subr.mxu0 0.0
    %861 = vmatpush1.msra.mxu0 0.0
    %862 = vmatprep.subr.mxu0 0.0
    %863 = vmatpush1.msra.mxu0 0.0
    %864 = vmatprep.subr.mxu0 0.0
    %865 = vmatpush1.msra.mxu0 0.0
    %866 = vmatprep.subr.mxu0 0.0
    %867 = vmatpush1.msra.mxu0 0.0
    %868 = vmatprep.subr.mxu0 0.0
    %869 = vmatpush1.msra.mxu0 0.0
    %870 = vmatprep.subr.mxu0 0.0
    %871 = vmatpush1.msra.mxu0 0.0
    %872 = vmatprep.subr.mxu0 0.0
    %873 = vmatpush1.msra.mxu0 0.0
    %874 = vmatprep.subr.mxu0 0.0
    %875 = vmatpush1.msra.mxu0 0.0
    %876 = vmatprep.subr.mxu0 0.0
    %877 = vmatpush1.msra.mxu0 0.0
    %878 = vmatprep.subr.mxu0 0.0
    %879 = vmatpush1.msra.mxu0 0.0
    %880 = vmatprep.mubr.f32.mxu0 0.0
    %881 = vmatmul.mubr.f32.gmra.mrb[0].mxu0 %v811
    %v882 = vpop.f32.mrb[0].mxu0
    %v883 = vadd.f32 0.0, %v882
    %v884 = vpop.f32.mrb[0].mxu0
    %885 = vdwg.mxu0
    %v886 = vadd.f32 %v796, %v883
    %v887 = vxor.u32 %v886, 2147483648
    %v888 = vmul.f32 %v887, 1.442695
    %v889 = vpow.pop %v888
    %v890 = vadd.f32 %v889, 1.0
    %v891 = vrcp.pop %v890
    %v892 = vmul.f32 1.0, %v891
    %s893 = scalar_lea.vmem %s0, 18
    %v894 = vld [vmem:[%s893] sm:$0x3]
    %v895 = vld [vmem:[%s118] sm:$0xff]
    %v896 = vld [vmem:[%s118 + $0x8] sm:$0xff]
    %v897 = vld [vmem:[%s118 + $0x10] sm:$0xff]
    %v898 = vld [vmem:[%s118 + $0x18] sm:$0xff]
    %v899 = vld [vmem:[%s118 + $0x20] sm:$0xff]
    %v900 = vld [vmem:[%s118 + $0x28] sm:$0xff]
    %v901 = vld [vmem:[%s118 + $0x30] sm:$0xff]
    %v902 = vld [vmem:[%s118 + $0x38] sm:$0xff]
    %v903 = vld [vmem:[%s118 + $0x40] sm:$0xff]
    %v904 = vld [vmem:[%s118 + $0x48] sm:$0xff]
    %v905 = vld [vmem:[%s118 + $0x50] sm:$0xff]
    %v906 = vld [vmem:[%s118 + $0x58] sm:$0xff]
    %v907 = vld [vmem:[%s118 + $0x60] sm:$0xf]
    %v909 = vsel %vm35, %v907, 0
    %911 = vmatprep.subr.mxu0 0.0
    %912 = vmatpush1.msra.mxu0 %v895
    %913 = vmatprep.subr.mxu0 0.0
    %914 = vmatpush1.msra.mxu0 %v896
    %915 = vmatprep.subr.mxu0 0.0
    %916 = vmatpush1.msra.mxu0 %v897
    %917 = vmatprep.subr.mxu0 0.0
    %918 = vmatpush1.msra.mxu0 %v898
    %919 = vmatprep.subr.mxu0 0.0
    %920 = vmatpush1.msra.mxu0 %v899
    %921 = vmatprep.subr.mxu0 0.0
    %922 = vmatpush1.msra.mxu0 %v900
    %923 = vmatprep.subr.mxu0 0.0
    %924 = vmatpush1.msra.mxu0 %v901
    %925 = vmatprep.subr.mxu0 0.0
    %926 = vmatpush1.msra.mxu0 %v902
    %927 = vmatprep.subr.mxu0 0.0
    %928 = vmatpush1.msra.mxu0 %v903
    %929 = vmatprep.subr.mxu0 0.0
    %930 = vmatpush1.msra.mxu0 %v904
    %931 = vmatprep.subr.mxu0 0.0
    %932 = vmatpush1.msra.mxu0 %v905
    %933 = vmatprep.subr.mxu0 0.0
    %934 = vmatpush1.msra.mxu0 %v906
    %935 = vmatprep.subr.mxu0 0.0
    %936 = vmatpush1.msra.mxu0 %v909
    %937 = vmatprep.subr.mxu0 0.0
    %938 = vmatpush1.msra.mxu0 0.0
    %939 = vmatprep.subr.mxu0 0.0
    %940 = vmatpush1.msra.mxu0 0.0
    %941 = vmatprep.subr.mxu0 0.0
    %942 = vmatpush1.msra.mxu0 0.0
    %943 = vmatprep.subr.mxu0 0.0
    %944 = vmatpush1.msra.mxu0 0.0
    %945 = vmatprep.subr.mxu0 0.0
    %946 = vmatpush1.msra.mxu0 0.0
    %947 = vmatprep.subr.mxu0 0.0
    %948 = vmatpush1.msra.mxu0 0.0
    %949 = vmatprep.subr.mxu0 0.0
    %950 = vmatpush1.msra.mxu0 0.0
    %951 = vmatprep.subr.mxu0 0.0
    %952 = vmatpush1.msra.mxu0 0.0
    %953 = vmatprep.subr.mxu0 0.0
    %954 = vmatpush1.msra.mxu0 0.0
    %955 = vmatprep.subr.mxu0 0.0
    %956 = vmatpush1.msra.mxu0 0.0
    %957 = vmatprep.subr.mxu0 0.0
    %958 = vmatpush1.msra.mxu0 0.0
    %959 = vmatprep.subr.mxu0 0.0
    %960 = vmatpush1.msra.mxu0 0.0
    %961 = vmatprep.subr.mxu0 0.0
    %962 = vmatpush1.msra.mxu0 0.0
    %963 = vmatprep.subr.mxu0 0.0
    %964 = vmatpush1.msra.mxu0 0.0
    %965 = vmatprep.subr.mxu0 0.0
    %966 = vmatpush1.msra.mxu0 0.0
    %967 = vmatprep.subr.mxu0 0.0
    %968 = vmatpush1.msra.mxu0 0.0
    %969 = vmatprep.subr.mxu0 0.0
    %970 = vmatpush1.msra.mxu0 0.0
    %971 = vmatprep.subr.mxu0 0.0
    %972 = vmatpush1.msra.mxu0 0.0
    %973 = vmatprep.subr.mxu0 0.0
    %974 = vmatpush1.msra.mxu0 0.0
    %975 = vmatprep.mubr.f32.mxu0 0.0
    %976 = vmatmul.mubr.f32.gmra.mrb[0].mxu0 %v811
    %v977 = vpop.f32.mrb[0].mxu0
    %v978 = vadd.f32 0.0, %v977
    %v979 = vpop.f32.mrb[0].mxu0
    %980 = vdwg.mxu0
    %v981 = vadd.f32 %v894, %v978
    %v982 = vxor.u32 %v981, 2147483648
    %v983 = vmul.f32 %v982, 1.442695
    %v984 = vpow.pop %v983
    %v985 = vadd.f32 %v984, 1.0
    %v986 = vrcp.pop %v985
    %v987 = vmul.f32 1.0, %v986
    %s988 = scalar_lea.vmem %s0, 20
    %v989 = vld [vmem:[%s988] sm:$0x3]
    %v990 = vld [vmem:[%s214] sm:$0xff]
    %v991 = vld [vmem:[%s214 + $0x8] sm:$0xff]
    %v992 = vld [vmem:[%s214 + $0x10] sm:$0xff]
    %v993 = vld [vmem:[%s214 + $0x18] sm:$0xff]
    %v994 = vld [vmem:[%s214 + $0x20] sm:$0xff]
    %v995 = vld [vmem:[%s214 + $0x28] sm:$0xff]
    %v996 = vld [vmem:[%s214 + $0x30] sm:$0xff]
    %v997 = vld [vmem:[%s214 + $0x38] sm:$0xff]
    %v998 = vld [vmem:[%s214 + $0x40] sm:$0xff]
    %v999 = vld [vmem:[%s214 + $0x48] sm:$0xff]
    %v1000 = vld [vmem:[%s214 + $0x50] sm:$0xff]
    %v1001 = vld [vmem:[%s214 + $0x58] sm:$0xff]
    %v1002 = vld [vmem:[%s214 + $0x60] sm:$0xf]
    %v1004 = vsel %vm35, %v1002, 0
    %1006 = vmatprep.subr.mxu0 0.0
    %1007 = vmatpush1.msra.mxu0 %v990
    %1008 = vmatprep.subr.mxu0 0.0
    %1009 = vmatpush1.msra.mxu0 %v991
    %1010 = vmatprep.subr.mxu0 0.0
    %1011 = vmatpush1.msra.mxu0 %v992
    %1012 = vmatprep.subr.mxu0 0.0
    %1013 = vmatpush1.msra.mxu0 %v993
    %1014 = vmatprep.subr.mxu0 0.0
    %1015 = vmatpush1.msra.mxu0 %v994
    %1016 = vmatprep.subr.mxu0 0.0
    %1017 = vmatpush1.msra.mxu0 %v995
    %1018 = vmatprep.subr.mxu0 0.0
    %1019 = vmatpush1.msra.mxu0 %v996
    %1020 = vmatprep.subr.mxu0 0.0
    %1021 = vmatpush1.msra.mxu0 %v997
    %1022 = vmatprep.subr.mxu0 0.0
    %1023 = vmatpush1.msra.mxu0 %v998
    %1024 = vmatprep.subr.mxu0 0.0
    %1025 = vmatpush1.msra.mxu0 %v999
    %1026 = vmatprep.subr.mxu0 0.0
    %1027 = vmatpush1.msra.mxu0 %v1000
    %1028 = vmatprep.subr.mxu0 0.0
    %1029 = vmatpush1.msra.mxu0 %v1001
    %1030 = vmatprep.subr.mxu0 0.0
    %1031 = vmatpush1.msra.mxu0 %v1004
    %1032 = vmatprep.subr.mxu0 0.0
    %1033 = vmatpush1.msra.mxu0 0.0
    %1034 = vmatprep.subr.mxu0 0.0
    %1035 = vmatpush1.msra.mxu0 0.0
    %1036 = vmatprep.subr.mxu0 0.0
    %1037 = vmatpush1.msra.mxu0 0.0
    %1038 = vmatprep.subr.mxu0 0.0
    %1039 = vmatpush1.msra.mxu0 0.0
    %1040 = vmatprep.subr.mxu0 0.0
    %1041 = vmatpush1.msra.mxu0 0.0
    %1042 = vmatprep.subr.mxu0 0.0
    %1043 = vmatpush1.msra.mxu0 0.0
    %1044 = vmatprep.subr.mxu0 0.0
    %1045 = vmatpush1.msra.mxu0 0.0
    %1046 = vmatprep.subr.mxu0 0.0
    %1047 = vmatpush1.msra.mxu0 0.0
    %1048 = vmatprep.subr.mxu0 0.0
    %1049 = vmatpush1.msra.mxu0 0.0
    %1050 = vmatprep.subr.mxu0 0.0
    %1051 = vmatpush1.msra.mxu0 0.0
    %1052 = vmatprep.subr.mxu0 0.0
    %1053 = vmatpush1.msra.mxu0 0.0
    %1054 = vmatprep.subr.mxu0 0.0
    %1055 = vmatpush1.msra.mxu0 0.0
    %1056 = vmatprep.subr.mxu0 0.0
    %1057 = vmatpush1.msra.mxu0 0.0
    %1058 = vmatprep.subr.mxu0 0.0
    %1059 = vmatpush1.msra.mxu0 0.0
    %1060 = vmatprep.subr.mxu0 0.0
    %1061 = vmatpush1.msra.mxu0 0.0
    %1062 = vmatprep.subr.mxu0 0.0
    %1063 = vmatpush1.msra.mxu0 0.0
    %1064 = vmatprep.subr.mxu0 0.0
    %1065 = vmatpush1.msra.mxu0 0.0
    %1066 = vmatprep.subr.mxu0 0.0
    %1067 = vmatpush1.msra.mxu0 0.0
    %1068 = vmatprep.subr.mxu0 0.0
    %1069 = vmatpush1.msra.mxu0 0.0
    %1070 = vmatprep.mubr.f32.mxu0 0.0
    %1071 = vmatmul.mubr.f32.gmra.mrb[0].mxu0 %v811
    %v1072 = vpop.f32.mrb[0].mxu0
    %v1073 = vadd.f32 0.0, %v1072
    %v1074 = vpop.f32.mrb[0].mxu0
    %1075 = vdwg.mxu0
    %v1076 = vadd.f32 %v989, %v1073
    %v1077 = vtanh.pop %v1076
    %s1078 = scalar_lea.vmem %s0, 22
    %v1079 = vld [vmem:[%s1078] sm:$0x3]
    %v1080 = vld [vmem:[%s305] sm:$0xff]
    %v1081 = vld [vmem:[%s305 + $0x8] sm:$0xff]
    %v1082 = vld [vmem:[%s305 + $0x10] sm:$0xff]
    %v1083 = vld [vmem:[%s305 + $0x18] sm:$0xff]
    %v1084 = vld [vmem:[%s305 + $0x20] sm:$0xff]
    %v1085 = vld [vmem:[%s305 + $0x28] sm:$0xff]
    %v1086 = vld [vmem:[%s305 + $0x30] sm:$0xff]
    %v1087 = vld [vmem:[%s305 + $0x38] sm:$0xff]
    %v1088 = vld [vmem:[%s305 + $0x40] sm:$0xff]
    %v1089 = vld [vmem:[%s305 + $0x48] sm:$0xff]
    %v1090 = vld [vmem:[%s305 + $0x50] sm:$0xff]
    %v1091 = vld [vmem:[%s305 + $0x58] sm:$0xff]
    %v1092 = vld [vmem:[%s305 + $0x60] sm:$0xf]
    %v1094 = vsel %vm35, %v1092, 0
    %1096 = vmatprep.subr.mxu0 0.0
    %1097 = vmatpush1.msra.mxu0 %v1080
    %1098 = vmatprep.subr.mxu0 0.0
    %1099 = vmatpush1.msra.mxu0 %v1081
    %1100 = vmatprep.subr.mxu0 0.0
    %1101 = vmatpush1.msra.mxu0 %v1082
    %1102 = vmatprep.subr.mxu0 0.0
    %1103 = vmatpush1.msra.mxu0 %v1083
    %1104 = vmatprep.subr.mxu0 0.0
    %1105 = vmatpush1.msra.mxu0 %v1084
    %1106 = vmatprep.subr.mxu0 0.0
    %1107 = vmatpush1.msra.mxu0 %v1085
    %1108 = vmatprep.subr.mxu0 0.0
    %1109 = vmatpush1.msra.mxu0 %v1086
    %1110 = vmatprep.subr.mxu0 0.0
    %1111 = vmatpush1.msra.mxu0 %v1087
    %1112 = vmatprep.subr.mxu0 0.0
    %1113 = vmatpush1.msra.mxu0 %v1088
    %1114 = vmatprep.subr.mxu0 0.0
    %1115 = vmatpush1.msra.mxu0 %v1089
    %1116 = vmatprep.subr.mxu0 0.0
    %1117 = vmatpush1.msra.mxu0 %v1090
    %1118 = vmatprep.subr.mxu0 0.0
    %1119 = vmatpush1.msra.mxu0 %v1091
    %1120 = vmatprep.subr.mxu0 0.0
    %1121 = vmatpush1.msra.mxu0 %v1094
    %1122 = vmatprep.subr.mxu0 0.0
    %1123 = vmatpush1.msra.mxu0 0.0
    %1124 = vmatprep.subr.mxu0 0.0
    %1125 = vmatpush1.msra.mxu0 0.0
    %1126 = vmatprep.subr.mxu0 0.0
    %1127 = vmatpush1.msra.mxu0 0.0
    %1128 = vmatprep.subr.mxu0 0.0
    %1129 = vmatpush1.msra.mxu0 0.0
    %1130 = vmatprep.subr.mxu0 0.0
    %1131 = vmatpush1.msra.mxu0 0.0
    %1132 = vmatprep.subr.mxu0 0.0
    %1133 = vmatpush1.msra.mxu0 0.0
    %1134 = vmatprep.subr.mxu0 0.0
    %1135 = vmatpush1.msra.mxu0 0.0
    %1136 = vmatprep.subr.mxu0 0.0
    %1137 = vmatpush1.msra.mxu0 0.0
    %1138 = vmatprep.subr.mxu0 0.0
    %1139 = vmatpush1.msra.mxu0 0.0
    %1140 = vmatprep.subr.mxu0 0.0
    %1141 = vmatpush1.msra.mxu0 0.0
    %1142 = vmatprep.subr.mxu0 0.0
    %1143 = vmatpush1.msra.mxu0 0.0
    %1144 = vmatprep.subr.mxu0 0.0
    %1145 = vmatpush1.msra.mxu0 0.0
    %1146 = vmatprep.subr.mxu0 0.0
    %1147 = vmatpush1.msra.mxu0 0.0
    %1148 = vmatprep.subr.mxu0 0.0
    %1149 = vmatpush1.msra.mxu0 0.0
    %1150 = vmatprep.subr.mxu0 0.0
    %1151 = vmatpush1.msra.mxu0 0.0
    %1152 = vmatprep.subr.mxu0 0.0
    %1153 = vmatpush1.msra.mxu0 0.0
    %1154 = vmatprep.subr.mxu0 0.0
    %1155 = vmatpush1.msra.mxu0 0.0
    %1156 = vmatprep.subr.mxu0 0.0
    %1157 = vmatpush1.msra.mxu0 0.0
    %1158 = vmatprep.subr.mxu0 0.0
    %1159 = vmatpush1.msra.mxu0 0.0
    %1160 = vmatprep.mubr.f32.mxu0 0.0
    %1161 = vmatmul.mubr.f32.gmra.mrb[0].mxu0 %v811
    %v1162 = vpop.f32.mrb[0].mxu0
    %v1163 = vadd.f32 0.0, %v1162
    %v1164 = vpop.f32.mrb[0].mxu0
    %1165 = vdwg.mxu0
    %v1166 = vadd.f32 %v1079, %v1163
    %v1167 = vxor.u32 %v1166, 2147483648
    %v1168 = vmul.f32 %v1167, 1.442695
    %v1169 = vpow.pop %v1168
    %v1170 = vadd.f32 %v1169, 1.0
    %v1171 = vrcp.pop %v1170
    %v1172 = vmul.f32 1.0, %v1171
    %v1173 = vmul.f32 %v987, %v794
    %v1174 = vmul.f32 %v892, %v1077
    %v1175 = vadd.f32 %v1173, %v1174
    %v1176 = vtanh.pop %v1175
    %v1177 = vmul.f32 %v1172, %v1176
    %1178 = vst.msk [vmem:[#allocation3] sm:$0x3] %vm12, %v1175
    %1179 = vst.msk [vmem:[#allocation2] sm:$0x3] %vm12, %v1177
    %v1180 = vld [vmem:[#allocation2] sm:$0x3]
    %v1181 = vld [vmem:[#allocation3] sm:$0x3]
    %s1182 = scalar_lea.vmem %s0, 24
    %v1183 = vld [vmem:[%s1182] sm:$0x3]
    %v1184 = vld [vmem:[%s1] sm:$0xff]
    %v1185 = vld [vmem:[%s1 + $0x8] sm:$0xff]
    %v1186 = vld [vmem:[%s1 + $0x10] sm:$0xff]
    %v1187 = vld [vmem:[%s1 + $0x18] sm:$0xff]
    %v1188 = vld [vmem:[%s1 + $0x20] sm:$0xff]
    %v1189 = vld [vmem:[%s1 + $0x28] sm:$0xff]
    %v1190 = vld [vmem:[%s1 + $0x30] sm:$0xff]
    %v1191 = vld [vmem:[%s1 + $0x38] sm:$0xff]
    %v1192 = vld [vmem:[%s1 + $0x40] sm:$0xff]
    %v1193 = vld [vmem:[%s1 + $0x48] sm:$0xff]
    %v1194 = vld [vmem:[%s1 + $0x50] sm:$0xff]
    %v1195 = vld [vmem:[%s1 + $0x58] sm:$0xff]
    %v1196 = vld [vmem:[%s1 + $0x60] sm:$0xf]
    %v1198 = vsel %vm31, %v1180, 0
    %v1201 = vsel %vm35, %v1196, 0
    %1203 = vmatprep.subr.mxu0 0.0
    %1204 = vmatpush1.msra.mxu0 %v1184
    %1205 = vmatprep.subr.mxu0 0.0
    %1206 = vmatpush1.msra.mxu0 %v1185
    %1207 = vmatprep.subr.mxu0 0.0
    %1208 = vmatpush1.msra.mxu0 %v1186
    %1209 = vmatprep.subr.mxu0 0.0
    %1210 = vmatpush1.msra.mxu0 %v1187
    %1211 = vmatprep.subr.mxu0 0.0
    %1212 = vmatpush1.msra.mxu0 %v1188
    %1213 = vmatprep.subr.mxu0 0.0
    %1214 = vmatpush1.msra.mxu0 %v1189
    %1215 = vmatprep.subr.mxu0 0.0
    %1216 = vmatpush1.msra.mxu0 %v1190
    %1217 = vmatprep.subr.mxu0 0.0
    %1218 = vmatpush1.msra.mxu0 %v1191
    %1219 = vmatprep.subr.mxu0 0.0
    %1220 = vmatpush1.msra.mxu0 %v1192
    %1221 = vmatprep.subr.mxu0 0.0
    %1222 = vmatpush1.msra.mxu0 %v1193
    %1223 = vmatprep.subr.mxu0 0.0
    %1224 = vmatpush1.msra.mxu0 %v1194
    %1225 = vmatprep.subr.mxu0 0.0
    %1226 = vmatpush1.msra.mxu0 %v1195
    %1227 = vmatprep.subr.mxu0 0.0
    %1228 = vmatpush1.msra.mxu0 %v1201
    %1229 = vmatprep.subr.mxu0 0.0
    %1230 = vmatpush1.msra.mxu0 0.0
    %1231 = vmatprep.subr.mxu0 0.0
    %1232 = vmatpush1.msra.mxu0 0.0
    %1233 = vmatprep.subr.mxu0 0.0
    %1234 = vmatpush1.msra.mxu0 0.0
    %1235 = vmatprep.subr.mxu0 0.0
    %1236 = vmatpush1.msra.mxu0 0.0
    %1237 = vmatprep.subr.mxu0 0.0
    %1238 = vmatpush1.msra.mxu0 0.0
    %1239 = vmatprep.subr.mxu0 0.0
    %1240 = vmatpush1.msra.mxu0 0.0
    %1241 = vmatprep.subr.mxu0 0.0
    %1242 = vmatpush1.msra.mxu0 0.0
    %1243 = vmatprep.subr.mxu0 0.0
    %1244 = vmatpush1.msra.mxu0 0.0
    %1245 = vmatprep.subr.mxu0 0.0
    %1246 = vmatpush1.msra.mxu0 0.0
    %1247 = vmatprep.subr.mxu0 0.0
    %1248 = vmatpush1.msra.mxu0 0.0
    %1249 = vmatprep.subr.mxu0 0.0
    %1250 = vmatpush1.msra.mxu0 0.0
    %1251 = vmatprep.subr.mxu0 0.0
    %1252 = vmatpush1.msra.mxu0 0.0
    %1253 = vmatprep.subr.mxu0 0.0
    %1254 = vmatpush1.msra.mxu0 0.0
    %1255 = vmatprep.subr.mxu0 0.0
    %1256 = vmatpush1.msra.mxu0 0.0
    %1257 = vmatprep.subr.mxu0 0.0
    %1258 = vmatpush1.msra.mxu0 0.0
    %1259 = vmatprep.subr.mxu0 0.0
    %1260 = vmatpush1.msra.mxu0 0.0
    %1261 = vmatprep.subr.mxu0 0.0
    %1262 = vmatpush1.msra.mxu0 0.0
    %1263 = vmatprep.subr.mxu0 0.0
    %1264 = vmatpush1.msra.mxu0 0.0
    %1265 = vmatprep.subr.mxu0 0.0
    %1266 = vmatpush1.msra.mxu0 0.0
    %1267 = vmatprep.mubr.f32.mxu0 0.0
    %1268 = vmatmul.mubr.f32.gmra.mrb[0].mxu0 %v1198
    %v1269 = vpop.f32.mrb[0].mxu0
    %v1270 = vadd.f32 0.0, %v1269
    %v1271 = vpop.f32.mrb[0].mxu0
    %1272 = vdwg.mxu0
    %v1273 = vadd.f32 %v1183, %v1270
    %v1274 = vxor.u32 %v1273, 2147483648
    %v1275 = vmul.f32 %v1274, 1.442695
    %v1276 = vpow.pop %v1275
    %v1277 = vadd.f32 %v1276, 1.0
    %v1278 = vrcp.pop %v1277
    %v1279 = vmul.f32 1.0, %v1278
    %s1280 = scalar_lea.vmem %s0, 26
    %v1281 = vld [vmem:[%s1280] sm:$0x3]
    %v1282 = vld [vmem:[%s118] sm:$0xff]
    %v1283 = vld [vmem:[%s118 + $0x8] sm:$0xff]
    %v1284 = vld [vmem:[%s118 + $0x10] sm:$0xff]
    %v1285 = vld [vmem:[%s118 + $0x18] sm:$0xff]
    %v1286 = vld [vmem:[%s118 + $0x20] sm:$0xff]
    %v1287 = vld [vmem:[%s118 + $0x28] sm:$0xff]
    %v1288 = vld [vmem:[%s118 + $0x30] sm:$0xff]
    %v1289 = vld [vmem:[%s118 + $0x38] sm:$0xff]
    %v1290 = vld [vmem:[%s118 + $0x40] sm:$0xff]
    %v1291 = vld [vmem:[%s118 + $0x48] sm:$0xff]
    %v1292 = vld [vmem:[%s118 + $0x50] sm:$0xff]
    %v1293 = vld [vmem:[%s118 + $0x58] sm:$0xff]
    %v1294 = vld [vmem:[%s118 + $0x60] sm:$0xf]
    %v1296 = vsel %vm35, %v1294, 0
    %1298 = vmatprep.subr.mxu0 0.0
    %1299 = vmatpush1.msra.mxu0 %v1282
    %1300 = vmatprep.subr.mxu0 0.0
    %1301 = vmatpush1.msra.mxu0 %v1283
    %1302 = vmatprep.subr.mxu0 0.0
    %1303 = vmatpush1.msra.mxu0 %v1284
    %1304 = vmatprep.subr.mxu0 0.0
    %1305 = vmatpush1.msra.mxu0 %v1285
    %1306 = vmatprep.subr.mxu0 0.0
    %1307 = vmatpush1.msra.mxu0 %v1286
    %1308 = vmatprep.subr.mxu0 0.0
    %1309 = vmatpush1.msra.mxu0 %v1287
    %1310 = vmatprep.subr.mxu0 0.0
    %1311 = vmatpush1.msra.mxu0 %v1288
    %1312 = vmatprep.subr.mxu0 0.0
    %1313 = vmatpush1.msra.mxu0 %v1289
    %1314 = vmatprep.subr.mxu0 0.0
    %1315 = vmatpush1.msra.mxu0 %v1290
    %1316 = vmatprep.subr.mxu0 0.0
    %1317 = vmatpush1.msra.mxu0 %v1291
    %1318 = vmatprep.subr.mxu0 0.0
    %1319 = vmatpush1.msra.mxu0 %v1292
    %1320 = vmatprep.subr.mxu0 0.0
    %1321 = vmatpush1.msra.mxu0 %v1293
    %1322 = vmatprep.subr.mxu0 0.0
    %1323 = vmatpush1.msra.mxu0 %v1296
    %1324 = vmatprep.subr.mxu0 0.0
    %1325 = vmatpush1.msra.mxu0 0.0
    %1326 = vmatprep.subr.mxu0 0.0
    %1327 = vmatpush1.msra.mxu0 0.0
    %1328 = vmatprep.subr.mxu0 0.0
    %1329 = vmatpush1.msra.mxu0 0.0
    %1330 = vmatprep.subr.mxu0 0.0
    %1331 = vmatpush1.msra.mxu0 0.0
    %1332 = vmatprep.subr.mxu0 0.0
    %1333 = vmatpush1.msra.mxu0 0.0
    %1334 = vmatprep.subr.mxu0 0.0
    %1335 = vmatpush1.msra.mxu0 0.0
    %1336 = vmatprep.subr.mxu0 0.0
    %1337 = vmatpush1.msra.mxu0 0.0
    %1338 = vmatprep.subr.mxu0 0.0
    %1339 = vmatpush1.msra.mxu0 0.0
    %1340 = vmatprep.subr.mxu0 0.0
    %1341 = vmatpush1.msra.mxu0 0.0
    %1342 = vmatprep.subr.mxu0 0.0
    %1343 = vmatpush1.msra.mxu0 0.0
    %1344 = vmatprep.subr.mxu0 0.0
    %1345 = vmatpush1.msra.mxu0 0.0
    %1346 = vmatprep.subr.mxu0 0.0
    %1347 = vmatpush1.msra.mxu0 0.0
    %1348 = vmatprep.subr.mxu0 0.0
    %1349 = vmatpush1.msra.mxu0 0.0
    %1350 = vmatprep.subr.mxu0 0.0
    %1351 = vmatpush1.msra.mxu0 0.0
    %1352 = vmatprep.subr.mxu0 0.0
    %1353 = vmatpush1.msra.mxu0 0.0
    %1354 = vmatprep.subr.mxu0 0.0
    %1355 = vmatpush1.msra.mxu0 0.0
    %1356 = vmatprep.subr.mxu0 0.0
    %1357 = vmatpush1.msra.mxu0 0.0
    %1358 = vmatprep.subr.mxu0 0.0
    %1359 = vmatpush1.msra.mxu0 0.0
    %1360 = vmatprep.subr.mxu0 0.0
    %1361 = vmatpush1.msra.mxu0 0.0
    %1362 = vmatprep.mubr.f32.mxu0 0.0
    %1363 = vmatmul.mubr.f32.gmra.mrb[0].mxu0 %v1198
    %v1364 = vpop.f32.mrb[0].mxu0
    %v1365 = vadd.f32 0.0, %v1364
    %v1366 = vpop.f32.mrb[0].mxu0
    %1367 = vdwg.mxu0
    %v1368 = vadd.f32 %v1281, %v1365
    %v1369 = vxor.u32 %v1368, 2147483648
    %v1370 = vmul.f32 %v1369, 1.442695
    %v1371 = vpow.pop %v1370
    %v1372 = vadd.f32 %v1371, 1.0
    %v1373 = vrcp.pop %v1372
    %v1374 = vmul.f32 1.0, %v1373
    %s1375 = scalar_lea.vmem %s0, 28
    %v1376 = vld [vmem:[%s1375] sm:$0x3]
    %v1377 = vld [vmem:[%s214] sm:$0xff]
    %v1378 = vld [vmem:[%s214 + $0x8] sm:$0xff]
    %v1379 = vld [vmem:[%s214 + $0x10] sm:$0xff]
    %v1380 = vld [vmem:[%s214 + $0x18] sm:$0xff]
    %v1381 = vld [vmem:[%s214 + $0x20] sm:$0xff]
    %v1382 = vld [vmem:[%s214 + $0x28] sm:$0xff]
    %v1383 = vld [vmem:[%s214 + $0x30] sm:$0xff]
    %v1384 = vld [vmem:[%s214 + $0x38] sm:$0xff]
    %v1385 = vld [vmem:[%s214 + $0x40] sm:$0xff]
    %v1386 = vld [vmem:[%s214 + $0x48] sm:$0xff]
    %v1387 = vld [vmem:[%s214 + $0x50] sm:$0xff]
    %v1388 = vld [vmem:[%s214 + $0x58] sm:$0xff]
    %v1389 = vld [vmem:[%s214 + $0x60] sm:$0xf]
    %v1391 = vsel %vm35, %v1389, 0
    %1393 = vmatprep.subr.mxu0 0.0
    %1394 = vmatpush1.msra.mxu0 %v1377
    %1395 = vmatprep.subr.mxu0 0.0
    %1396 = vmatpush1.msra.mxu0 %v1378
    %1397 = vmatprep.subr.mxu0 0.0
    %1398 = vmatpush1.msra.mxu0 %v1379
    %1399 = vmatprep.subr.mxu0 0.0
    %1400 = vmatpush1.msra.mxu0 %v1380
    %1401 = vmatprep.subr.mxu0 0.0
    %1402 = vmatpush1.msra.mxu0 %v1381
    %1403 = vmatprep.subr.mxu0 0.0
    %1404 = vmatpush1.msra.mxu0 %v1382
    %1405 = vmatprep.subr.mxu0 0.0
    %1406 = vmatpush1.msra.mxu0 %v1383
    %1407 = vmatprep.subr.mxu0 0.0
    %1408 = vmatpush1.msra.mxu0 %v1384
    %1409 = vmatprep.subr.mxu0 0.0
    %1410 = vmatpush1.msra.mxu0 %v1385
    %1411 = vmatprep.subr.mxu0 0.0
    %1412 = vmatpush1.msra.mxu0 %v1386
    %1413 = vmatprep.subr.mxu0 0.0
    %1414 = vmatpush1.msra.mxu0 %v1387
    %1415 = vmatprep.subr.mxu0 0.0
    %1416 = vmatpush1.msra.mxu0 %v1388
    %1417 = vmatprep.subr.mxu0 0.0
    %1418 = vmatpush1.msra.mxu0 %v1391
    %1419 = vmatprep.subr.mxu0 0.0
    %1420 = vmatpush1.msra.mxu0 0.0
    %1421 = vmatprep.subr.mxu0 0.0
    %1422 = vmatpush1.msra.mxu0 0.0
    %1423 = vmatprep.subr.mxu0 0.0
    %1424 = vmatpush1.msra.mxu0 0.0
    %1425 = vmatprep.subr.mxu0 0.0
    %1426 = vmatpush1.msra.mxu0 0.0
    %1427 = vmatprep.subr.mxu0 0.0
    %1428 = vmatpush1.msra.mxu0 0.0
    %1429 = vmatprep.subr.mxu0 0.0
    %1430 = vmatpush1.msra.mxu0 0.0
    %1431 = vmatprep.subr.mxu0 0.0
    %1432 = vmatpush1.msra.mxu0 0.0
    %1433 = vmatprep.subr.mxu0 0.0
    %1434 = vmatpush1.msra.mxu0 0.0
    %1435 = vmatprep.subr.mxu0 0.0
    %1436 = vmatpush1.msra.mxu0 0.0
    %1437 = vmatprep.subr.mxu0 0.0
    %1438 = vmatpush1.msra.mxu0 0.0
    %1439 = vmatprep.subr.mxu0 0.0
    %1440 = vmatpush1.msra.mxu0 0.0
    %1441 = vmatprep.subr.mxu0 0.0
    %1442 = vmatpush1.msra.mxu0 0.0
    %1443 = vmatprep.subr.mxu0 0.0
    %1444 = vmatpush1.msra.mxu0 0.0
    %1445 = vmatprep.subr.mxu0 0.0
    %1446 = vmatpush1.msra.mxu0 0.0
    %1447 = vmatprep.subr.mxu0 0.0
    %1448 = vmatpush1.msra.mxu0 0.0
    %1449 = vmatprep.subr.mxu0 0.0
    %1450 = vmatpush1.msra.mxu0 0.0
    %1451 = vmatprep.subr.mxu0 0.0
    %1452 = vmatpush1.msra.mxu0 0.0
    %1453 = vmatprep.subr.mxu0 0.0
    %1454 = vmatpush1.msra.mxu0 0.0
    %1455 = vmatprep.subr.mxu0 0.0
    %1456 = vmatpush1.msra.mxu0 0.0
    %1457 = vmatprep.mubr.f32.mxu0 0.0
    %1458 = vmatmul.mubr.f32.gmra.mrb[0].mxu0 %v1198
    %v1459 = vpop.f32.mrb[0].mxu0
    %v1460 = vadd.f32 0.0, %v1459
    %v1461 = vpop.f32.mrb[0].mxu0
    %1462 = vdwg.mxu0
    %v1463 = vadd.f32 %v1376, %v1460
    %v1464 = vtanh.pop %v1463
    %s1465 = scalar_lea.vmem %s0, 30
    %v1466 = vld [vmem:[%s1465] sm:$0x3]
    %v1467 = vld [vmem:[%s305] sm:$0xff]
    %v1468 = vld [vmem:[%s305 + $0x8] sm:$0xff]
    %v1469 = vld [vmem:[%s305 + $0x10] sm:$0xff]
    %v1470 = vld [vmem:[%s305 + $0x18] sm:$0xff]
    %v1471 = vld [vmem:[%s305 + $0x20] sm:$0xff]
    %v1472 = vld [vmem:[%s305 + $0x28] sm:$0xff]
    %v1473 = vld [vmem:[%s305 + $0x30] sm:$0xff]
    %v1474 = vld [vmem:[%s305 + $0x38] sm:$0xff]
    %v1475 = vld [vmem:[%s305 + $0x40] sm:$0xff]
    %v1476 = vld [vmem:[%s305 + $0x48] sm:$0xff]
    %v1477 = vld [vmem:[%s305 + $0x50] sm:$0xff]
    %v1478 = vld [vmem:[%s305 + $0x58] sm:$0xff]
    %v1479 = vld [vmem:[%s305 + $0x60] sm:$0xf]
    %v1481 = vsel %vm35, %v1479, 0
    %1483 = vmatprep.subr.mxu0 0.0
    %1484 = vmatpush1.msra.mxu0 %v1467
    %1485 = vmatprep.subr.mxu0 0.0
    %1486 = vmatpush1.msra.mxu0 %v1468
    %1487 = vmatprep.subr.mxu0 0.0
    %1488 = vmatpush1.msra.mxu0 %v1469
    %1489 = vmatprep.subr.mxu0 0.0
    %1490 = vmatpush1.msra.mxu0 %v1470
    %1491 = vmatprep.subr.mxu0 0.0
    %1492 = vmatpush1.msra.mxu0 %v1471
    %1493 = vmatprep.subr.mxu0 0.0
    %1494 = vmatpush1.msra.mxu0 %v1472
    %1495 = vmatprep.subr.mxu0 0.0
    %1496 = vmatpush1.msra.mxu0 %v1473
    %1497 = vmatprep.subr.mxu0 0.0
    %1498 = vmatpush1.msra.mxu0 %v1474
    %1499 = vmatprep.subr.mxu0 0.0
    %1500 = vmatpush1.msra.mxu0 %v1475
    %1501 = vmatprep.subr.mxu0 0.0
    %1502 = vmatpush1.msra.mxu0 %v1476
    %1503 = vmatprep.subr.mxu0 0.0
    %1504 = vmatpush1.msra.mxu0 %v1477
    %1505 = vmatprep.subr.mxu0 0.0
    %1506 = vmatpush1.msra.mxu0 %v1478
    %1507 = vmatprep.subr.mxu0 0.0
    %1508 = vmatpush1.msra.mxu0 %v1481
    %1509 = vmatprep.subr.mxu0 0.0
    %1510 = vmatpush1.msra.mxu0 0.0
    %1511 = vmatprep.subr.mxu0 0.0
    %1512 = vmatpush1.msra.mxu0 0.0
    %1513 = vmatprep.subr.mxu0 0.0
    %1514 = vmatpush1.msra.mxu0 0.0
    %1515 = vmatprep.subr.mxu0 0.0
    %1516 = vmatpush1.msra.mxu0 0.0
    %1517 = vmatprep.subr.mxu0 0.0
    %1518 = vmatpush1.msra.mxu0 0.0
    %1519 = vmatprep.subr.mxu0 0.0
    %1520 = vmatpush1.msra.mxu0 0.0
    %1521 = vmatprep.subr.mxu0 0.0
    %1522 = vmatpush1.msra.mxu0 0.0
    %1523 = vmatprep.subr.mxu0 0.0
    %1524 = vmatpush1.msra.mxu0 0.0
    %1525 = vmatprep.subr.mxu0 0.0
    %1526 = vmatpush1.msra.mxu0 0.0
    %1527 = vmatprep.subr.mxu0 0.0
    %1528 = vmatpush1.msra.mxu0 0.0
    %1529 = vmatprep.subr.mxu0 0.0
    %1530 = vmatpush1.msra.mxu0 0.0
    %1531 = vmatprep.subr.mxu0 0.0
    %1532 = vmatpush1.msra.mxu0 0.0
    %1533 = vmatprep.subr.mxu0 0.0
    %1534 = vmatpush1.msra.mxu0 0.0
    %1535 = vmatprep.subr.mxu0 0.0
    %1536 = vmatpush1.msra.mxu0 0.0
    %1537 = vmatprep.subr.mxu0 0.0
    %1538 = vmatpush1.msra.mxu0 0.0
    %1539 = vmatprep.subr.mxu0 0.0
    %1540 = vmatpush1.msra.mxu0 0.0
    %1541 = vmatprep.subr.mxu0 0.0
    %1542 = vmatpush1.msra.mxu0 0.0
    %1543 = vmatprep.subr.mxu0 0.0
    %1544 = vmatpush1.msra.mxu0 0.0
    %1545 = vmatprep.subr.mxu0 0.0
    %1546 = vmatpush1.msra.mxu0 0.0
    %1547 = vmatprep.mubr.f32.mxu0 0.0
    %1548 = vmatmul.mubr.f32.gmra.mrb[0].mxu0 %v1198
    %v1549 = vpop.f32.mrb[0].mxu0
    %v1550 = vadd.f32 0.0, %v1549
    %v1551 = vpop.f32.mrb[0].mxu0
    %1552 = vdwg.mxu0
    %v1553 = vadd.f32 %v1466, %v1550
    %v1554 = vxor.u32 %v1553, 2147483648
    %v1555 = vmul.f32 %v1554, 1.442695
    %v1556 = vpow.pop %v1555
    %v1557 = vadd.f32 %v1556, 1.0
    %v1558 = vrcp.pop %v1557
    %v1559 = vmul.f32 1.0, %v1558
    %v1560 = vmul.f32 %v1374, %v1181
    %v1561 = vmul.f32 %v1279, %v1464
    %v1562 = vadd.f32 %v1560, %v1561
    %v1563 = vtanh.pop %v1562
    %v1564 = vmul.f32 %v1559, %v1563
    %1565 = vst.msk [vmem:[#allocation3] sm:$0x3] %vm12, %v1562
    %1566 = vst.msk [vmem:[#allocation2] sm:$0x3] %vm12, %v1564
    %v1567 = vld [vmem:[#allocation2] sm:$0x3]
    %v1568 = vld [vmem:[#allocation3] sm:$0x3]
    %s1569 = scalar_lea.vmem %s0, 32
    %v1570 = vld [vmem:[%s1569] sm:$0x3]
    %v1571 = vld [vmem:[%s1] sm:$0xff]
    %v1572 = vld [vmem:[%s1 + $0x8] sm:$0xff]
    %v1573 = vld [vmem:[%s1 + $0x10] sm:$0xff]
    %v1574 = vld [vmem:[%s1 + $0x18] sm:$0xff]
    %v1575 = vld [vmem:[%s1 + $0x20] sm:$0xff]
    %v1576 = vld [vmem:[%s1 + $0x28] sm:$0xff]
    %v1577 = vld [vmem:[%s1 + $0x30] sm:$0xff]
    %v1578 = vld [vmem:[%s1 + $0x38] sm:$0xff]
    %v1579 = vld [vmem:[%s1 + $0x40] sm:$0xff]
    %v1580 = vld [vmem:[%s1 + $0x48] sm:$0xff]
    %v1581 = vld [vmem:[%s1 + $0x50] sm:$0xff]
    %v1582 = vld [vmem:[%s1 + $0x58] sm:$0xff]
    %v1583 = vld [vmem:[%s1 + $0x60] sm:$0xf]
    %v1585 = vsel %vm31, %v1567, 0
    %v1588 = vsel %vm35, %v1583, 0
    %1590 = vmatprep.subr.mxu0 0.0
    %1591 = vmatpush1.msra.mxu0 %v1571
    %1592 = vmatprep.subr.mxu0 0.0
    %1593 = vmatpush1.msra.mxu0 %v1572
    %1594 = vmatprep.subr.mxu0 0.0
    %1595 = vmatpush1.msra.mxu0 %v1573
    %1596 = vmatprep.subr.mxu0 0.0
    %1597 = vmatpush1.msra.mxu0 %v1574
    %1598 = vmatprep.subr.mxu0 0.0
    %1599 = vmatpush1.msra.mxu0 %v1575
    %1600 = vmatprep.subr.mxu0 0.0
    %1601 = vmatpush1.msra.mxu0 %v1576
    %1602 = vmatprep.subr.mxu0 0.0
    %1603 = vmatpush1.msra.mxu0 %v1577
    %1604 = vmatprep.subr.mxu0 0.0
    %1605 = vmatpush1.msra.mxu0 %v1578
    %1606 = vmatprep.subr.mxu0 0.0
    %1607 = vmatpush1.msra.mxu0 %v1579
    %1608 = vmatprep.subr.mxu0 0.0
    %1609 = vmatpush1.msra.mxu0 %v1580
    %1610 = vmatprep.subr.mxu0 0.0
    %1611 = vmatpush1.msra.mxu0 %v1581
    %1612 = vmatprep.subr.mxu0 0.0
    %1613 = vmatpush1.msra.mxu0 %v1582
    %1614 = vmatprep.subr.mxu0 0.0
    %1615 = vmatpush1.msra.mxu0 %v1588
    %1616 = vmatprep.subr.mxu0 0.0
    %1617 = vmatpush1.msra.mxu0 0.0
    %1618 = vmatprep.subr.mxu0 0.0
    %1619 = vmatpush1.msra.mxu0 0.0
    %1620 = vmatprep.subr.mxu0 0.0
    %1621 = vmatpush1.msra.mxu0 0.0
    %1622 = vmatprep.subr.mxu0 0.0
    %1623 = vmatpush1.msra.mxu0 0.0
    %1624 = vmatprep.subr.mxu0 0.0
    %1625 = vmatpush1.msra.mxu0 0.0
    %1626 = vmatprep.subr.mxu0 0.0
    %1627 = vmatpush1.msra.mxu0 0.0
    %1628 = vmatprep.subr.mxu0 0.0
    %1629 = vmatpush1.msra.mxu0 0.0
    %1630 = vmatprep.subr.mxu0 0.0
    %1631 = vmatpush1.msra.mxu0 0.0
    %1632 = vmatprep.subr.mxu0 0.0
    %1633 = vmatpush1.msra.mxu0 0.0
    %1634 = vmatprep.subr.mxu0 0.0
    %1635 = vmatpush1.msra.mxu0 0.0
    %1636 = vmatprep.subr.mxu0 0.0
    %1637 = vmatpush1.msra.mxu0 0.0
    %1638 = vmatprep.subr.mxu0 0.0
    %1639 = vmatpush1.msra.mxu0 0.0
    %1640 = vmatprep.subr.mxu0 0.0
    %1641 = vmatpush1.msra.mxu0 0.0
    %1642 = vmatprep.subr.mxu0 0.0
    %1643 = vmatpush1.msra.mxu0 0.0
    %1644 = vmatprep.subr.mxu0 0.0
    %1645 = vmatpush1.msra.mxu0 0.0
    %1646 = vmatprep.subr.mxu0 0.0
    %1647 = vmatpush1.msra.mxu0 0.0
    %1648 = vmatprep.subr.mxu0 0.0
    %1649 = vmatpush1.msra.mxu0 0.0
    %1650 = vmatprep.subr.mxu0 0.0
    %1651 = vmatpush1.msra.mxu0 0.0
    %1652 = vmatprep.subr.mxu0 0.0
    %1653 = vmatpush1.msra.mxu0 0.0
    %1654 = vmatprep.mubr.f32.mxu0 0.0
    %1655 = vmatmul.mubr.f32.gmra.mrb[0].mxu0 %v1585
    %v1656 = vpop.f32.mrb[0].mxu0
    %v1657 = vadd.f32 0.0, %v1656
    %v1658 = vpop.f32.mrb[0].mxu0
    %1659 = vdwg.mxu0
    %v1660 = vadd.f32 %v1570, %v1657
    %v1661 = vxor.u32 %v1660, 2147483648
    %v1662 = vmul.f32 %v1661, 1.442695
    %v1663 = vpow.pop %v1662
    %v1664 = vadd.f32 %v1663, 1.0
    %v1665 = vrcp.pop %v1664
    %v1666 = vmul.f32 1.0, %v1665
    %s1667 = scalar_lea.vmem %s0, 34
    %v1668 = vld [vmem:[%s1667] sm:$0x3]
    %v1669 = vld [vmem:[%s118] sm:$0xff]
    %v1670 = vld [vmem:[%s118 + $0x8] sm:$0xff]
    %v1671 = vld [vmem:[%s118 + $0x10] sm:$0xff]
    %v1672 = vld [vmem:[%s118 + $0x18] sm:$0xff]
    %v1673 = vld [vmem:[%s118 + $0x20] sm:$0xff]
    %v1674 = vld [vmem:[%s118 + $0x28] sm:$0xff]
    %v1675 = vld [vmem:[%s118 + $0x30] sm:$0xff]
    %v1676 = vld [vmem:[%s118 + $0x38] sm:$0xff]
    %v1677 = vld [vmem:[%s118 + $0x40] sm:$0xff]
    %v1678 = vld [vmem:[%s118 + $0x48] sm:$0xff]
    %v1679 = vld [vmem:[%s118 + $0x50] sm:$0xff]
    %v1680 = vld [vmem:[%s118 + $0x58] sm:$0xff]
    %v1681 = vld [vmem:[%s118 + $0x60] sm:$0xf]
    %v1683 = vsel %vm35, %v1681, 0
    %1685 = vmatprep.subr.mxu0 0.0
    %1686 = vmatpush1.msra.mxu0 %v1669
    %1687 = vmatprep.subr.mxu0 0.0
    %1688 = vmatpush1.msra.mxu0 %v1670
    %1689 = vmatprep.subr.mxu0 0.0
    %1690 = vmatpush1.msra.mxu0 %v1671
    %1691 = vmatprep.subr.mxu0 0.0
    %1692 = vmatpush1.msra.mxu0 %v1672
    %1693 = vmatprep.subr.mxu0 0.0
    %1694 = vmatpush1.msra.mxu0 %v1673
    %1695 = vmatprep.subr.mxu0 0.0
    %1696 = vmatpush1.msra.mxu0 %v1674
    %1697 = vmatprep.subr.mxu0 0.0
    %1698 = vmatpush1.msra.mxu0 %v1675
    %1699 = vmatprep.subr.mxu0 0.0
    %1700 = vmatpush1.msra.mxu0 %v1676
    %1701 = vmatprep.subr.mxu0 0.0
    %1702 = vmatpush1.msra.mxu0 %v1677
    %1703 = vmatprep.subr.mxu0 0.0
    %1704 = vmatpush1.msra.mxu0 %v1678
    %1705 = vmatprep.subr.mxu0 0.0
    %1706 = vmatpush1.msra.mxu0 %v1679
    %1707 = vmatprep.subr.mxu0 0.0
    %1708 = vmatpush1.msra.mxu0 %v1680
    %1709 = vmatprep.subr.mxu0 0.0
    %1710 = vmatpush1.msra.mxu0 %v1683
    %1711 = vmatprep.subr.mxu0 0.0
    %1712 = vmatpush1.msra.mxu0 0.0
    %1713 = vmatprep.subr.mxu0 0.0
    %1714 = vmatpush1.msra.mxu0 0.0
    %1715 = vmatprep.subr.mxu0 0.0
    %1716 = vmatpush1.msra.mxu0 0.0
    %1717 = vmatprep.subr.mxu0 0.0
    %1718 = vmatpush1.msra.mxu0 0.0
    %1719 = vmatprep.subr.mxu0 0.0
    %1720 = vmatpush1.msra.mxu0 0.0
    %1721 = vmatprep.subr.mxu0 0.0
    %1722 = vmatpush1.msra.mxu0 0.0
    %1723 = vmatprep.subr.mxu0 0.0
    %1724 = vmatpush1.msra.mxu0 0.0
    %1725 = vmatprep.subr.mxu0 0.0
    %1726 = vmatpush1.msra.mxu0 0.0
    %1727 = vmatprep.subr.mxu0 0.0
    %1728 = vmatpush1.msra.mxu0 0.0
    %1729 = vmatprep.subr.mxu0 0.0
    %1730 = vmatpush1.msra.mxu0 0.0
    %1731 = vmatprep.subr.mxu0 0.0
    %1732 = vmatpush1.msra.mxu0 0.0
    %1733 = vmatprep.subr.mxu0 0.0
    %1734 = vmatpush1.msra.mxu0 0.0
    %1735 = vmatprep.subr.mxu0 0.0
    %1736 = vmatpush1.msra.mxu0 0.0
    %1737 = vmatprep.subr.mxu0 0.0
    %1738 = vmatpush1.msra.mxu0 0.0
    %1739 = vmatprep.subr.mxu0 0.0
    %1740 = vmatpush1.msra.mxu0 0.0
    %1741 = vmatprep.subr.mxu0 0.0
    %1742 = vmatpush1.msra.mxu0 0.0
    %1743 = vmatprep.subr.mxu0 0.0
    %1744 = vmatpush1.msra.mxu0 0.0
    %1745 = vmatprep.subr.mxu0 0.0
    %1746 = vmatpush1.msra.mxu0 0.0
    %1747 = vmatprep.subr.mxu0 0.0
    %1748 = vmatpush1.msra.mxu0 0.0
    %1749 = vmatprep.mubr.f32.mxu0 0.0
    %1750 = vmatmul.mubr.f32.gmra.mrb[0].mxu0 %v1585
    %v1751 = vpop.f32.mrb[0].mxu0
    %v1752 = vadd.f32 0.0, %v1751
    %v1753 = vpop.f32.mrb[0].mxu0
    %1754 = vdwg.mxu0
    %v1755 = vadd.f32 %v1668, %v1752
    %v1756 = vxor.u32 %v1755, 2147483648
    %v1757 = vmul.f32 %v1756, 1.442695
    %v1758 = vpow.pop %v1757
    %v1759 = vadd.f32 %v1758, 1.0
    %v1760 = vrcp.pop %v1759
    %v1761 = vmul.f32 1.0, %v1760
    %s1762 = scalar_lea.vmem %s0, 36
    %v1763 = vld [vmem:[%s1762] sm:$0x3]
    %v1764 = vld [vmem:[%s214] sm:$0xff]
    %v1765 = vld [vmem:[%s214 + $0x8] sm:$0xff]
    %v1766 = vld [vmem:[%s214 + $0x10] sm:$0xff]
    %v1767 = vld [vmem:[%s214 + $0x18] sm:$0xff]
    %v1768 = vld [vmem:[%s214 + $0x20] sm:$0xff]
    %v1769 = vld [vmem:[%s214 + $0x28] sm:$0xff]
    %v1770 = vld [vmem:[%s214 + $0x30] sm:$0xff]
    %v1771 = vld [vmem:[%s214 + $0x38] sm:$0xff]
    %v1772 = vld [vmem:[%s214 + $0x40] sm:$0xff]
    %v1773 = vld [vmem:[%s214 + $0x48] sm:$0xff]
    %v1774 = vld [vmem:[%s214 + $0x50] sm:$0xff]
    %v1775 = vld [vmem:[%s214 + $0x58] sm:$0xff]
    %v1776 = vld [vmem:[%s214 + $0x60] sm:$0xf]
    %v1778 = vsel %vm35, %v1776, 0
    %1780 = vmatprep.subr.mxu0 0.0
    %1781 = vmatpush1.msra.mxu0 %v1764
    %1782 = vmatprep.subr.mxu0 0.0
    %1783 = vmatpush1.msra.mxu0 %v1765
    %1784 = vmatprep.subr.mxu0 0.0
    %1785 = vmatpush1.msra.mxu0 %v1766
    %1786 = vmatprep.subr.mxu0 0.0
    %1787 = vmatpush1.msra.mxu0 %v1767
    %1788 = vmatprep.subr.mxu0 0.0
    %1789 = vmatpush1.msra.mxu0 %v1768
    %1790 = vmatprep.subr.mxu0 0.0
    %1791 = vmatpush1.msra.mxu0 %v1769
    %1792 = vmatprep.subr.mxu0 0.0
    %1793 = vmatpush1.msra.mxu0 %v1770
    %1794 = vmatprep.subr.mxu0 0.0
    %1795 = vmatpush1.msra.mxu0 %v1771
    %1796 = vmatprep.subr.mxu0 0.0
    %1797 = vmatpush1.msra.mxu0 %v1772
    %1798 = vmatprep.subr.mxu0 0.0
    %1799 = vmatpush1.msra.mxu0 %v1773
    %1800 = vmatprep.subr.mxu0 0.0
    %1801 = vmatpush1.msra.mxu0 %v1774
    %1802 = vmatprep.subr.mxu0 0.0
    %1803 = vmatpush1.msra.mxu0 %v1775
    %1804 = vmatprep.subr.mxu0 0.0
    %1805 = vmatpush1.msra.mxu0 %v1778
    %1806 = vmatprep.subr.mxu0 0.0
    %1807 = vmatpush1.msra.mxu0 0.0
    %1808 = vmatprep.subr.mxu0 0.0
    %1809 = vmatpush1.msra.mxu0 0.0
    %1810 = vmatprep.subr.mxu0 0.0
    %1811 = vmatpush1.msra.mxu0 0.0
    %1812 = vmatprep.subr.mxu0 0.0
    %1813 = vmatpush1.msra.mxu0 0.0
    %1814 = vmatprep.subr.mxu0 0.0
    %1815 = vmatpush1.msra.mxu0 0.0
    %1816 = vmatprep.subr.mxu0 0.0
    %1817 = vmatpush1.msra.mxu0 0.0
    %1818 = vmatprep.subr.mxu0 0.0
    %1819 = vmatpush1.msra.mxu0 0.0
    %1820 = vmatprep.subr.mxu0 0.0
    %1821 = vmatpush1.msra.mxu0 0.0
    %1822 = vmatprep.subr.mxu0 0.0
    %1823 = vmatpush1.msra.mxu0 0.0
    %1824 = vmatprep.subr.mxu0 0.0
    %1825 = vmatpush1.msra.mxu0 0.0
    %1826 = vmatprep.subr.mxu0 0.0
    %1827 = vmatpush1.msra.mxu0 0.0
    %1828 = vmatprep.subr.mxu0 0.0
    %1829 = vmatpush1.msra.mxu0 0.0
    %1830 = vmatprep.subr.mxu0 0.0
    %1831 = vmatpush1.msra.mxu0 0.0
    %1832 = vmatprep.subr.mxu0 0.0
    %1833 = vmatpush1.msra.mxu0 0.0
    %1834 = vmatprep.subr.mxu0 0.0
    %1835 = vmatpush1.msra.mxu0 0.0
    %1836 = vmatprep.subr.mxu0 0.0
    %1837 = vmatpush1.msra.mxu0 0.0
    %1838 = vmatprep.subr.mxu0 0.0
    %1839 = vmatpush1.msra.mxu0 0.0
    %1840 = vmatprep.subr.mxu0 0.0
    %1841 = vmatpush1.msra.mxu0 0.0
    %1842 = vmatprep.subr.mxu0 0.0
    %1843 = vmatpush1.msra.mxu0 0.0
    %1844 = vmatprep.mubr.f32.mxu0 0.0
    %1845 = vmatmul.mubr.f32.gmra.mrb[0].mxu0 %v1585
    %v1846 = vpop.f32.mrb[0].mxu0
    %v1847 = vadd.f32 0.0, %v1846
    %v1848 = vpop.f32.mrb[0].mxu0
    %1849 = vdwg.mxu0
    %v1850 = vadd.f32 %v1763, %v1847
    %v1851 = vtanh.pop %v1850
    %s1852 = scalar_lea.vmem %s0, 38
    %v1853 = vld [vmem:[%s1852] sm:$0x3]
    %v1854 = vld [vmem:[%s305] sm:$0xff]
    %v1855 = vld [vmem:[%s305 + $0x8] sm:$0xff]
    %v1856 = vld [vmem:[%s305 + $0x10] sm:$0xff]
    %v1857 = vld [vmem:[%s305 + $0x18] sm:$0xff]
    %v1858 = vld [vmem:[%s305 + $0x20] sm:$0xff]
    %v1859 = vld [vmem:[%s305 + $0x28] sm:$0xff]
    %v1860 = vld [vmem:[%s305 + $0x30] sm:$0xff]
    %v1861 = vld [vmem:[%s305 + $0x38] sm:$0xff]
    %v1862 = vld [vmem:[%s305 + $0x40] sm:$0xff]
    %v1863 = vld [vmem:[%s305 + $0x48] sm:$0xff]
    %v1864 = vld [vmem:[%s305 + $0x50] sm:$0xff]
    %v1865 = vld [vmem:[%s305 + $0x58] sm:$0xff]
    %v1866 = vld [vmem:[%s305 + $0x60] sm:$0xf]
    %v1868 = vsel %vm35, %v1866, 0
    %1870 = vmatprep.subr.mxu0 0.0
    %1871 = vmatpush1.msra.mxu0 %v1854
    %1872 = vmatprep.subr.mxu0 0.0
    %1873 = vmatpush1.msra.mxu0 %v1855
    %1874 = vmatprep.subr.mxu0 0.0
    %1875 = vmatpush1.msra.mxu0 %v1856
    %1876 = vmatprep.subr.mxu0 0.0
    %1877 = vmatpush1.msra.mxu0 %v1857
    %1878 = vmatprep.subr.mxu0 0.0
    %1879 = vmatpush1.msra.mxu0 %v1858
    %1880 = vmatprep.subr.mxu0 0.0
    %1881 = vmatpush1.msra.mxu0 %v1859
    %1882 = vmatprep.subr.mxu0 0.0
    %1883 = vmatpush1.msra.mxu0 %v1860
    %1884 = vmatprep.subr.mxu0 0.0
    %1885 = vmatpush1.msra.mxu0 %v1861
    %1886 = vmatprep.subr.mxu0 0.0
    %1887 = vmatpush1.msra.mxu0 %v1862
    %1888 = vmatprep.subr.mxu0 0.0
    %1889 = vmatpush1.msra.mxu0 %v1863
    %1890 = vmatprep.subr.mxu0 0.0
    %1891 = vmatpush1.msra.mxu0 %v1864
    %1892 = vmatprep.subr.mxu0 0.0
    %1893 = vmatpush1.msra.mxu0 %v1865
    %1894 = vmatprep.subr.mxu0 0.0
    %1895 = vmatpush1.msra.mxu0 %v1868
    %1896 = vmatprep.subr.mxu0 0.0
    %1897 = vmatpush1.msra.mxu0 0.0
    %1898 = vmatprep.subr.mxu0 0.0
    %1899 = vmatpush1.msra.mxu0 0.0
    %1900 = vmatprep.subr.mxu0 0.0
    %1901 = vmatpush1.msra.mxu0 0.0
    %1902 = vmatprep.subr.mxu0 0.0
    %1903 = vmatpush1.msra.mxu0 0.0
    %1904 = vmatprep.subr.mxu0 0.0
    %1905 = vmatpush1.msra.mxu0 0.0
    %1906 = vmatprep.subr.mxu0 0.0
    %1907 = vmatpush1.msra.mxu0 0.0
    %1908 = vmatprep.subr.mxu0 0.0
    %1909 = vmatpush1.msra.mxu0 0.0
    %1910 = vmatprep.subr.mxu0 0.0
    %1911 = vmatpush1.msra.mxu0 0.0
    %1912 = vmatprep.subr.mxu0 0.0
    %1913 = vmatpush1.msra.mxu0 0.0
    %1914 = vmatprep.subr.mxu0 0.0
    %1915 = vmatpush1.msra.mxu0 0.0
    %1916 = vmatprep.subr.mxu0 0.0
    %1917 = vmatpush1.msra.mxu0 0.0
    %1918 = vmatprep.subr.mxu0 0.0
    %1919 = vmatpush1.msra.mxu0 0.0
    %1920 = vmatprep.subr.mxu0 0.0
    %1921 = vmatpush1.msra.mxu0 0.0
    %1922 = vmatprep.subr.mxu0 0.0
    %1923 = vmatpush1.msra.mxu0 0.0
    %1924 = vmatprep.subr.mxu0 0.0
    %1925 = vmatpush1.msra.mxu0 0.0
    %1926 = vmatprep.subr.mxu0 0.0
    %1927 = vmatpush1.msra.mxu0 0.0
    %1928 = vmatprep.subr.mxu0 0.0
    %1929 = vmatpush1.msra.mxu0 0.0
    %1930 = vmatprep.subr.mxu0 0.0
    %1931 = vmatpush1.msra.mxu0 0.0
    %1932 = vmatprep.subr.mxu0 0.0
    %1933 = vmatpush1.msra.mxu0 0.0
    %1934 = vmatprep.mubr.f32.mxu0 0.0
    %1935 = vmatmul.mubr.f32.gmra.mrb[0].mxu0 %v1585
    %v1936 = vpop.f32.mrb[0].mxu0
    %v1937 = vadd.f32 0.0, %v1936
    %v1938 = vpop.f32.mrb[0].mxu0
    %1939 = vdwg.mxu0
    %v1940 = vadd.f32 %v1853, %v1937
    %v1941 = vxor.u32 %v1940, 2147483648
    %v1942 = vmul.f32 %v1941, 1.442695
    %v1943 = vpow.pop %v1942
    %v1944 = vadd.f32 %v1943, 1.0
    %v1945 = vrcp.pop %v1944
    %v1946 = vmul.f32 1.0, %v1945
    %v1947 = vmul.f32 %v1761, %v1568
    %v1948 = vmul.f32 %v1666, %v1851
    %v1949 = vadd.f32 %v1947, %v1948
    %v1950 = vtanh.pop %v1949
    %v1951 = vmul.f32 %v1946, %v1950
    %1952 = vst.msk [vmem:[#allocation3] sm:$0x3] %vm12, %v1949
    %1953 = vst.msk [vmem:[#allocation2] sm:$0x3] %vm12, %v1951
    %v1954 = vld [vmem:[#allocation2] sm:$0x3]
    %v1955 = vld [vmem:[#allocation3] sm:$0x3]
    %s1956 = scalar_lea.vmem %s0, 40
    %v1957 = vld [vmem:[%s1956] sm:$0x3]
    %v1958 = vld [vmem:[%s1] sm:$0xff]
    %v1959 = vld [vmem:[%s1 + $0x8] sm:$0xff]
    %v1960 = vld [vmem:[%s1 + $0x10] sm:$0xff]
    %v1961 = vld [vmem:[%s1 + $0x18] sm:$0xff]
    %v1962 = vld [vmem:[%s1 + $0x20] sm:$0xff]
    %v1963 = vld [vmem:[%s1 + $0x28] sm:$0xff]
    %v1964 = vld [vmem:[%s1 + $0x30] sm:$0xff]
    %v1965 = vld [vmem:[%s1 + $0x38] sm:$0xff]
    %v1966 = vld [vmem:[%s1 + $0x40] sm:$0xff]
    %v1967 = vld [vmem:[%s1 + $0x48] sm:$0xff]
    %v1968 = vld [vmem:[%s1 + $0x50] sm:$0xff]
    %v1969 = vld [vmem:[%s1 + $0x58] sm:$0xff]
    %v1970 = vld [vmem:[%s1 + $0x60] sm:$0xf]
    %v1972 = vsel %vm31, %v1954, 0
    %v1975 = vsel %vm35, %v1970, 0
    %1977 = vmatprep.subr.mxu0 0.0
    %1978 = vmatpush1.msra.mxu0 %v1958
    %1979 = vmatprep.subr.mxu0 0.0
    %1980 = vmatpush1.msra.mxu0 %v1959
    %1981 = vmatprep.subr.mxu0 0.0
    %1982 = vmatpush1.msra.mxu0 %v1960
    %1983 = vmatprep.subr.mxu0 0.0
    %1984 = vmatpush1.msra.mxu0 %v1961
    %1985 = vmatprep.subr.mxu0 0.0
    %1986 = vmatpush1.msra.mxu0 %v1962
    %1987 = vmatprep.subr.mxu0 0.0
    %1988 = vmatpush1.msra.mxu0 %v1963
    %1989 = vmatprep.subr.mxu0 0.0
    %1990 = vmatpush1.msra.mxu0 %v1964
    %1991 = vmatprep.subr.mxu0 0.0
    %1992 = vmatpush1.msra.mxu0 %v1965
    %1993 = vmatprep.subr.mxu0 0.0
    %1994 = vmatpush1.msra.mxu0 %v1966
    %1995 = vmatprep.subr.mxu0 0.0
    %1996 = vmatpush1.msra.mxu0 %v1967
    %1997 = vmatprep.subr.mxu0 0.0
    %1998 = vmatpush1.msra.mxu0 %v1968
    %1999 = vmatprep.subr.mxu0 0.0
    %2000 = vmatpush1.msra.mxu0 %v1969
    %2001 = vmatprep.subr.mxu0 0.0
    %2002 = vmatpush1.msra.mxu0 %v1975
    %2003 = vmatprep.subr.mxu0 0.0
    %2004 = vmatpush1.msra.mxu0 0.0
    %2005 = vmatprep.subr.mxu0 0.0
    %2006 = vmatpush1.msra.mxu0 0.0
    %2007 = vmatprep.subr.mxu0 0.0
    %2008 = vmatpush1.msra.mxu0 0.0
    %2009 = vmatprep.subr.mxu0 0.0
    %2010 = vmatpush1.msra.mxu0 0.0
    %2011 = vmatprep.subr.mxu0 0.0
    %2012 = vmatpush1.msra.mxu0 0.0
    %2013 = vmatprep.subr.mxu0 0.0
    %2014 = vmatpush1.msra.mxu0 0.0
    %2015 = vmatprep.subr.mxu0 0.0
    %2016 = vmatpush1.msra.mxu0 0.0
    %2017 = vmatprep.subr.mxu0 0.0
    %2018 = vmatpush1.msra.mxu0 0.0
    %2019 = vmatprep.subr.mxu0 0.0
    %2020 = vmatpush1.msra.mxu0 0.0
    %2021 = vmatprep.subr.mxu0 0.0
    %2022 = vmatpush1.msra.mxu0 0.0
    %2023 = vmatprep.subr.mxu0 0.0
    %2024 = vmatpush1.msra.mxu0 0.0
    %2025 = vmatprep.subr.mxu0 0.0
    %2026 = vmatpush1.msra.mxu0 0.0
    %2027 = vmatprep.subr.mxu0 0.0
    %2028 = vmatpush1.msra.mxu0 0.0
    %2029 = vmatprep.subr.mxu0 0.0
    %2030 = vmatpush1.msra.mxu0 0.0
    %2031 = vmatprep.subr.mxu0 0.0
    %2032 = vmatpush1.msra.mxu0 0.0
    %2033 = vmatprep.subr.mxu0 0.0
    %2034 = vmatpush1.msra.mxu0 0.0
    %2035 = vmatprep.subr.mxu0 0.0
    %2036 = vmatpush1.msra.mxu0 0.0
    %2037 = vmatprep.subr.mxu0 0.0
    %2038 = vmatpush1.msra.mxu0 0.0
    %2039 = vmatprep.subr.mxu0 0.0
    %2040 = vmatpush1.msra.mxu0 0.0
    %2041 = vmatprep.mubr.f32.mxu0 0.0
    %2042 = vmatmul.mubr.f32.gmra.mrb[0].mxu0 %v1972
    %v2043 = vpop.f32.mrb[0].mxu0
    %v2044 = vadd.f32 0.0, %v2043
    %v2045 = vpop.f32.mrb[0].mxu0
    %2046 = vdwg.mxu0
    %v2047 = vadd.f32 %v1957, %v2044
    %v2048 = vxor.u32 %v2047, 2147483648
    %v2049 = vmul.f32 %v2048, 1.442695
    %v2050 = vpow.pop %v2049
    %v2051 = vadd.f32 %v2050, 1.0
    %v2052 = vrcp.pop %v2051
    %v2053 = vmul.f32 1.0, %v2052
    %s2054 = scalar_lea.vmem %s0, 42
    %v2055 = vld [vmem:[%s2054] sm:$0x3]
    %v2056 = vld [vmem:[%s118] sm:$0xff]
    %v2057 = vld [vmem:[%s118 + $0x8] sm:$0xff]
    %v2058 = vld [vmem:[%s118 + $0x10] sm:$0xff]
    %v2059 = vld [vmem:[%s118 + $0x18] sm:$0xff]
    %v2060 = vld [vmem:[%s118 + $0x20] sm:$0xff]
    %v2061 = vld [vmem:[%s118 + $0x28] sm:$0xff]
    %v2062 = vld [vmem:[%s118 + $0x30] sm:$0xff]
    %v2063 = vld [vmem:[%s118 + $0x38] sm:$0xff]
    %v2064 = vld [vmem:[%s118 + $0x40] sm:$0xff]
    %v2065 = vld [vmem:[%s118 + $0x48] sm:$0xff]
    %v2066 = vld [vmem:[%s118 + $0x50] sm:$0xff]
    %v2067 = vld [vmem:[%s118 + $0x58] sm:$0xff]
    %v2068 = vld [vmem:[%s118 + $0x60] sm:$0xf]
    %v2070 = vsel %vm35, %v2068, 0
    %2072 = vmatprep.subr.mxu0 0.0
    %2073 = vmatpush1.msra.mxu0 %v2056
    %2074 = vmatprep.subr.mxu0 0.0
    %2075 = vmatpush1.msra.mxu0 %v2057
    %2076 = vmatprep.subr.mxu0 0.0
    %2077 = vmatpush1.msra.mxu0 %v2058
    %2078 = vmatprep.subr.mxu0 0.0
    %2079 = vmatpush1.msra.mxu0 %v2059
    %2080 = vmatprep.subr.mxu0 0.0
    %2081 = vmatpush1.msra.mxu0 %v2060
    %2082 = vmatprep.subr.mxu0 0.0
    %2083 = vmatpush1.msra.mxu0 %v2061
    %2084 = vmatprep.subr.mxu0 0.0
    %2085 = vmatpush1.msra.mxu0 %v2062
    %2086 = vmatprep.subr.mxu0 0.0
    %2087 = vmatpush1.msra.mxu0 %v2063
    %2088 = vmatprep.subr.mxu0 0.0
    %2089 = vmatpush1.msra.mxu0 %v2064
    %2090 = vmatprep.subr.mxu0 0.0
    %2091 = vmatpush1.msra.mxu0 %v2065
    %2092 = vmatprep.subr.mxu0 0.0
    %2093 = vmatpush1.msra.mxu0 %v2066
    %2094 = vmatprep.subr.mxu0 0.0
    %2095 = vmatpush1.msra.mxu0 %v2067
    %2096 = vmatprep.subr.mxu0 0.0
    %2097 = vmatpush1.msra.mxu0 %v2070
    %2098 = vmatprep.subr.mxu0 0.0
    %2099 = vmatpush1.msra.mxu0 0.0
    %2100 = vmatprep.subr.mxu0 0.0
    %2101 = vmatpush1.msra.mxu0 0.0
    %2102 = vmatprep.subr.mxu0 0.0
    %2103 = vmatpush1.msra.mxu0 0.0
    %2104 = vmatprep.subr.mxu0 0.0
    %2105 = vmatpush1.msra.mxu0 0.0
    %2106 = vmatprep.subr.mxu0 0.0
    %2107 = vmatpush1.msra.mxu0 0.0
    %2108 = vmatprep.subr.mxu0 0.0
    %2109 = vmatpush1.msra.mxu0 0.0
    %2110 = vmatprep.subr.mxu0 0.0
    %2111 = vmatpush1.msra.mxu0 0.0
    %2112 = vmatprep.subr.mxu0 0.0
    %2113 = vmatpush1.msra.mxu0 0.0
    %2114 = vmatprep.subr.mxu0 0.0
    %2115 = vmatpush1.msra.mxu0 0.0
    %2116 = vmatprep.subr.mxu0 0.0
    %2117 = vmatpush1.msra.mxu0 0.0
    %2118 = vmatprep.subr.mxu0 0.0
    %2119 = vmatpush1.msra.mxu0 0.0
    %2120 = vmatprep.subr.mxu0 0.0
    %2121 = vmatpush1.msra.mxu0 0.0
    %2122 = vmatprep.subr.mxu0 0.0
    %2123 = vmatpush1.msra.mxu0 0.0
    %2124 = vmatprep.subr.mxu0 0.0
    %2125 = vmatpush1.msra.mxu0 0.0
    %2126 = vmatprep.subr.mxu0 0.0
    %2127 = vmatpush1.msra.mxu0 0.0
    %2128 = vmatprep.subr.mxu0 0.0
    %2129 = vmatpush1.msra.mxu0 0.0
    %2130 = vmatprep.subr.mxu0 0.0
    %2131 = vmatpush1.msra.mxu0 0.0
    %2132 = vmatprep.subr.mxu0 0.0
    %2133 = vmatpush1.msra.mxu0 0.0
    %2134 = vmatprep.subr.mxu0 0.0
    %2135 = vmatpush1.msra.mxu0 0.0
    %2136 = vmatprep.mubr.f32.mxu0 0.0
    %2137 = vmatmul.mubr.f32.gmra.mrb[0].mxu0 %v1972
    %v2138 = vpop.f32.mrb[0].mxu0
    %v2139 = vadd.f32 0.0, %v2138
    %v2140 = vpop.f32.mrb[0].mxu0
    %2141 = vdwg.mxu0
    %v2142 = vadd.f32 %v2055, %v2139
    %v2143 = vxor.u32 %v2142, 2147483648
    %v2144 = vmul.f32 %v2143, 1.442695
    %v2145 = vpow.pop %v2144
    %v2146 = vadd.f32 %v2145, 1.0
    %v2147 = vrcp.pop %v2146
    %v2148 = vmul.f32 1.0, %v2147
    %s2149 = scalar_lea.vmem %s0, 44
    %v2150 = vld [vmem:[%s2149] sm:$0x3]
    %v2151 = vld [vmem:[%s214] sm:$0xff]
    %v2152 = vld [vmem:[%s214 + $0x8] sm:$0xff]
    %v2153 = vld [vmem:[%s214 + $0x10] sm:$0xff]
    %v2154 = vld [vmem:[%s214 + $0x18] sm:$0xff]
    %v2155 = vld [vmem:[%s214 + $0x20] sm:$0xff]
    %v2156 = vld [vmem:[%s214 + $0x28] sm:$0xff]
    %v2157 = vld [vmem:[%s214 + $0x30] sm:$0xff]
    %v2158 = vld [vmem:[%s214 + $0x38] sm:$0xff]
    %v2159 = vld [vmem:[%s214 + $0x40] sm:$0xff]
    %v2160 = vld [vmem:[%s214 + $0x48] sm:$0xff]
    %v2161 = vld [vmem:[%s214 + $0x50] sm:$0xff]
    %v2162 = vld [vmem:[%s214 + $0x58] sm:$0xff]
    %v2163 = vld [vmem:[%s214 + $0x60] sm:$0xf]
    %v2165 = vsel %vm35, %v2163, 0
    %2167 = vmatprep.subr.mxu0 0.0
    %2168 = vmatpush1.msra.mxu0 %v2151
    %2169 = vmatprep.subr.mxu0 0.0
    %2170 = vmatpush1.msra.mxu0 %v2152
    %2171 = vmatprep.subr.mxu0 0.0
    %2172 = vmatpush1.msra.mxu0 %v2153
    %2173 = vmatprep.subr.mxu0 0.0
    %2174 = vmatpush1.msra.mxu0 %v2154
    %2175 = vmatprep.subr.mxu0 0.0
    %2176 = vmatpush1.msra.mxu0 %v2155
    %2177 = vmatprep.subr.mxu0 0.0
    %2178 = vmatpush1.msra.mxu0 %v2156
    %2179 = vmatprep.subr.mxu0 0.0
    %2180 = vmatpush1.msra.mxu0 %v2157
    %2181 = vmatprep.subr.mxu0 0.0
    %2182 = vmatpush1.msra.mxu0 %v2158
    %2183 = vmatprep.subr.mxu0 0.0
    %2184 = vmatpush1.msra.mxu0 %v2159
    %2185 = vmatprep.subr.mxu0 0.0
    %2186 = vmatpush1.msra.mxu0 %v2160
    %2187 = vmatprep.subr.mxu0 0.0
    %2188 = vmatpush1.msra.mxu0 %v2161
    %2189 = vmatprep.subr.mxu0 0.0
    %2190 = vmatpush1.msra.mxu0 %v2162
    %2191 = vmatprep.subr.mxu0 0.0
    %2192 = vmatpush1.msra.mxu0 %v2165
    %2193 = vmatprep.subr.mxu0 0.0
    %2194 = vmatpush1.msra.mxu0 0.0
    %2195 = vmatprep.subr.mxu0 0.0
    %2196 = vmatpush1.msra.mxu0 0.0
    %2197 = vmatprep.subr.mxu0 0.0
    %2198 = vmatpush1.msra.mxu0 0.0
    %2199 = vmatprep.subr.mxu0 0.0
    %2200 = vmatpush1.msra.mxu0 0.0
    %2201 = vmatprep.subr.mxu0 0.0
    %2202 = vmatpush1.msra.mxu0 0.0
    %2203 = vmatprep.subr.mxu0 0.0
    %2204 = vmatpush1.msra.mxu0 0.0
    %2205 = vmatprep.subr.mxu0 0.0
    %2206 = vmatpush1.msra.mxu0 0.0
    %2207 = vmatprep.subr.mxu0 0.0
    %2208 = vmatpush1.msra.mxu0 0.0
    %2209 = vmatprep.subr.mxu0 0.0
    %2210 = vmatpush1.msra.mxu0 0.0
    %2211 = vmatprep.subr.mxu0 0.0
    %2212 = vmatpush1.msra.mxu0 0.0
    %2213 = vmatprep.subr.mxu0 0.0
    %2214 = vmatpush1.msra.mxu0 0.0
    %2215 = vmatprep.subr.mxu0 0.0
    %2216 = vmatpush1.msra.mxu0 0.0
    %2217 = vmatprep.subr.mxu0 0.0
    %2218 = vmatpush1.msra.mxu0 0.0
    %2219 = vmatprep.subr.mxu0 0.0
    %2220 = vmatpush1.msra.mxu0 0.0
    %2221 = vmatprep.subr.mxu0 0.0
    %2222 = vmatpush1.msra.mxu0 0.0
    %2223 = vmatprep.subr.mxu0 0.0
    %2224 = vmatpush1.msra.mxu0 0.0
    %2225 = vmatprep.subr.mxu0 0.0
    %2226 = vmatpush1.msra.mxu0 0.0
    %2227 = vmatprep.subr.mxu0 0.0
    %2228 = vmatpush1.msra.mxu0 0.0
    %2229 = vmatprep.subr.mxu0 0.0
    %2230 = vmatpush1.msra.mxu0 0.0
    %2231 = vmatprep.mubr.f32.mxu0 0.0
    %2232 = vmatmul.mubr.f32.gmra.mrb[0].mxu0 %v1972
    %v2233 = vpop.f32.mrb[0].mxu0
    %v2234 = vadd.f32 0.0, %v2233
    %v2235 = vpop.f32.mrb[0].mxu0
    %2236 = vdwg.mxu0
    %v2237 = vadd.f32 %v2150, %v2234
    %v2238 = vtanh.pop %v2237
    %s2239 = scalar_lea.vmem %s0, 46
    %v2240 = vld [vmem:[%s2239] sm:$0x3]
    %v2241 = vld [vmem:[%s305] sm:$0xff]
    %v2242 = vld [vmem:[%s305 + $0x8] sm:$0xff]
    %v2243 = vld [vmem:[%s305 + $0x10] sm:$0xff]
    %v2244 = vld [vmem:[%s305 + $0x18] sm:$0xff]
    %v2245 = vld [vmem:[%s305 + $0x20] sm:$0xff]
    %v2246 = vld [vmem:[%s305 + $0x28] sm:$0xff]
    %v2247 = vld [vmem:[%s305 + $0x30] sm:$0xff]
    %v2248 = vld [vmem:[%s305 + $0x38] sm:$0xff]
    %v2249 = vld [vmem:[%s305 + $0x40] sm:$0xff]
    %v2250 = vld [vmem:[%s305 + $0x48] sm:$0xff]
    %v2251 = vld [vmem:[%s305 + $0x50] sm:$0xff]
    %v2252 = vld [vmem:[%s305 + $0x58] sm:$0xff]
    %v2253 = vld [vmem:[%s305 + $0x60] sm:$0xf]
    %v2255 = vsel %vm35, %v2253, 0
    %2257 = vmatprep.subr.mxu0 0.0
    %2258 = vmatpush1.msra.mxu0 %v2241
    %2259 = vmatprep.subr.mxu0 0.0
    %2260 = vmatpush1.msra.mxu0 %v2242
    %2261 = vmatprep.subr.mxu0 0.0
    %2262 = vmatpush1.msra.mxu0 %v2243
    %2263 = vmatprep.subr.mxu0 0.0
    %2264 = vmatpush1.msra.mxu0 %v2244
    %2265 = vmatprep.subr.mxu0 0.0
    %2266 = vmatpush1.msra.mxu0 %v2245
    %2267 = vmatprep.subr.mxu0 0.0
    %2268 = vmatpush1.msra.mxu0 %v2246
    %2269 = vmatprep.subr.mxu0 0.0
    %2270 = vmatpush1.msra.mxu0 %v2247
    %2271 = vmatprep.subr.mxu0 0.0
    %2272 = vmatpush1.msra.mxu0 %v2248
    %2273 = vmatprep.subr.mxu0 0.0
    %2274 = vmatpush1.msra.mxu0 %v2249
    %2275 = vmatprep.subr.mxu0 0.0
    %2276 = vmatpush1.msra.mxu0 %v2250
    %2277 = vmatprep.subr.mxu0 0.0
    %2278 = vmatpush1.msra.mxu0 %v2251
    %2279 = vmatprep.subr.mxu0 0.0
    %2280 = vmatpush1.msra.mxu0 %v2252
    %2281 = vmatprep.subr.mxu0 0.0
    %2282 = vmatpush1.msra.mxu0 %v2255
    %2283 = vmatprep.subr.mxu0 0.0
    %2284 = vmatpush1.msra.mxu0 0.0
    %2285 = vmatprep.subr.mxu0 0.0
    %2286 = vmatpush1.msra.mxu0 0.0
    %2287 = vmatprep.subr.mxu0 0.0
    %2288 = vmatpush1.msra.mxu0 0.0
    %2289 = vmatprep.subr.mxu0 0.0
    %2290 = vmatpush1.msra.mxu0 0.0
    %2291 = vmatprep.subr.mxu0 0.0
    %2292 = vmatpush1.msra.mxu0 0.0
    %2293 = vmatprep.subr.mxu0 0.0
    %2294 = vmatpush1.msra.mxu0 0.0
    %2295 = vmatprep.subr.mxu0 0.0
    %2296 = vmatpush1.msra.mxu0 0.0
    %2297 = vmatprep.subr.mxu0 0.0
    %2298 = vmatpush1.msra.mxu0 0.0
    %2299 = vmatprep.subr.mxu0 0.0
    %2300 = vmatpush1.msra.mxu0 0.0
    %2301 = vmatprep.subr.mxu0 0.0
    %2302 = vmatpush1.msra.mxu0 0.0
    %2303 = vmatprep.subr.mxu0 0.0
    %2304 = vmatpush1.msra.mxu0 0.0
    %2305 = vmatprep.subr.mxu0 0.0
    %2306 = vmatpush1.msra.mxu0 0.0
    %2307 = vmatprep.subr.mxu0 0.0
    %2308 = vmatpush1.msra.mxu0 0.0
    %2309 = vmatprep.subr.mxu0 0.0
    %2310 = vmatpush1.msra.mxu0 0.0
    %2311 = vmatprep.subr.mxu0 0.0
    %2312 = vmatpush1.msra.mxu0 0.0
    %2313 = vmatprep.subr.mxu0 0.0
    %2314 = vmatpush1.msra.mxu0 0.0
    %2315 = vmatprep.subr.mxu0 0.0
    %2316 = vmatpush1.msra.mxu0 0.0
    %2317 = vmatprep.subr.mxu0 0.0
    %2318 = vmatpush1.msra.mxu0 0.0
    %2319 = vmatprep.subr.mxu0 0.0
    %2320 = vmatpush1.msra.mxu0 0.0
    %2321 = vmatprep.mubr.f32.mxu0 0.0
    %2322 = vmatmul.mubr.f32.gmra.mrb[0].mxu0 %v1972
    %v2323 = vpop.f32.mrb[0].mxu0
    %v2324 = vadd.f32 0.0, %v2323
    %v2325 = vpop.f32.mrb[0].mxu0
    %2326 = vdwg.mxu0
    %v2327 = vadd.f32 %v2240, %v2324
    %v2328 = vxor.u32 %v2327, 2147483648
    %v2329 = vmul.f32 %v2328, 1.442695
    %v2330 = vpow.pop %v2329
    %v2331 = vadd.f32 %v2330, 1.0
    %v2332 = vrcp.pop %v2331
    %v2333 = vmul.f32 1.0, %v2332
    %v2334 = vmul.f32 %v2148, %v1955
    %v2335 = vmul.f32 %v2053, %v2238
    %v2336 = vadd.f32 %v2334, %v2335
    %v2337 = vtanh.pop %v2336
    %v2338 = vmul.f32 %v2333, %v2337
    %2339 = vst.msk [vmem:[#allocation3] sm:$0x3] %vm12, %v2336
    %2340 = vst.msk [vmem:[#allocation2] sm:$0x3] %vm12, %v2338
    %v2341 = vld [vmem:[#allocation2] sm:$0x3]
    %v2342 = vld [vmem:[#allocation3] sm:$0x3]
    %s2343 = scalar_lea.vmem %s0, 48
    %v2344 = vld [vmem:[%s2343] sm:$0x3]
    %v2345 = vld [vmem:[%s1] sm:$0xff]
    %v2346 = vld [vmem:[%s1 + $0x8] sm:$0xff]
    %v2347 = vld [vmem:[%s1 + $0x10] sm:$0xff]
    %v2348 = vld [vmem:[%s1 + $0x18] sm:$0xff]
    %v2349 = vld [vmem:[%s1 + $0x20] sm:$0xff]
    %v2350 = vld [vmem:[%s1 + $0x28] sm:$0xff]
    %v2351 = vld [vmem:[%s1 + $0x30] sm:$0xff]
    %v2352 = vld [vmem:[%s1 + $0x38] sm:$0xff]
    %v2353 = vld [vmem:[%s1 + $0x40] sm:$0xff]
    %v2354 = vld [vmem:[%s1 + $0x48] sm:$0xff]
    %v2355 = vld [vmem:[%s1 + $0x50] sm:$0xff]
    %v2356 = vld [vmem:[%s1 + $0x58] sm:$0xff]
    %v2357 = vld [vmem:[%s1 + $0x60] sm:$0xf]
    %v2359 = vsel %vm31, %v2341, 0
    %v2362 = vsel %vm35, %v2357, 0
    %2364 = vmatprep.subr.mxu0 0.0
    %2365 = vmatpush1.msra.mxu0 %v2345
    %2366 = vmatprep.subr.mxu0 0.0
    %2367 = vmatpush1.msra.mxu0 %v2346
    %2368 = vmatprep.subr.mxu0 0.0
    %2369 = vmatpush1.msra.mxu0 %v2347
    %2370 = vmatprep.subr.mxu0 0.0
    %2371 = vmatpush1.msra.mxu0 %v2348
    %2372 = vmatprep.subr.mxu0 0.0
    %2373 = vmatpush1.msra.mxu0 %v2349
    %2374 = vmatprep.subr.mxu0 0.0
    %2375 = vmatpush1.msra.mxu0 %v2350
    %2376 = vmatprep.subr.mxu0 0.0
    %2377 = vmatpush1.msra.mxu0 %v2351
    %2378 = vmatprep.subr.mxu0 0.0
    %2379 = vmatpush1.msra.mxu0 %v2352
    %2380 = vmatprep.subr.mxu0 0.0
    %2381 = vmatpush1.msra.mxu0 %v2353
    %2382 = vmatprep.subr.mxu0 0.0
    %2383 = vmatpush1.msra.mxu0 %v2354
    %2384 = vmatprep.subr.mxu0 0.0
    %2385 = vmatpush1.msra.mxu0 %v2355
    %2386 = vmatprep.subr.mxu0 0.0
    %2387 = vmatpush1.msra.mxu0 %v2356
    %2388 = vmatprep.subr.mxu0 0.0
    %2389 = vmatpush1.msra.mxu0 %v2362
    %2390 = vmatprep.subr.mxu0 0.0
    %2391 = vmatpush1.msra.mxu0 0.0
    %2392 = vmatprep.subr.mxu0 0.0
    %2393 = vmatpush1.msra.mxu0 0.0
    %2394 = vmatprep.subr.mxu0 0.0
    %2395 = vmatpush1.msra.mxu0 0.0
    %2396 = vmatprep.subr.mxu0 0.0
    %2397 = vmatpush1.msra.mxu0 0.0
    %2398 = vmatprep.subr.mxu0 0.0
    %2399 = vmatpush1.msra.mxu0 0.0
    %2400 = vmatprep.subr.mxu0 0.0
    %2401 = vmatpush1.msra.mxu0 0.0
    %2402 = vmatprep.subr.mxu0 0.0
    %2403 = vmatpush1.msra.mxu0 0.0
    %2404 = vmatprep.subr.mxu0 0.0
    %2405 = vmatpush1.msra.mxu0 0.0
    %2406 = vmatprep.subr.mxu0 0.0
    %2407 = vmatpush1.msra.mxu0 0.0
    %2408 = vmatprep.subr.mxu0 0.0
    %2409 = vmatpush1.msra.mxu0 0.0
    %2410 = vmatprep.subr.mxu0 0.0
    %2411 = vmatpush1.msra.mxu0 0.0
    %2412 = vmatprep.subr.mxu0 0.0
    %2413 = vmatpush1.msra.mxu0 0.0
    %2414 = vmatprep.subr.mxu0 0.0
    %2415 = vmatpush1.msra.mxu0 0.0
    %2416 = vmatprep.subr.mxu0 0.0
    %2417 = vmatpush1.msra.mxu0 0.0
    %2418 = vmatprep.subr.mxu0 0.0
    %2419 = vmatpush1.msra.mxu0 0.0
    %2420 = vmatprep.subr.mxu0 0.0
    %2421 = vmatpush1.msra.mxu0 0.0
    %2422 = vmatprep.subr.mxu0 0.0
    %2423 = vmatpush1.msra.mxu0 0.0
    %2424 = vmatprep.subr.mxu0 0.0
    %2425 = vmatpush1.msra.mxu0 0.0
    %2426 = vmatprep.subr.mxu0 0.0
    %2427 = vmatpush1.msra.mxu0 0.0
    %2428 = vmatprep.mubr.f32.mxu0 0.0
    %2429 = vmatmul.mubr.f32.gmra.mrb[0].mxu0 %v2359
    %v2430 = vpop.f32.mrb[0].mxu0
    %v2431 = vadd.f32 0.0, %v2430
    %v2432 = vpop.f32.mrb[0].mxu0
    %2433 = vdwg.mxu0
    %v2434 = vadd.f32 %v2344, %v2431
    %v2435 = vxor.u32 %v2434, 2147483648
    %v2436 = vmul.f32 %v2435, 1.442695
    %v2437 = vpow.pop %v2436
    %v2438 = vadd.f32 %v2437, 1.0
    %v2439 = vrcp.pop %v2438
    %v2440 = vmul.f32 1.0, %v2439
    %s2441 = scalar_lea.vmem %s0, 50
    %v2442 = vld [vmem:[%s2441] sm:$0x3]
    %v2443 = vld [vmem:[%s118] sm:$0xff]
    %v2444 = vld [vmem:[%s118 + $0x8] sm:$0xff]
    %v2445 = vld [vmem:[%s118 + $0x10] sm:$0xff]
    %v2446 = vld [vmem:[%s118 + $0x18] sm:$0xff]
    %v2447 = vld [vmem:[%s118 + $0x20] sm:$0xff]
    %v2448 = vld [vmem:[%s118 + $0x28] sm:$0xff]
    %v2449 = vld [vmem:[%s118 + $0x30] sm:$0xff]
    %v2450 = vld [vmem:[%s118 + $0x38] sm:$0xff]
    %v2451 = vld [vmem:[%s118 + $0x40] sm:$0xff]
    %v2452 = vld [vmem:[%s118 + $0x48] sm:$0xff]
    %v2453 = vld [vmem:[%s118 + $0x50] sm:$0xff]
    %v2454 = vld [vmem:[%s118 + $0x58] sm:$0xff]
    %v2455 = vld [vmem:[%s118 + $0x60] sm:$0xf]
    %v2457 = vsel %vm35, %v2455, 0
    %2459 = vmatprep.subr.mxu0 0.0
    %2460 = vmatpush1.msra.mxu0 %v2443
    %2461 = vmatprep.subr.mxu0 0.0
    %2462 = vmatpush1.msra.mxu0 %v2444
    %2463 = vmatprep.subr.mxu0 0.0
    %2464 = vmatpush1.msra.mxu0 %v2445
    %2465 = vmatprep.subr.mxu0 0.0
    %2466 = vmatpush1.msra.mxu0 %v2446
    %2467 = vmatprep.subr.mxu0 0.0
    %2468 = vmatpush1.msra.mxu0 %v2447
    %2469 = vmatprep.subr.mxu0 0.0
    %2470 = vmatpush1.msra.mxu0 %v2448
    %2471 = vmatprep.subr.mxu0 0.0
    %2472 = vmatpush1.msra.mxu0 %v2449
    %2473 = vmatprep.subr.mxu0 0.0
    %2474 = vmatpush1.msra.mxu0 %v2450
    %2475 = vmatprep.subr.mxu0 0.0
    %2476 = vmatpush1.msra.mxu0 %v2451
    %2477 = vmatprep.subr.mxu0 0.0
    %2478 = vmatpush1.msra.mxu0 %v2452
    %2479 = vmatprep.subr.mxu0 0.0
    %2480 = vmatpush1.msra.mxu0 %v2453
    %2481 = vmatprep.subr.mxu0 0.0
    %2482 = vmatpush1.msra.mxu0 %v2454
    %2483 = vmatprep.subr.mxu0 0.0
    %2484 = vmatpush1.msra.mxu0 %v2457
    %2485 = vmatprep.subr.mxu0 0.0
    %2486 = vmatpush1.msra.mxu0 0.0
    %2487 = vmatprep.subr.mxu0 0.0
    %2488 = vmatpush1.msra.mxu0 0.0
    %2489 = vmatprep.subr.mxu0 0.0
    %2490 = vmatpush1.msra.mxu0 0.0
    %2491 = vmatprep.subr.mxu0 0.0
    %2492 = vmatpush1.msra.mxu0 0.0
    %2493 = vmatprep.subr.mxu0 0.0
    %2494 = vmatpush1.msra.mxu0 0.0
    %2495 = vmatprep.subr.mxu0 0.0
    %2496 = vmatpush1.msra.mxu0 0.0
    %2497 = vmatprep.subr.mxu0 0.0
    %2498 = vmatpush1.msra.mxu0 0.0
    %2499 = vmatprep.subr.mxu0 0.0
    %2500 = vmatpush1.msra.mxu0 0.0
    %2501 = vmatprep.subr.mxu0 0.0
    %2502 = vmatpush1.msra.mxu0 0.0
    %2503 = vmatprep.subr.mxu0 0.0
    %2504 = vmatpush1.msra.mxu0 0.0
    %2505 = vmatprep.subr.mxu0 0.0
    %2506 = vmatpush1.msra.mxu0 0.0
    %2507 = vmatprep.subr.mxu0 0.0
    %2508 = vmatpush1.msra.mxu0 0.0
    %2509 = vmatprep.subr.mxu0 0.0
    %2510 = vmatpush1.msra.mxu0 0.0
    %2511 = vmatprep.subr.mxu0 0.0
    %2512 = vmatpush1.msra.mxu0 0.0
    %2513 = vmatprep.subr.mxu0 0.0
    %2514 = vmatpush1.msra.mxu0 0.0
    %2515 = vmatprep.subr.mxu0 0.0
    %2516 = vmatpush1.msra.mxu0 0.0
    %2517 = vmatprep.subr.mxu0 0.0
    %2518 = vmatpush1.msra.mxu0 0.0
    %2519 = vmatprep.subr.mxu0 0.0
    %2520 = vmatpush1.msra.mxu0 0.0
    %2521 = vmatprep.subr.mxu0 0.0
    %2522 = vmatpush1.msra.mxu0 0.0
    %2523 = vmatprep.mubr.f32.mxu0 0.0
    %2524 = vmatmul.mubr.f32.gmra.mrb[0].mxu0 %v2359
    %v2525 = vpop.f32.mrb[0].mxu0
    %v2526 = vadd.f32 0.0, %v2525
    %v2527 = vpop.f32.mrb[0].mxu0
    %2528 = vdwg.mxu0
    %v2529 = vadd.f32 %v2442, %v2526
    %v2530 = vxor.u32 %v2529, 2147483648
    %v2531 = vmul.f32 %v2530, 1.442695
    %v2532 = vpow.pop %v2531
    %v2533 = vadd.f32 %v2532, 1.0
    %v2534 = vrcp.pop %v2533
    %v2535 = vmul.f32 1.0, %v2534
    %s2536 = scalar_lea.vmem %s0, 52
    %v2537 = vld [vmem:[%s2536] sm:$0x3]
    %v2538 = vld [vmem:[%s214] sm:$0xff]
    %v2539 = vld [vmem:[%s214 + $0x8] sm:$0xff]
    %v2540 = vld [vmem:[%s214 + $0x10] sm:$0xff]
    %v2541 = vld [vmem:[%s214 + $0x18] sm:$0xff]
    %v2542 = vld [vmem:[%s214 + $0x20] sm:$0xff]
    %v2543 = vld [vmem:[%s214 + $0x28] sm:$0xff]
    %v2544 = vld [vmem:[%s214 + $0x30] sm:$0xff]
    %v2545 = vld [vmem:[%s214 + $0x38] sm:$0xff]
    %v2546 = vld [vmem:[%s214 + $0x40] sm:$0xff]
    %v2547 = vld [vmem:[%s214 + $0x48] sm:$0xff]
    %v2548 = vld [vmem:[%s214 + $0x50] sm:$0xff]
    %v2549 = vld [vmem:[%s214 + $0x58] sm:$0xff]
    %v2550 = vld [vmem:[%s214 + $0x60] sm:$0xf]
    %v2552 = vsel %vm35, %v2550, 0
    %2554 = vmatprep.subr.mxu0 0.0
    %2555 = vmatpush1.msra.mxu0 %v2538
    %2556 = vmatprep.subr.mxu0 0.0
    %2557 = vmatpush1.msra.mxu0 %v2539
    %2558 = vmatprep.subr.mxu0 0.0
    %2559 = vmatpush1.msra.mxu0 %v2540
    %2560 = vmatprep.subr.mxu0 0.0
    %2561 = vmatpush1.msra.mxu0 %v2541
    %2562 = vmatprep.subr.mxu0 0.0
    %2563 = vmatpush1.msra.mxu0 %v2542
    %2564 = vmatprep.subr.mxu0 0.0
    %2565 = vmatpush1.msra.mxu0 %v2543
    %2566 = vmatprep.subr.mxu0 0.0
    %2567 = vmatpush1.msra.mxu0 %v2544
    %2568 = vmatprep.subr.mxu0 0.0
    %2569 = vmatpush1.msra.mxu0 %v2545
    %2570 = vmatprep.subr.mxu0 0.0
    %2571 = vmatpush1.msra.mxu0 %v2546
    %2572 = vmatprep.subr.mxu0 0.0
    %2573 = vmatpush1.msra.mxu0 %v2547
    %2574 = vmatprep.subr.mxu0 0.0
    %2575 = vmatpush1.msra.mxu0 %v2548
    %2576 = vmatprep.subr.mxu0 0.0
    %2577 = vmatpush1.msra.mxu0 %v2549
    %2578 = vmatprep.subr.mxu0 0.0
    %2579 = vmatpush1.msra.mxu0 %v2552
    %2580 = vmatprep.subr.mxu0 0.0
    %2581 = vmatpush1.msra.mxu0 0.0
    %2582 = vmatprep.subr.mxu0 0.0
    %2583 = vmatpush1.msra.mxu0 0.0
    %2584 = vmatprep.subr.mxu0 0.0
    %2585 = vmatpush1.msra.mxu0 0.0
    %2586 = vmatprep.subr.mxu0 0.0
    %2587 = vmatpush1.msra.mxu0 0.0
    %2588 = vmatprep.subr.mxu0 0.0
    %2589 = vmatpush1.msra.mxu0 0.0
    %2590 = vmatprep.subr.mxu0 0.0
    %2591 = vmatpush1.msra.mxu0 0.0
    %2592 = vmatprep.subr.mxu0 0.0
    %2593 = vmatpush1.msra.mxu0 0.0
    %2594 = vmatprep.subr.mxu0 0.0
    %2595 = vmatpush1.msra.mxu0 0.0
    %2596 = vmatprep.subr.mxu0 0.0
    %2597 = vmatpush1.msra.mxu0 0.0
    %2598 = vmatprep.subr.mxu0 0.0
    %2599 = vmatpush1.msra.mxu0 0.0
    %2600 = vmatprep.subr.mxu0 0.0
    %2601 = vmatpush1.msra.mxu0 0.0
    %2602 = vmatprep.subr.mxu0 0.0
    %2603 = vmatpush1.msra.mxu0 0.0
    %2604 = vmatprep.subr.mxu0 0.0
    %2605 = vmatpush1.msra.mxu0 0.0
    %2606 = vmatprep.subr.mxu0 0.0
    %2607 = vmatpush1.msra.mxu0 0.0
    %2608 = vmatprep.subr.mxu0 0.0
    %2609 = vmatpush1.msra.mxu0 0.0
    %2610 = vmatprep.subr.mxu0 0.0
    %2611 = vmatpush1.msra.mxu0 0.0
    %2612 = vmatprep.subr.mxu0 0.0
    %2613 = vmatpush1.msra.mxu0 0.0
    %2614 = vmatprep.subr.mxu0 0.0
    %2615 = vmatpush1.msra.mxu0 0.0
    %2616 = vmatprep.subr.mxu0 0.0
    %2617 = vmatpush1.msra.mxu0 0.0
    %2618 = vmatprep.mubr.f32.mxu0 0.0
    %2619 = vmatmul.mubr.f32.gmra.mrb[0].mxu0 %v2359
    %v2620 = vpop.f32.mrb[0].mxu0
    %v2621 = vadd.f32 0.0, %v2620
    %v2622 = vpop.f32.mrb[0].mxu0
    %2623 = vdwg.mxu0
    %v2624 = vadd.f32 %v2537, %v2621
    %v2625 = vtanh.pop %v2624
    %s2626 = scalar_lea.vmem %s0, 54
    %v2627 = vld [vmem:[%s2626] sm:$0x3]
    %v2628 = vld [vmem:[%s305] sm:$0xff]
    %v2629 = vld [vmem:[%s305 + $0x8] sm:$0xff]
    %v2630 = vld [vmem:[%s305 + $0x10] sm:$0xff]
    %v2631 = vld [vmem:[%s305 + $0x18] sm:$0xff]
    %v2632 = vld [vmem:[%s305 + $0x20] sm:$0xff]
    %v2633 = vld [vmem:[%s305 + $0x28] sm:$0xff]
    %v2634 = vld [vmem:[%s305 + $0x30] sm:$0xff]
    %v2635 = vld [vmem:[%s305 + $0x38] sm:$0xff]
    %v2636 = vld [vmem:[%s305 + $0x40] sm:$0xff]
    %v2637 = vld [vmem:[%s305 + $0x48] sm:$0xff]
    %v2638 = vld [vmem:[%s305 + $0x50] sm:$0xff]
    %v2639 = vld [vmem:[%s305 + $0x58] sm:$0xff]
    %v2640 = vld [vmem:[%s305 + $0x60] sm:$0xf]
    %v2642 = vsel %vm35, %v2640, 0
    %2644 = vmatprep.subr.mxu0 0.0
    %2645 = vmatpush1.msra.mxu0 %v2628
    %2646 = vmatprep.subr.mxu0 0.0
    %2647 = vmatpush1.msra.mxu0 %v2629
    %2648 = vmatprep.subr.mxu0 0.0
    %2649 = vmatpush1.msra.mxu0 %v2630
    %2650 = vmatprep.subr.mxu0 0.0
    %2651 = vmatpush1.msra.mxu0 %v2631
    %2652 = vmatprep.subr.mxu0 0.0
    %2653 = vmatpush1.msra.mxu0 %v2632
    %2654 = vmatprep.subr.mxu0 0.0
    %2655 = vmatpush1.msra.mxu0 %v2633
    %2656 = vmatprep.subr.mxu0 0.0
    %2657 = vmatpush1.msra.mxu0 %v2634
    %2658 = vmatprep.subr.mxu0 0.0
    %2659 = vmatpush1.msra.mxu0 %v2635
    %2660 = vmatprep.subr.mxu0 0.0
    %2661 = vmatpush1.msra.mxu0 %v2636
    %2662 = vmatprep.subr.mxu0 0.0
    %2663 = vmatpush1.msra.mxu0 %v2637
    %2664 = vmatprep.subr.mxu0 0.0
    %2665 = vmatpush1.msra.mxu0 %v2638
    %2666 = vmatprep.subr.mxu0 0.0
    %2667 = vmatpush1.msra.mxu0 %v2639
    %2668 = vmatprep.subr.mxu0 0.0
    %2669 = vmatpush1.msra.mxu0 %v2642
    %2670 = vmatprep.subr.mxu0 0.0
    %2671 = vmatpush1.msra.mxu0 0.0
    %2672 = vmatprep.subr.mxu0 0.0
    %2673 = vmatpush1.msra.mxu0 0.0
    %2674 = vmatprep.subr.mxu0 0.0
    %2675 = vmatpush1.msra.mxu0 0.0
    %2676 = vmatprep.subr.mxu0 0.0
    %2677 = vmatpush1.msra.mxu0 0.0
    %2678 = vmatprep.subr.mxu0 0.0
    %2679 = vmatpush1.msra.mxu0 0.0
    %2680 = vmatprep.subr.mxu0 0.0
    %2681 = vmatpush1.msra.mxu0 0.0
    %2682 = vmatprep.subr.mxu0 0.0
    %2683 = vmatpush1.msra.mxu0 0.0
    %2684 = vmatprep.subr.mxu0 0.0
    %2685 = vmatpush1.msra.mxu0 0.0
    %2686 = vmatprep.subr.mxu0 0.0
    %2687 = vmatpush1.msra.mxu0 0.0
    %2688 = vmatprep.subr.mxu0 0.0
    %2689 = vmatpush1.msra.mxu0 0.0
    %2690 = vmatprep.subr.mxu0 0.0
    %2691 = vmatpush1.msra.mxu0 0.0
    %2692 = vmatprep.subr.mxu0 0.0
    %2693 = vmatpush1.msra.mxu0 0.0
    %2694 = vmatprep.subr.mxu0 0.0
    %2695 = vmatpush1.msra.mxu0 0.0
    %2696 = vmatprep.subr.mxu0 0.0
    %2697 = vmatpush1.msra.mxu0 0.0
    %2698 = vmatprep.subr.mxu0 0.0
    %2699 = vmatpush1.msra.mxu0 0.0
    %2700 = vmatprep.subr.mxu0 0.0
    %2701 = vmatpush1.msra.mxu0 0.0
    %2702 = vmatprep.subr.mxu0 0.0
    %2703 = vmatpush1.msra.mxu0 0.0
    %2704 = vmatprep.subr.mxu0 0.0
    %2705 = vmatpush1.msra.mxu0 0.0
    %2706 = vmatprep.subr.mxu0 0.0
    %2707 = vmatpush1.msra.mxu0 0.0
    %2708 = vmatprep.mubr.f32.mxu0 0.0
    %2709 = vmatmul.mubr.f32.gmra.mrb[0].mxu0 %v2359
    %v2710 = vpop.f32.mrb[0].mxu0
    %v2711 = vadd.f32 0.0, %v2710
    %v2712 = vpop.f32.mrb[0].mxu0
    %2713 = vdwg.mxu0
    %v2714 = vadd.f32 %v2627, %v2711
    %v2715 = vxor.u32 %v2714, 2147483648
    %v2716 = vmul.f32 %v2715, 1.442695
    %v2717 = vpow.pop %v2716
    %v2718 = vadd.f32 %v2717, 1.0
    %v2719 = vrcp.pop %v2718
    %v2720 = vmul.f32 1.0, %v2719
    %v2721 = vmul.f32 %v2535, %v2342
    %v2722 = vmul.f32 %v2440, %v2625
    %v2723 = vadd.f32 %v2721, %v2722
    %v2724 = vtanh.pop %v2723
    %v2725 = vmul.f32 %v2720, %v2724
    %2726 = vst.msk [vmem:[#allocation3] sm:$0x3] %vm12, %v2723
    %2727 = vst.msk [vmem:[#allocation2] sm:$0x3] %vm12, %v2725
    %v2728 = vld [vmem:[#allocation2] sm:$0x3]
    %v2729 = vld [vmem:[#allocation3] sm:$0x3]
    %s2730 = scalar_lea.vmem %s0, 56
    %v2731 = vld [vmem:[%s2730] sm:$0x3]
    %v2732 = vld [vmem:[%s1] sm:$0xff]
    %v2733 = vld [vmem:[%s1 + $0x8] sm:$0xff]
    %v2734 = vld [vmem:[%s1 + $0x10] sm:$0xff]
    %v2735 = vld [vmem:[%s1 + $0x18] sm:$0xff]
    %v2736 = vld [vmem:[%s1 + $0x20] sm:$0xff]
    %v2737 = vld [vmem:[%s1 + $0x28] sm:$0xff]
    %v2738 = vld [vmem:[%s1 + $0x30] sm:$0xff]
    %v2739 = vld [vmem:[%s1 + $0x38] sm:$0xff]
    %v2740 = vld [vmem:[%s1 + $0x40] sm:$0xff]
    %v2741 = vld [vmem:[%s1 + $0x48] sm:$0xff]
    %v2742 = vld [vmem:[%s1 + $0x50] sm:$0xff]
    %v2743 = vld [vmem:[%s1 + $0x58] sm:$0xff]
    %v2744 = vld [vmem:[%s1 + $0x60] sm:$0xf]
    %v2746 = vsel %vm31, %v2728, 0
    %v2749 = vsel %vm35, %v2744, 0
    %2751 = vmatprep.subr.mxu0 0.0
    %2752 = vmatpush1.msra.mxu0 %v2732
    %2753 = vmatprep.subr.mxu0 0.0
    %2754 = vmatpush1.msra.mxu0 %v2733
    %2755 = vmatprep.subr.mxu0 0.0
    %2756 = vmatpush1.msra.mxu0 %v2734
    %2757 = vmatprep.subr.mxu0 0.0
    %2758 = vmatpush1.msra.mxu0 %v2735
    %2759 = vmatprep.subr.mxu0 0.0
    %2760 = vmatpush1.msra.mxu0 %v2736
    %2761 = vmatprep.subr.mxu0 0.0
    %2762 = vmatpush1.msra.mxu0 %v2737
    %2763 = vmatprep.subr.mxu0 0.0
    %2764 = vmatpush1.msra.mxu0 %v2738
    %2765 = vmatprep.subr.mxu0 0.0
    %2766 = vmatpush1.msra.mxu0 %v2739
    %2767 = vmatprep.subr.mxu0 0.0
    %2768 = vmatpush1.msra.mxu0 %v2740
    %2769 = vmatprep.subr.mxu0 0.0
    %2770 = vmatpush1.msra.mxu0 %v2741
    %2771 = vmatprep.subr.mxu0 0.0
    %2772 = vmatpush1.msra.mxu0 %v2742
    %2773 = vmatprep.subr.mxu0 0.0
    %2774 = vmatpush1.msra.mxu0 %v2743
    %2775 = vmatprep.subr.mxu0 0.0
    %2776 = vmatpush1.msra.mxu0 %v2749
    %2777 = vmatprep.subr.mxu0 0.0
    %2778 = vmatpush1.msra.mxu0 0.0
    %2779 = vmatprep.subr.mxu0 0.0
    %2780 = vmatpush1.msra.mxu0 0.0
    %2781 = vmatprep.subr.mxu0 0.0
    %2782 = vmatpush1.msra.mxu0 0.0
    %2783 = vmatprep.subr.mxu0 0.0
    %2784 = vmatpush1.msra.mxu0 0.0
    %2785 = vmatprep.subr.mxu0 0.0
    %2786 = vmatpush1.msra.mxu0 0.0
    %2787 = vmatprep.subr.mxu0 0.0
    %2788 = vmatpush1.msra.mxu0 0.0
    %2789 = vmatprep.subr.mxu0 0.0
    %2790 = vmatpush1.msra.mxu0 0.0
    %2791 = vmatprep.subr.mxu0 0.0
    %2792 = vmatpush1.msra.mxu0 0.0
    %2793 = vmatprep.subr.mxu0 0.0
    %2794 = vmatpush1.msra.mxu0 0.0
    %2795 = vmatprep.subr.mxu0 0.0
    %2796 = vmatpush1.msra.mxu0 0.0
    %2797 = vmatprep.subr.mxu0 0.0
    %2798 = vmatpush1.msra.mxu0 0.0
    %2799 = vmatprep.subr.mxu0 0.0
    %2800 = vmatpush1.msra.mxu0 0.0
    %2801 = vmatprep.subr.mxu0 0.0
    %2802 = vmatpush1.msra.mxu0 0.0
    %2803 = vmatprep.subr.mxu0 0.0
    %2804 = vmatpush1.msra.mxu0 0.0
    %2805 = vmatprep.subr.mxu0 0.0
    %2806 = vmatpush1.msra.mxu0 0.0
    %2807 = vmatprep.subr.mxu0 0.0
    %2808 = vmatpush1.msra.mxu0 0.0
    %2809 = vmatprep.subr.mxu0 0.0
    %2810 = vmatpush1.msra.mxu0 0.0
    %2811 = vmatprep.subr.mxu0 0.0
    %2812 = vmatpush1.msra.mxu0 0.0
    %2813 = vmatprep.subr.mxu0 0.0
    %2814 = vmatpush1.msra.mxu0 0.0
    %2815 = vmatprep.mubr.f32.mxu0 0.0
    %2816 = vmatmul.mubr.f32.gmra.mrb[0].mxu0 %v2746
    %v2817 = vpop.f32.mrb[0].mxu0
    %v2818 = vadd.f32 0.0, %v2817
    %v2819 = vpop.f32.mrb[0].mxu0
    %2820 = vdwg.mxu0
    %v2821 = vadd.f32 %v2731, %v2818
    %v2822 = vxor.u32 %v2821, 2147483648
    %v2823 = vmul.f32 %v2822, 1.442695
    %v2824 = vpow.pop %v2823
    %v2825 = vadd.f32 %v2824, 1.0
    %v2826 = vrcp.pop %v2825
    %v2827 = vmul.f32 1.0, %v2826
    %s2828 = scalar_lea.vmem %s0, 58
    %v2829 = vld [vmem:[%s2828] sm:$0x3]
    %v2830 = vld [vmem:[%s118] sm:$0xff]
    %v2831 = vld [vmem:[%s118 + $0x8] sm:$0xff]
    %v2832 = vld [vmem:[%s118 + $0x10] sm:$0xff]
    %v2833 = vld [vmem:[%s118 + $0x18] sm:$0xff]
    %v2834 = vld [vmem:[%s118 + $0x20] sm:$0xff]
    %v2835 = vld [vmem:[%s118 + $0x28] sm:$0xff]
    %v2836 = vld [vmem:[%s118 + $0x30] sm:$0xff]
    %v2837 = vld [vmem:[%s118 + $0x38] sm:$0xff]
    %v2838 = vld [vmem:[%s118 + $0x40] sm:$0xff]
    %v2839 = vld [vmem:[%s118 + $0x48] sm:$0xff]
    %v2840 = vld [vmem:[%s118 + $0x50] sm:$0xff]
    %v2841 = vld [vmem:[%s118 + $0x58] sm:$0xff]
    %v2842 = vld [vmem:[%s118 + $0x60] sm:$0xf]
    %v2844 = vsel %vm35, %v2842, 0
    %2846 = vmatprep.subr.mxu0 0.0
    %2847 = vmatpush1.msra.mxu0 %v2830
    %2848 = vmatprep.subr.mxu0 0.0
    %2849 = vmatpush1.msra.mxu0 %v2831
    %2850 = vmatprep.subr.mxu0 0.0
    %2851 = vmatpush1.msra.mxu0 %v2832
    %2852 = vmatprep.subr.mxu0 0.0
    %2853 = vmatpush1.msra.mxu0 %v2833
    %2854 = vmatprep.subr.mxu0 0.0
    %2855 = vmatpush1.msra.mxu0 %v2834
    %2856 = vmatprep.subr.mxu0 0.0
    %2857 = vmatpush1.msra.mxu0 %v2835
    %2858 = vmatprep.subr.mxu0 0.0
    %2859 = vmatpush1.msra.mxu0 %v2836
    %2860 = vmatprep.subr.mxu0 0.0
    %2861 = vmatpush1.msra.mxu0 %v2837
    %2862 = vmatprep.subr.mxu0 0.0
    %2863 = vmatpush1.msra.mxu0 %v2838
    %2864 = vmatprep.subr.mxu0 0.0
    %2865 = vmatpush1.msra.mxu0 %v2839
    %2866 = vmatprep.subr.mxu0 0.0
    %2867 = vmatpush1.msra.mxu0 %v2840
    %2868 = vmatprep.subr.mxu0 0.0
    %2869 = vmatpush1.msra.mxu0 %v2841
    %2870 = vmatprep.subr.mxu0 0.0
    %2871 = vmatpush1.msra.mxu0 %v2844
    %2872 = vmatprep.subr.mxu0 0.0
    %2873 = vmatpush1.msra.mxu0 0.0
    %2874 = vmatprep.subr.mxu0 0.0
    %2875 = vmatpush1.msra.mxu0 0.0
    %2876 = vmatprep.subr.mxu0 0.0
    %2877 = vmatpush1.msra.mxu0 0.0
    %2878 = vmatprep.subr.mxu0 0.0
    %2879 = vmatpush1.msra.mxu0 0.0
    %2880 = vmatprep.subr.mxu0 0.0
    %2881 = vmatpush1.msra.mxu0 0.0
    %2882 = vmatprep.subr.mxu0 0.0
    %2883 = vmatpush1.msra.mxu0 0.0
    %2884 = vmatprep.subr.mxu0 0.0
    %2885 = vmatpush1.msra.mxu0 0.0
    %2886 = vmatprep.subr.mxu0 0.0
    %2887 = vmatpush1.msra.mxu0 0.0
    %2888 = vmatprep.subr.mxu0 0.0
    %2889 = vmatpush1.msra.mxu0 0.0
    %2890 = vmatprep.subr.mxu0 0.0
    %2891 = vmatpush1.msra.mxu0 0.0
    %2892 = vmatprep.subr.mxu0 0.0
    %2893 = vmatpush1.msra.mxu0 0.0
    %2894 = vmatprep.subr.mxu0 0.0
    %2895 = vmatpush1.msra.mxu0 0.0
    %2896 = vmatprep.subr.mxu0 0.0
    %2897 = vmatpush1.msra.mxu0 0.0
    %2898 = vmatprep.subr.mxu0 0.0
    %2899 = vmatpush1.msra.mxu0 0.0
    %2900 = vmatprep.subr.mxu0 0.0
    %2901 = vmatpush1.msra.mxu0 0.0
    %2902 = vmatprep.subr.mxu0 0.0
    %2903 = vmatpush1.msra.mxu0 0.0
    %2904 = vmatprep.subr.mxu0 0.0
    %2905 = vmatpush1.msra.mxu0 0.0
    %2906 = vmatprep.subr.mxu0 0.0
    %2907 = vmatpush1.msra.mxu0 0.0
    %2908 = vmatprep.subr.mxu0 0.0
    %2909 = vmatpush1.msra.mxu0 0.0
    %2910 = vmatprep.mubr.f32.mxu0 0.0
    %2911 = vmatmul.mubr.f32.gmra.mrb[0].mxu0 %v2746
    %v2912 = vpop.f32.mrb[0].mxu0
    %v2913 = vadd.f32 0.0, %v2912
    %v2914 = vpop.f32.mrb[0].mxu0
    %2915 = vdwg.mxu0
    %v2916 = vadd.f32 %v2829, %v2913
    %v2917 = vxor.u32 %v2916, 2147483648
    %v2918 = vmul.f32 %v2917, 1.442695
    %v2919 = vpow.pop %v2918
    %v2920 = vadd.f32 %v2919, 1.0
    %v2921 = vrcp.pop %v2920
    %v2922 = vmul.f32 1.0, %v2921
    %s2923 = scalar_lea.vmem %s0, 60
    %v2924 = vld [vmem:[%s2923] sm:$0x3]
    %v2925 = vld [vmem:[%s214] sm:$0xff]
    %v2926 = vld [vmem:[%s214 + $0x8] sm:$0xff]
    %v2927 = vld [vmem:[%s214 + $0x10] sm:$0xff]
    %v2928 = vld [vmem:[%s214 + $0x18] sm:$0xff]
    %v2929 = vld [vmem:[%s214 + $0x20] sm:$0xff]
    %v2930 = vld [vmem:[%s214 + $0x28] sm:$0xff]
    %v2931 = vld [vmem:[%s214 + $0x30] sm:$0xff]
    %v2932 = vld [vmem:[%s214 + $0x38] sm:$0xff]
    %v2933 = vld [vmem:[%s214 + $0x40] sm:$0xff]
    %v2934 = vld [vmem:[%s214 + $0x48] sm:$0xff]
    %v2935 = vld [vmem:[%s214 + $0x50] sm:$0xff]
    %v2936 = vld [vmem:[%s214 + $0x58] sm:$0xff]
    %v2937 = vld [vmem:[%s214 + $0x60] sm:$0xf]
    %v2939 = vsel %vm35, %v2937, 0
    %2941 = vmatprep.subr.mxu0 0.0
    %2942 = vmatpush1.msra.mxu0 %v2925
    %2943 = vmatprep.subr.mxu0 0.0
    %2944 = vmatpush1.msra.mxu0 %v2926
    %2945 = vmatprep.subr.mxu0 0.0
    %2946 = vmatpush1.msra.mxu0 %v2927
    %2947 = vmatprep.subr.mxu0 0.0
    %2948 = vmatpush1.msra.mxu0 %v2928
    %2949 = vmatprep.subr.mxu0 0.0
    %2950 = vmatpush1.msra.mxu0 %v2929
    %2951 = vmatprep.subr.mxu0 0.0
    %2952 = vmatpush1.msra.mxu0 %v2930
    %2953 = vmatprep.subr.mxu0 0.0
    %2954 = vmatpush1.msra.mxu0 %v2931
    %2955 = vmatprep.subr.mxu0 0.0
    %2956 = vmatpush1.msra.mxu0 %v2932
    %2957 = vmatprep.subr.mxu0 0.0
    %2958 = vmatpush1.msra.mxu0 %v2933
    %2959 = vmatprep.subr.mxu0 0.0
    %2960 = vmatpush1.msra.mxu0 %v2934
    %2961 = vmatprep.subr.mxu0 0.0
    %2962 = vmatpush1.msra.mxu0 %v2935
    %2963 = vmatprep.subr.mxu0 0.0
    %2964 = vmatpush1.msra.mxu0 %v2936
    %2965 = vmatprep.subr.mxu0 0.0
    %2966 = vmatpush1.msra.mxu0 %v2939
    %2967 = vmatprep.subr.mxu0 0.0
    %2968 = vmatpush1.msra.mxu0 0.0
    %2969 = vmatprep.subr.mxu0 0.0
    %2970 = vmatpush1.msra.mxu0 0.0
    %2971 = vmatprep.subr.mxu0 0.0
    %2972 = vmatpush1.msra.mxu0 0.0
    %2973 = vmatprep.subr.mxu0 0.0
    %2974 = vmatpush1.msra.mxu0 0.0
    %2975 = vmatprep.subr.mxu0 0.0
    %2976 = vmatpush1.msra.mxu0 0.0
    %2977 = vmatprep.subr.mxu0 0.0
    %2978 = vmatpush1.msra.mxu0 0.0
    %2979 = vmatprep.subr.mxu0 0.0
    %2980 = vmatpush1.msra.mxu0 0.0
    %2981 = vmatprep.subr.mxu0 0.0
    %2982 = vmatpush1.msra.mxu0 0.0
    %2983 = vmatprep.subr.mxu0 0.0
    %2984 = vmatpush1.msra.mxu0 0.0
    %2985 = vmatprep.subr.mxu0 0.0
    %2986 = vmatpush1.msra.mxu0 0.0
    %2987 = vmatprep.subr.mxu0 0.0
    %2988 = vmatpush1.msra.mxu0 0.0
    %2989 = vmatprep.subr.mxu0 0.0
    %2990 = vmatpush1.msra.mxu0 0.0
    %2991 = vmatprep.subr.mxu0 0.0
    %2992 = vmatpush1.msra.mxu0 0.0
    %2993 = vmatprep.subr.mxu0 0.0
    %2994 = vmatpush1.msra.mxu0 0.0
    %2995 = vmatprep.subr.mxu0 0.0
    %2996 = vmatpush1.msra.mxu0 0.0
    %2997 = vmatprep.subr.mxu0 0.0
    %2998 = vmatpush1.msra.mxu0 0.0
    %2999 = vmatprep.subr.mxu0 0.0
    %3000 = vmatpush1.msra.mxu0 0.0
    %3001 = vmatprep.subr.mxu0 0.0
    %3002 = vmatpush1.msra.mxu0 0.0
    %3003 = vmatprep.subr.mxu0 0.0
    %3004 = vmatpush1.msra.mxu0 0.0
    %3005 = vmatprep.mubr.f32.mxu0 0.0
    %3006 = vmatmul.mubr.f32.gmra.mrb[0].mxu0 %v2746
    %v3007 = vpop.f32.mrb[0].mxu0
    %v3008 = vadd.f32 0.0, %v3007
    %v3009 = vpop.f32.mrb[0].mxu0
    %3010 = vdwg.mxu0
    %v3011 = vadd.f32 %v2924, %v3008
    %v3012 = vtanh.pop %v3011
    %s3013 = scalar_lea.vmem %s0, 62
    %v3014 = vld [vmem:[%s3013] sm:$0x3]
    %v3015 = vld [vmem:[%s305] sm:$0xff]
    %v3016 = vld [vmem:[%s305 + $0x8] sm:$0xff]
    %v3017 = vld [vmem:[%s305 + $0x10] sm:$0xff]
    %v3018 = vld [vmem:[%s305 + $0x18] sm:$0xff]
    %v3019 = vld [vmem:[%s305 + $0x20] sm:$0xff]
    %v3020 = vld [vmem:[%s305 + $0x28] sm:$0xff]
    %v3021 = vld [vmem:[%s305 + $0x30] sm:$0xff]
    %v3022 = vld [vmem:[%s305 + $0x38] sm:$0xff]
    %v3023 = vld [vmem:[%s305 + $0x40] sm:$0xff]
    %v3024 = vld [vmem:[%s305 + $0x48] sm:$0xff]
    %v3025 = vld [vmem:[%s305 + $0x50] sm:$0xff]
    %v3026 = vld [vmem:[%s305 + $0x58] sm:$0xff]
    %v3027 = vld [vmem:[%s305 + $0x60] sm:$0xf]
    %v3029 = vsel %vm35, %v3027, 0
    %3031 = vmatprep.subr.mxu0 0.0
    %3032 = vmatpush1.msra.mxu0 %v3015
    %3033 = vmatprep.subr.mxu0 0.0
    %3034 = vmatpush1.msra.mxu0 %v3016
    %3035 = vmatprep.subr.mxu0 0.0
    %3036 = vmatpush1.msra.mxu0 %v3017
    %3037 = vmatprep.subr.mxu0 0.0
    %3038 = vmatpush1.msra.mxu0 %v3018
    %3039 = vmatprep.subr.mxu0 0.0
    %3040 = vmatpush1.msra.mxu0 %v3019
    %3041 = vmatprep.subr.mxu0 0.0
    %3042 = vmatpush1.msra.mxu0 %v3020
    %3043 = vmatprep.subr.mxu0 0.0
    %3044 = vmatpush1.msra.mxu0 %v3021
    %3045 = vmatprep.subr.mxu0 0.0
    %3046 = vmatpush1.msra.mxu0 %v3022
    %3047 = vmatprep.subr.mxu0 0.0
    %3048 = vmatpush1.msra.mxu0 %v3023
    %3049 = vmatprep.subr.mxu0 0.0
    %3050 = vmatpush1.msra.mxu0 %v3024
    %3051 = vmatprep.subr.mxu0 0.0
    %3052 = vmatpush1.msra.mxu0 %v3025
    %3053 = vmatprep.subr.mxu0 0.0
    %3054 = vmatpush1.msra.mxu0 %v3026
    %3055 = vmatprep.subr.mxu0 0.0
    %3056 = vmatpush1.msra.mxu0 %v3029
    %3057 = vmatprep.subr.mxu0 0.0
    %3058 = vmatpush1.msra.mxu0 0.0
    %3059 = vmatprep.subr.mxu0 0.0
    %3060 = vmatpush1.msra.mxu0 0.0
    %3061 = vmatprep.subr.mxu0 0.0
    %3062 = vmatpush1.msra.mxu0 0.0
    %3063 = vmatprep.subr.mxu0 0.0
    %3064 = vmatpush1.msra.mxu0 0.0
    %3065 = vmatprep.subr.mxu0 0.0
    %3066 = vmatpush1.msra.mxu0 0.0
    %3067 = vmatprep.subr.mxu0 0.0
    %3068 = vmatpush1.msra.mxu0 0.0
    %3069 = vmatprep.subr.mxu0 0.0
    %3070 = vmatpush1.msra.mxu0 0.0
    %3071 = vmatprep.subr.mxu0 0.0
    %3072 = vmatpush1.msra.mxu0 0.0
    %3073 = vmatprep.subr.mxu0 0.0
    %3074 = vmatpush1.msra.mxu0 0.0
    %3075 = vmatprep.subr.mxu0 0.0
    %3076 = vmatpush1.msra.mxu0 0.0
    %3077 = vmatprep.subr.mxu0 0.0
    %3078 = vmatpush1.msra.mxu0 0.0
    %3079 = vmatprep.subr.mxu0 0.0
    %3080 = vmatpush1.msra.mxu0 0.0
    %3081 = vmatprep.subr.mxu0 0.0
    %3082 = vmatpush1.msra.mxu0 0.0
    %3083 = vmatprep.subr.mxu0 0.0
    %3084 = vmatpush1.msra.mxu0 0.0
    %3085 = vmatprep.subr.mxu0 0.0
    %3086 = vmatpush1.msra.mxu0 0.0
    %3087 = vmatprep.subr.mxu0 0.0
    %3088 = vmatpush1.msra.mxu0 0.0
    %3089 = vmatprep.subr.mxu0 0.0
    %3090 = vmatpush1.msra.mxu0 0.0
    %3091 = vmatprep.subr.mxu0 0.0
    %3092 = vmatpush1.msra.mxu0 0.0
    %3093 = vmatprep.subr.mxu0 0.0
    %3094 = vmatpush1.msra.mxu0 0.0
    %3095 = vmatprep.mubr.f32.mxu0 0.0
    %3096 = vmatmul.mubr.f32.gmra.mrb[0].mxu0 %v2746
    %v3097 = vpop.f32.mrb[0].mxu0
    %v3098 = vadd.f32 0.0, %v3097
    %v3099 = vpop.f32.mrb[0].mxu0
    %3100 = vdwg.mxu0
    %v3101 = vadd.f32 %v3014, %v3098
    %v3102 = vxor.u32 %v3101, 2147483648
    %v3103 = vmul.f32 %v3102, 1.442695
    %v3104 = vpow.pop %v3103
    %v3105 = vadd.f32 %v3104, 1.0
    %v3106 = vrcp.pop %v3105
    %v3107 = vmul.f32 1.0, %v3106
    %v3108 = vmul.f32 %v2922, %v2729
    %v3109 = vmul.f32 %v2827, %v3012
    %v3110 = vadd.f32 %v3108, %v3109
    %v3111 = vtanh.pop %v3110
    %v3112 = vmul.f32 %v3107, %v3111
    %3113 = vst.msk [vmem:[#allocation3] sm:$0x3] %vm12, %v3110
    %3114 = vst.msk [vmem:[#allocation2] sm:$0x3] %vm12, %v3112
    %v3115 = vld [vmem:[#allocation2] sm:$0x3]
    %3116 = vst.msk [vmem:[#allocation4] sm:$0x3] %vm12, %v3115
    // Predicated region
    $region10: #{tpu_custom_call.1} parent=1 // pred_check
      _
    $region11: #{tpu_custom_call.1} parent=1 // pred_check_branch
      %3118 = sbr.rel (0) target = $region13
    $region12: #{tpu_custom_call.1} parent=1 // pred_region
      %s3120 = ssub.s32 32, 32
      %3121 = vsyncadd [#allocation5], %s3120
      %s3123 = sshll.u32 [#allocation4], 4
      %s3124 = int_to_ptr.vmem [resolvable:$true] %s3123
      %3126 = dma.vmem_to_hbm [thread:$0]  %s3124, 32, %s2, [#allocation5]
    $region13: #{tpu_custom_call.1} parent=1 // pred_fallthru
      _
    // Predicated region
    $region14: #{tpu_custom_call.1} parent=1 // pred_check
      _
    $region15: #{tpu_custom_call.1} parent=1 // pred_check_branch
      %3128 = sbr.rel (0) target = $region17
    $region16: #{tpu_custom_call.1} parent=1 // pred_region
      %3129 = dma.done [#allocation5], 32
    $region17: #{tpu_custom_call.1} parent=1 // pred_fallthru
      _
    %3130 = vsyncpa [#allocation5], 1

</llo_original>
